<compile_context>
chip_gen: v5e
topology: v5e:2x2
jax: 0.10.0
libtpu: 0.0.40
codegen_flags: <defaults>
</compile_context>

<pallas_src>
import functools
import math

import jax
import jax.numpy as jnp
from jax import lax
from jax.experimental import pallas as pl
from jax.experimental.pallas import tpu as pltpu


# ----------------------------- chip-aware knobs ------------------------------

@functools.lru_cache(maxsize=None)
def _tpu_vmem_capacity_bytes():
    try:
        return int(pltpu.get_tpu_info().vmem_capacity_bytes)
    except Exception:
        return 64 * 1024 * 1024          # conservative fallback (v7x-sized)


@functools.lru_cache(maxsize=None)
def _vmem_limit_bytes():
    cap = _tpu_vmem_capacity_bytes()
    # ~75% of physical VMEM, capped; 96 MiB on v5e/v6e, 48 MiB on v7x.
    return max(32 * 1024 * 1024, min((cap * 3) // 4, 96 * 1024 * 1024))


def _compiler_params(semantics):
    return pltpu.CompilerParams(dimension_semantics=semantics,
                                vmem_limit_bytes=_vmem_limit_bytes())


def _row_block(M):
    """Row tile for flattened (M, feature) kernels: biggest 8-aligned divisor of M
    under the chip-dependent cap, keeping >= 2 grid steps when possible (megacore)."""
    cap = 512 if _tpu_vmem_capacity_bytes() >= 96 * 1024 * 1024 else 256
    if M <= 8:
        return M
    for tm in (512, 384, 256, 128, 64, 32, 16, 8):
        if tm <= cap and tm < M and M % tm == 0:
            return tm
    return M    # TODO(synk): cdiv grid + masked tail tile for awkward M


def _batch_block(N, S, target_rows=256):
    """Batch elements per attention grid step: smallest BN whose flattened
    projection matmul reaches target_rows, preferring >= 2 grid steps (v7x)."""
    divisors = [d for d in range(1, N + 1) if N % d == 0]
    for d in divisors:                      # enough rows AND both cores busy
        if d * S >= target_rows and N // d >= 2:
            return d
    for d in divisors:                      # enough rows, single step
        if d * S >= target_rows:
            return d
    for d in reversed(divisors):            # rows can't reach target: keep 2 steps
        if N // d >= 2:
            return d
    return N


# --------------------- fused disentangled self-attention ---------------------

def _attn_kernel(src_ref, pos_ref, rel_ref, wc_ref, bc_ref, wp_ref, bp_ref,
                 o_ref, *, BN, S, H, E):
    """BN batch elements: fused bf16 [q|k|v] / [qp|kp] projections + per-head attention."""
    HE = H * E
    # Flatten BN batch elements so the projection matmuls see BN*S rows (MXU fill).
    x = src_ref[...].reshape(BN * S, E).astype(jnp.bfloat16)
    pe = pos_ref[...].reshape(BN * S, E).astype(jnp.bfloat16)
    rel = rel_ref[...].astype(jnp.float32)

    # bf16 MXU passes with fp32 accumulation; 1/sqrt(3E) already folded into the
    # q / qp weight columns at parameter-construction time.
    qkv = (jnp.dot(x, wc_ref[...], preferred_element_type=jnp.float32)
           + bc_ref[...]).astype(jnp.bfloat16)          # (BN*S, 3*HE)
    qpkp = (jnp.dot(pe, wp_ref[...], preferred_element_type=jnp.float32)
            + bp_ref[...]).astype(jnp.bfloat16)         # (BN*S, 2*HE)

    dn = (((1,), (1,)), ((), ()))   # contract last dims: a @ b.T without XLU transpose
    for b in range(BN):             # BN, H are small & static -> fully unrolled
        cb = qkv[b * S:(b + 1) * S]
        pb = qpkp[b * S:(b + 1) * S]
        for h in range(H):
            q = cb[:, h * E:(h + 1) * E]
            k = cb[:, HE + h * E: HE + (h + 1) * E]
            v = cb[:, 2 * HE + h * E: 2 * HE + (h + 1) * E]
            qp = pb[:, h * E:(h + 1) * E]
            kp = pb[:, HE + h * E: HE + (h + 1) * E]
            # q@(k+kp)^T + qp@k^T merged into ONE MXU pass with 2E contraction depth.
            lhs = jnp.concatenate([q, qp], axis=-1)
            rhs = jnp.concatenate([k + kp, k], axis=-1)
            s = lax.dot_general(lhs, rhs, dn,
                                preferred_element_type=jnp.float32) + rel
            m = jnp.max(s, axis=-1, keepdims=True)
            p = jnp.exp(s - m)
            p = p * pl.reciprocal(jnp.sum(p, axis=-1, keepdims=True), approx=True)
            pv = jnp.dot(p.astype(jnp.bfloat16), v,
                         preferred_element_type=jnp.float32)
            # Direct per-head store: no concat, no extra live head outputs.
            o_ref[b, :, h * E:(h + 1) * E] = pv.astype(o_ref.dtype)


def disentangled_self_attention(src_nse, pos_nse, rel_pos, wc, bc, wp, bp, H, E):
    """src_nse / pos_nse: (N, S, E); rel_pos: (S, S) -> (N, S, H*E)."""
    N, S, _ = src_nse.shape
    HE = H * E
    BN = _batch_block(N, S)
    # TODO(synk): for large S, add a query-row tile axis + online-softmax kv loop
    # instead of materializing the full (S, S) score matrix per head.
    # TODO(synk): single-buffer the grid-invariant weight BlockSpecs via
    # pipeline_mode=pl.Buffered(1) once available in the target JAX build.
    return pl.pallas_call(
        functools.partial(_attn_kernel, BN=BN, S=S, H=H, E=E),
        out_shape=jax.ShapeDtypeStruct((N, S, HE), src_nse.dtype),
        grid_spec=pl.GridSpec(
            grid=(N // BN,),
            in_specs=[
                pl.BlockSpec((BN, S, E), lambda n: (n, 0, 0)),
                pl.BlockSpec((BN, S, E), lambda n: (n, 0, 0)),
                pl.BlockSpec((S, S), lambda n: (0, 0)),
                pl.BlockSpec((E, 3 * HE), lambda n: (0, 0)),
                pl.BlockSpec((1, 3 * HE), lambda n: (0, 0)),
                pl.BlockSpec((E, 2 * HE), lambda n: (0, 0)),
                pl.BlockSpec((1, 2 * HE), lambda n: (0, 0)),
            ],
            out_specs=pl.BlockSpec((BN, S, HE), lambda n: (n, 0, 0)),
        ),
        compiler_params=_compiler_params(("parallel",)),
    )(src_nse, pos_nse, rel_pos, wc, bc, wp, bp)


# -------- fused concat + LayerNorm1 + Linear1 + ReLU + Linear2 + LayerNorm2 ---

def _ffn_fused_kernel(xa_ref, xb_ref, g1a_ref, g1b_ref, b1a_ref, b1b_ref,
                      w1a_ref, w1b_ref, bf1_ref, w2_ref, bf2_ref,
                      g2_ref, bn2_ref, o_ref, *, eps, d_cat):
    """LN over the *logical* concat [xa | xb] (never materialized), Linear1 + ReLU,
    Linear2, LN2.  The (tm, DFF) hidden stays in VMEM/vregs — no HBM round trip.
    xa:(tm,E) xb:(tm,HE); w1 pre-split into row blocks w1a:(E,DFF) w1b:(HE,DFF)."""
    xa = xa_ref[...].astype(jnp.float32)
    xb = xb_ref[...].astype(jnp.float32)
    inv_d = 1.0 / d_cat
    mean = (jnp.sum(xa, -1, keepdims=True) + jnp.sum(xb, -1, keepdims=True)) * inv_d
    da = xa - mean
    db = xb - mean
    var = (jnp.sum(da * da, -1, keepdims=True)
           + jnp.sum(db * db, -1, keepdims=True)) * inv_d
    inv = lax.rsqrt(var + eps)
    ya = (da * inv * g1a_ref[...] + b1a_ref[...]).astype(jnp.bfloat16)
    yb = (db * inv * g1b_ref[...] + b1b_ref[...]).astype(jnp.bfloat16)
    # Linear1 (+ReLU) — bf16 operands, fp32 accumulation.
    h = jnp.dot(ya, w1a_ref[...], preferred_element_type=jnp.float32)
    h = h + jnp.dot(yb, w1b_ref[...], preferred_element_type=jnp.float32)
    h = jnp.maximum(h + bf1_ref[...], 0.0).astype(jnp.bfloat16)
    # Linear2 + LayerNorm2 (fp32 statistics).
    y = jnp.dot(h, w2_ref[...], preferred_element_type=jnp.float32) + bf2_ref[...]
    mean2 = jnp.mean(y, axis=-1, keepdims=True)
    d2 = y - mean2
    var2 = jnp.mean(d2 * d2, axis=-1, keepdims=True)
    o_ref[...] = (d2 * lax.rsqrt(var2 + eps) * g2_ref[...]
                  + bn2_ref[...]).astype(o_ref.dtype)
    # TODO(synk): output last dim E < 128 lowers to masked partial stores; pad the
    # feature axis (or pick E a multiple of 128) for lane-dense stores at scale.


def fused_concat_ln_ffn(xa, xb, g1a, g1b, b1a, b1b, w1a, w1b, b1, w2, b2,
                        g2, bn2, eps=1e-5):
    M, E = xa.shape
    HE = xb.shape[1]
    DFF = w1a.shape[1]
    tm = _row_block(M)
    # TODO(synk): for realistic DFF/E add a reduction grid axis over DFF (K-tiled
    # w1/w2 with an fp32 VMEM accumulator via pl.when) instead of whole-weight residency.
    return pl.pallas_call(
        functools.partial(_ffn_fused_kernel, eps=eps, d_cat=float(E + HE)),
        out_shape=jax.ShapeDtypeStruct((M, E), xa.dtype),
        grid_spec=pl.GridSpec(
            grid=(M // tm,),
            in_specs=[
                pl.BlockSpec((tm, E), lambda i: (i, 0)),
                pl.BlockSpec((tm, HE), lambda i: (i, 0)),
                pl.BlockSpec((1, E), lambda i: (0, 0)),
                pl.BlockSpec((1, HE), lambda i: (0, 0)),
                pl.BlockSpec((1, E), lambda i: (0, 0)),
                pl.BlockSpec((1, HE), lambda i: (0, 0)),
                pl.BlockSpec((E, DFF), lambda i: (0, 0)),
                pl.BlockSpec((HE, DFF), lambda i: (0, 0)),
                pl.BlockSpec((1, DFF), lambda i: (0, 0)),
                pl.BlockSpec((DFF, E), lambda i: (0, 0)),
                pl.BlockSpec((1, E), lambda i: (0, 0)),
                pl.BlockSpec((1, E), lambda i: (0, 0)),
                pl.BlockSpec((1, E), lambda i: (0, 0)),
            ],
            out_specs=pl.BlockSpec((tm, E), lambda i: (i, 0)),
        ),
        compiler_params=_compiler_params(("parallel",)),
    )(xa, xb, g1a, g1b, b1a, b1b, w1a, w1b, b1, w2, b2, g2, bn2)


# ------------------------------- final LayerNorm ------------------------------

def _layernorm_kernel(x_ref, g_ref, b_ref, o_ref, *, eps):
    x = x_ref[...].astype(jnp.float32)
    mean = jnp.mean(x, axis=-1, keepdims=True)
    d = x - mean
    var = jnp.mean(d * d, axis=-1, keepdims=True)
    o_ref[...] = (d * lax.rsqrt(var + eps) * g_ref[...] + b_ref[...]).astype(o_ref.dtype)


def layernorm(x, g, b, eps=1e-5):
    M, D = x.shape
    tm = _row_block(M)
    return pl.pallas_call(
        functools.partial(_layernorm_kernel, eps=eps),
        out_shape=jax.ShapeDtypeStruct((M, D), x.dtype),
        grid_spec=pl.GridSpec(
            grid=(M // tm,),
            in_specs=[
                pl.BlockSpec((tm, D), lambda i: (i, 0)),
                pl.BlockSpec((1, D), lambda i: (0, 0)),
                pl.BlockSpec((1, D), lambda i: (0, 0)),
            ],
            out_specs=pl.BlockSpec((tm, D), lambda i: (i, 0)),
        ),
        compiler_params=_compiler_params(("parallel",)),
    )(x, g, b)


# ------------------------------- model forward --------------------------------

def encoder_layer_forward(src_nse, pos_nse, rel_pos, p, H, E):
    N, S, _ = src_nse.shape
    src2 = disentangled_self_attention(src_nse, pos_nse, rel_pos,
                                       p["attn_wc"], p["attn_bc"],
                                       p["attn_wp"], p["attn_bp"], H, E)
    M = N * S
    xa = src_nse.reshape(M, E)          # free reshape (contiguous leading dims)
    xb = src2.reshape(M, H * E)
    y = fused_concat_ln_ffn(xa, xb,
                            p["ln1_ga"], p["ln1_gb"], p["ln1_ba"], p["ln1_bb"],
                            p["w1a"], p["w1b"], p["b1"],
                            p["w2"], p["b2"], p["ln2_g"], p["ln2_b"])
    return y.reshape(N, S, E)


def custom_transformer_forward(src, pos_encoding, rel_pos, params, H, E):
    # Keep batch-major (N, S, E) layout internally: one relayout in, one out.
    x = jnp.transpose(src, (1, 0, 2))
    pe = jnp.transpose(pos_encoding, (1, 0, 2))
    for layer_p in params["layers"]:
        x = encoder_layer_forward(x, pe, rel_pos, layer_p, H, E)
    N, S, _ = x.shape
    x = layernorm(x.reshape(N * S, E), params["lnf_g"], params["lnf_b"]).reshape(N, S, E)
    return jnp.transpose(x, (1, 0, 2))   # back to (S, N, E)


# ----------------------------- parameter creation -----------------------------

def _xavier_uniform(key, shape):
    fan_in, fan_out = shape[0], shape[1]
    limit = math.sqrt(6.0 / (fan_in + fan_out))
    return jax.random.uniform(key, shape, jnp.float32, -limit, limit)


def init_params(key, E, H, DFF, L):
    HE = H * E
    D1 = E + HE          # d_model * (nhead + 1)
    scale = 1.0 / math.sqrt(3.0 * E)
    params = {"layers": []}
    for _ in range(L):
        keys = jax.random.split(key, 8)
        key = keys[0]
        wq = _xavier_uniform(keys[1], (E, HE))
        wk = _xavier_uniform(keys[2], (E, HE))
        wv = _xavier_uniform(keys[3], (E, HE))
        wqp = _xavier_uniform(keys[4], (E, HE))
        wkp = _xavier_uniform(keys[5], (E, HE))
        w1 = _xavier_uniform(keys[6], (D1, DFF))
        w2 = _xavier_uniform(keys[7], (DFF, E))
        layer = {
            # fused projection weights [q|k|v] and [qp|kp]; the 1/sqrt(3E) score
            # scale is folded into the q / qp columns; weights stored bf16 for the
            # MXU (fp32 accumulation inside the kernels). Biases stay fp32.
            "attn_wc": jnp.concatenate([wq * scale, wk, wv], axis=1).astype(jnp.bfloat16),
            "attn_bc": jnp.zeros((1, 3 * HE), jnp.float32),
            "attn_wp": jnp.concatenate([wqp * scale, wkp], axis=1).astype(jnp.bfloat16),
            "attn_bp": jnp.zeros((1, 2 * HE), jnp.float32),
            # LayerNorm1 params split over the [src | src2] halves of the concat
            "ln1_ga": jnp.ones((1, E), jnp.float32),
            "ln1_gb": jnp.ones((1, HE), jnp.float32),
            "ln1_ba": jnp.zeros((1, E), jnp.float32),
            "ln1_bb": jnp.zeros((1, HE), jnp.float32),
            # Linear1 weight pre-split into row blocks matching the concat halves
            "w1a": w1[:E].astype(jnp.bfloat16),
            "w1b": w1[E:].astype(jnp.bfloat16),
            "b1": jnp.zeros((1, DFF), jnp.float32),
            "w2": w2.astype(jnp.bfloat16),
            "b2": jnp.zeros((1, E), jnp.float32),
            "ln2_g": jnp.ones((1, E), jnp.float32),
            "ln2_b": jnp.zeros((1, E), jnp.float32),
        }
        params["layers"].append(layer)
    params["lnf_g"] = jnp.ones((1, E), jnp.float32)
    params["lnf_b"] = jnp.zeros((1, E), jnp.float32)
    return params


# ----------------------------------- main --------------------------------------

if __name__ == "__main__":
    S, N, E, H, DFF, L = 8, 2, 32, 4, 64, 2   # seq, batch, d_model, nhead, ffn, layers

    key = jax.random.PRNGKey(0)
    k_src, k_pos, k_rel, k_par = jax.random.split(key, 4)
    src = jax.random.normal(k_src, (S, N, E), jnp.float32)
    pos_encoding = jax.random.normal(k_pos, (S, N, E), jnp.float32)
    rel_pos = 0.1 * jax.random.normal(k_rel, (S, S), jnp.float32)

    params = init_params(k_par, E, H, DFF, L)

    fwd = jax.jit(functools.partial(custom_transformer_forward, H=H, E=E))
    out = fwd(src, pos_encoding, rel_pos, params)
    jax.block_until_ready(out)

    assert out.shape == (S, N, E), out.shape
    assert jnp.all(jnp.isfinite(out))
    print("KERNEL_OK")
</pallas_src>

<mosaic_0001>
module attributes {stable_mosaic.version = 11 : i64} {
  func.func @_attn_kernel(%arg0: i32, %arg1: memref<1x8x32xf32, #tpu.memory_space<vmem>>, %arg2: memref<1x8x32xf32, #tpu.memory_space<vmem>>, %arg3: memref<8x8xf32, #tpu.memory_space<vmem>>, %arg4: memref<32x384xbf16, #tpu.memory_space<vmem>>, %arg5: memref<1x384xf32, #tpu.memory_space<vmem>>, %arg6: memref<32x256xbf16, #tpu.memory_space<vmem>>, %arg7: memref<1x256xf32, #tpu.memory_space<vmem>>, %arg8: memref<1x8x128xf32, #tpu.memory_space<vmem>>) attributes {dimension_semantics = [#tpu.dimension_semantics<parallel>], iteration_bounds = array<i64: 2>, scalar_prefetch = 0 : i64, scratch_operands = 0 : i64, tpu.core_type = #tpu.core_type<tc>, window_params = [{transform_indices = @transform_0, window_bounds = array<i64: 1, 8, 32>}, {transform_indices = @transform_1, window_bounds = array<i64: 1, 8, 32>}, {pipeline_mode = #tpu.pipeline_mode<synchronous>, transform_indices = @transform_2, window_bounds = array<i64: 8, 8>}, {pipeline_mode = #tpu.pipeline_mode<synchronous>, transform_indices = @transform_3, window_bounds = array<i64: 32, 384>}, {pipeline_mode = #tpu.pipeline_mode<synchronous>, transform_indices = @transform_4, window_bounds = array<i64: 1, 384>}, {pipeline_mode = #tpu.pipeline_mode<synchronous>, transform_indices = @transform_5, window_bounds = array<i64: 32, 256>}, {pipeline_mode = #tpu.pipeline_mode<synchronous>, transform_indices = @transform_6, window_bounds = array<i64: 1, 256>}, {transform_indices = @transform_7, window_bounds = array<i64: 1, 8, 128>}]} {
    %c0 = arith.constant 0 : index
    %c0_0 = arith.constant 0 : index
    %c0_1 = arith.constant 0 : index
    %0 = vector.load %arg1[%c0, %c0_0, %c0_1] : memref<1x8x32xf32, #tpu.memory_space<vmem>>, vector<1x8x32xf32>
    %1 = vector.shape_cast %0 : vector<1x8x32xf32> to vector<8x32xf32>
    %2 = arith.truncf %1 : vector<8x32xf32> to vector<8x32xbf16>
    %c0_2 = arith.constant 0 : index
    %c0_3 = arith.constant 0 : index
    %c0_4 = arith.constant 0 : index
    %3 = vector.load %arg2[%c0_2, %c0_3, %c0_4] : memref<1x8x32xf32, #tpu.memory_space<vmem>>, vector<1x8x32xf32>
    %4 = vector.shape_cast %3 : vector<1x8x32xf32> to vector<8x32xf32>
    %5 = arith.truncf %4 : vector<8x32xf32> to vector<8x32xbf16>
    %c0_5 = arith.constant 0 : index
    %c0_6 = arith.constant 0 : index
    %6 = vector.load %arg3[%c0_5, %c0_6] : memref<8x8xf32, #tpu.memory_space<vmem>>, vector<8x8xf32>
    %c0_7 = arith.constant 0 : index
    %c0_8 = arith.constant 0 : index
    %7 = vector.load %arg4[%c0_7, %c0_8] : memref<32x384xbf16, #tpu.memory_space<vmem>>, vector<32x384xbf16>
    %cst = arith.constant dense<0.000000e+00> : vector<8x384xf32>
    %8 = tpu.matmul %2, %7, %cst {dimension_numbers = #tpu.dot_dimension_numbers<[1], [0], [0], [1], [0, 0, 1, 1], [], []>} : vector<8x32xbf16>, vector<32x384xbf16>, vector<8x384xf32> -> vector<8x384xf32>
    %c0_9 = arith.constant 0 : index
    %c0_10 = arith.constant 0 : index
    %9 = vector.load %arg5[%c0_9, %c0_10] : memref<1x384xf32, #tpu.memory_space<vmem>>, vector<1x384xf32>
    %10 = vector.broadcast %9 : vector<1x384xf32> to vector<8x384xf32>
    %11 = arith.addf %8, %10 : vector<8x384xf32>
    %12 = arith.truncf %11 : vector<8x384xf32> to vector<8x384xbf16>
    %c0_11 = arith.constant 0 : index
    %c0_12 = arith.constant 0 : index
    %13 = vector.load %arg6[%c0_11, %c0_12] : memref<32x256xbf16, #tpu.memory_space<vmem>>, vector<32x256xbf16>
    %cst_13 = arith.constant dense<0.000000e+00> : vector<8x256xf32>
    %14 = tpu.matmul %5, %13, %cst_13 {dimension_numbers = #tpu.dot_dimension_numbers<[1], [0], [0], [1], [0, 0, 1, 1], [], []>} : vector<8x32xbf16>, vector<32x256xbf16>, vector<8x256xf32> -> vector<8x256xf32>
    %c0_14 = arith.constant 0 : index
    %c0_15 = arith.constant 0 : index
    %15 = vector.load %arg7[%c0_14, %c0_15] : memref<1x256xf32, #tpu.memory_space<vmem>>, vector<1x256xf32>
    %16 = vector.broadcast %15 : vector<1x256xf32> to vector<8x256xf32>
    %17 = arith.addf %14, %16 : vector<8x256xf32>
    %18 = arith.truncf %17 : vector<8x256xf32> to vector<8x256xbf16>
    %19 = vector.extract_strided_slice %12 {offsets = [0, 0], sizes = [8, 32], strides = [1, 1]} : vector<8x384xbf16> to vector<8x32xbf16>
    %20 = vector.extract_strided_slice %12 {offsets = [0, 128], sizes = [8, 32], strides = [1, 1]} : vector<8x384xbf16> to vector<8x32xbf16>
    %21 = vector.extract_strided_slice %12 {offsets = [0, 256], sizes = [8, 32], strides = [1, 1]} : vector<8x384xbf16> to vector<8x32xbf16>
    %22 = vector.extract_strided_slice %18 {offsets = [0, 0], sizes = [8, 32], strides = [1, 1]} : vector<8x256xbf16> to vector<8x32xbf16>
    %23 = vector.extract_strided_slice %18 {offsets = [0, 128], sizes = [8, 32], strides = [1, 1]} : vector<8x256xbf16> to vector<8x32xbf16>
    %24 = tpu.concatenate %19, %22 in 1 : vector<8x32xbf16>, vector<8x32xbf16> -> vector<8x64xbf16>
    %25 = arith.addf %20, %23 : vector<8x32xbf16>
    %26 = tpu.concatenate %25, %20 in 1 : vector<8x32xbf16>, vector<8x32xbf16> -> vector<8x64xbf16>
    %cst_16 = arith.constant dense<0.000000e+00> : vector<8x8xf32>
    %27 = tpu.matmul %24, %26, %cst_16 {dimension_numbers = #tpu.dot_dimension_numbers<[1], [1], [0], [0], [0, 0, 1, 0], [], []>} : vector<8x64xbf16>, vector<8x64xbf16>, vector<8x8xf32> -> vector<8x8xf32>
    %28 = arith.addf %27, %6 : vector<8x8xf32>
    %cst_17 = arith.constant dense<0xFF800000> : vector<8xf32>
    %29 = vector.multi_reduction <maximumf>, %28, %cst_17 [1] : vector<8x8xf32> to vector<8xf32>
    %30 = vector.shape_cast %29 : vector<8xf32> to vector<8x1xf32>
    %31 = vector.broadcast %30 : vector<8x1xf32> to vector<8x8xf32>
    %32 = arith.subf %28, %31 : vector<8x8xf32>
    %33 = math.exp %32 : vector<8x8xf32>
    %cst_18 = arith.constant dense<0.000000e+00> : vector<8xf32>
    %34 = vector.multi_reduction <add>, %33, %cst_18 [1] : vector<8x8xf32> to vector<8xf32>
    %35 = vector.shape_cast %34 : vector<8xf32> to vector<8x1xf32>
    %36 = tpu.reciprocal %35 {approx = true} : vector<8x1xf32> -> vector<8x1xf32>
    %37 = vector.broadcast %36 : vector<8x1xf32> to vector<8x8xf32>
    %38 = arith.mulf %33, %37 : vector<8x8xf32>
    %39 = arith.truncf %38 : vector<8x8xf32> to vector<8x8xbf16>
    %cst_19 = arith.constant dense<0.000000e+00> : vector<8x32xf32>
    %40 = tpu.matmul %39, %21, %cst_19 {dimension_numbers = #tpu.dot_dimension_numbers<[1], [0], [0], [1], [0, 0, 1, 1], [], []>} : vector<8x8xbf16>, vector<8x32xbf16>, vector<8x32xf32> -> vector<8x32xf32>
    %c0_20 = arith.constant 0 : index
    %c0_21 = arith.constant 0 : index
    %c0_22 = arith.constant 0 : index
    %41 = vector.load %arg8[%c0_20, %c0_21, %c0_22] : memref<1x8x128xf32, #tpu.memory_space<vmem>>, vector<1x8x32xf32>
    %42 = vector.shape_cast %41 : vector<1x8x32xf32> to vector<8x32xf32>
    %43 = vector.shape_cast %40 : vector<8x32xf32> to vector<1x8x32xf32>
    tpu.vector_store %arg8[%c0_20, %c0_21, %c0_22], %43 {strides = array<i32>} : memref<1x8x128xf32, #tpu.memory_space<vmem>>, vector<1x8x32xf32>,
    %44 = vector.extract_strided_slice %12 {offsets = [0, 32], sizes = [8, 32], strides = [1, 1]} : vector<8x384xbf16> to vector<8x32xbf16>
    %45 = vector.extract_strided_slice %12 {offsets = [0, 160], sizes = [8, 32], strides = [1, 1]} : vector<8x384xbf16> to vector<8x32xbf16>
    %46 = vector.extract_strided_slice %12 {offsets = [0, 288], sizes = [8, 32], strides = [1, 1]} : vector<8x384xbf16> to vector<8x32xbf16>
    %47 = vector.extract_strided_slice %18 {offsets = [0, 32], sizes = [8, 32], strides = [1, 1]} : vector<8x256xbf16> to vector<8x32xbf16>
    %48 = vector.extract_strided_slice %18 {offsets = [0, 160], sizes = [8, 32], strides = [1, 1]} : vector<8x256xbf16> to vector<8x32xbf16>
    %49 = tpu.concatenate %44, %47 in 1 : vector<8x32xbf16>, vector<8x32xbf16> -> vector<8x64xbf16>
    %50 = arith.addf %45, %48 : vector<8x32xbf16>
    %51 = tpu.concatenate %50, %45 in 1 : vector<8x32xbf16>, vector<8x32xbf16> -> vector<8x64xbf16>
    %cst_23 = arith.constant dense<0.000000e+00> : vector<8x8xf32>
    %52 = tpu.matmul %49, %51, %cst_23 {dimension_numbers = #tpu.dot_dimension_numbers<[1], [1], [0], [0], [0, 0, 1, 0], [], []>} : vector<8x64xbf16>, vector<8x64xbf16>, vector<8x8xf32> -> vector<8x8xf32>
    %53 = arith.addf %52, %6 : vector<8x8xf32>
    %cst_24 = arith.constant dense<0xFF800000> : vector<8xf32>
    %54 = vector.multi_reduction <maximumf>, %53, %cst_24 [1] : vector<8x8xf32> to vector<8xf32>
    %55 = vector.shape_cast %54 : vector<8xf32> to vector<8x1xf32>
    %56 = vector.broadcast %55 : vector<8x1xf32> to vector<8x8xf32>
    %57 = arith.subf %53, %56 : vector<8x8xf32>
    %58 = math.exp %57 : vector<8x8xf32>
    %cst_25 = arith.constant dense<0.000000e+00> : vector<8xf32>
    %59 = vector.multi_reduction <add>, %58, %cst_25 [1] : vector<8x8xf32> to vector<8xf32>
    %60 = vector.shape_cast %59 : vector<8xf32> to vector<8x1xf32>
    %61 = tpu.reciprocal %60 {approx = true} : vector<8x1xf32> -> vector<8x1xf32>
    %62 = vector.broadcast %61 : vector<8x1xf32> to vector<8x8xf32>
    %63 = arith.mulf %58, %62 : vector<8x8xf32>
    %64 = arith.truncf %63 : vector<8x8xf32> to vector<8x8xbf16>
    %cst_26 = arith.constant dense<0.000000e+00> : vector<8x32xf32>
    %65 = tpu.matmul %64, %46, %cst_26 {dimension_numbers = #tpu.dot_dimension_numbers<[1], [0], [0], [1], [0, 0, 1, 1], [], []>} : vector<8x8xbf16>, vector<8x32xbf16>, vector<8x32xf32> -> vector<8x32xf32>
    %c0_27 = arith.constant 0 : index
    %c0_28 = arith.constant 0 : index
    %c32 = arith.constant 32 : index
    %66 = vector.load %arg8[%c0_27, %c0_28, %c32] : memref<1x8x128xf32, #tpu.memory_space<vmem>>, vector<1x8x32xf32>
    %67 = vector.shape_cast %66 : vector<1x8x32xf32> to vector<8x32xf32>
    %68 = vector.shape_cast %65 : vector<8x32xf32> to vector<1x8x32xf32>
    tpu.vector_store %arg8[%c0_27, %c0_28, %c32], %68 {strides = array<i32>} : memref<1x8x128xf32, #tpu.memory_space<vmem>>, vector<1x8x32xf32>,
    %69 = vector.extract_strided_slice %12 {offsets = [0, 64], sizes = [8, 32], strides = [1, 1]} : vector<8x384xbf16> to vector<8x32xbf16>
    %70 = vector.extract_strided_slice %12 {offsets = [0, 192], sizes = [8, 32], strides = [1, 1]} : vector<8x384xbf16> to vector<8x32xbf16>
    %71 = vector.extract_strided_slice %12 {offsets = [0, 320], sizes = [8, 32], strides = [1, 1]} : vector<8x384xbf16> to vector<8x32xbf16>
    %72 = vector.extract_strided_slice %18 {offsets = [0, 64], sizes = [8, 32], strides = [1, 1]} : vector<8x256xbf16> to vector<8x32xbf16>
    %73 = vector.extract_strided_slice %18 {offsets = [0, 192], sizes = [8, 32], strides = [1, 1]} : vector<8x256xbf16> to vector<8x32xbf16>
    %74 = tpu.concatenate %69, %72 in 1 : vector<8x32xbf16>, vector<8x32xbf16> -> vector<8x64xbf16>
    %75 = arith.addf %70, %73 : vector<8x32xbf16>
    %76 = tpu.concatenate %75, %70 in 1 : vector<8x32xbf16>, vector<8x32xbf16> -> vector<8x64xbf16>
    %cst_29 = arith.constant dense<0.000000e+00> : vector<8x8xf32>
    %77 = tpu.matmul %74, %76, %cst_29 {dimension_numbers = #tpu.dot_dimension_numbers<[1], [1], [0], [0], [0, 0, 1, 0], [], []>} : vector<8x64xbf16>, vector<8x64xbf16>, vector<8x8xf32> -> vector<8x8xf32>
    %78 = arith.addf %77, %6 : vector<8x8xf32>
    %cst_30 = arith.constant dense<0xFF800000> : vector<8xf32>
    %79 = vector.multi_reduction <maximumf>, %78, %cst_30 [1] : vector<8x8xf32> to vector<8xf32>
    %80 = vector.shape_cast %79 : vector<8xf32> to vector<8x1xf32>
    %81 = vector.broadcast %80 : vector<8x1xf32> to vector<8x8xf32>
    %82 = arith.subf %78, %81 : vector<8x8xf32>
    %83 = math.exp %82 : vector<8x8xf32>
    %cst_31 = arith.constant dense<0.000000e+00> : vector<8xf32>
    %84 = vector.multi_reduction <add>, %83, %cst_31 [1] : vector<8x8xf32> to vector<8xf32>
    %85 = vector.shape_cast %84 : vector<8xf32> to vector<8x1xf32>
    %86 = tpu.reciprocal %85 {approx = true} : vector<8x1xf32> -> vector<8x1xf32>
    %87 = vector.broadcast %86 : vector<8x1xf32> to vector<8x8xf32>
    %88 = arith.mulf %83, %87 : vector<8x8xf32>
    %89 = arith.truncf %88 : vector<8x8xf32> to vector<8x8xbf16>
    %cst_32 = arith.constant dense<0.000000e+00> : vector<8x32xf32>
    %90 = tpu.matmul %89, %71, %cst_32 {dimension_numbers = #tpu.dot_dimension_numbers<[1], [0], [0], [1], [0, 0, 1, 1], [], []>} : vector<8x8xbf16>, vector<8x32xbf16>, vector<8x32xf32> -> vector<8x32xf32>
    %c0_33 = arith.constant 0 : index
    %c0_34 = arith.constant 0 : index
    %c64 = arith.constant 64 : index
    %91 = vector.load %arg8[%c0_33, %c0_34, %c64] : memref<1x8x128xf32, #tpu.memory_space<vmem>>, vector<1x8x32xf32>
    %92 = vector.shape_cast %91 : vector<1x8x32xf32> to vector<8x32xf32>
    %93 = vector.shape_cast %90 : vector<8x32xf32> to vector<1x8x32xf32>
    tpu.vector_store %arg8[%c0_33, %c0_34, %c64], %93 {strides = array<i32>} : memref<1x8x128xf32, #tpu.memory_space<vmem>>, vector<1x8x32xf32>,
    %94 = vector.extract_strided_slice %12 {offsets = [0, 96], sizes = [8, 32], strides = [1, 1]} : vector<8x384xbf16> to vector<8x32xbf16>
    %95 = vector.extract_strided_slice %12 {offsets = [0, 224], sizes = [8, 32], strides = [1, 1]} : vector<8x384xbf16> to vector<8x32xbf16>
    %96 = vector.extract_strided_slice %12 {offsets = [0, 352], sizes = [8, 32], strides = [1, 1]} : vector<8x384xbf16> to vector<8x32xbf16>
    %97 = vector.extract_strided_slice %18 {offsets = [0, 96], sizes = [8, 32], strides = [1, 1]} : vector<8x256xbf16> to vector<8x32xbf16>
    %98 = vector.extract_strided_slice %18 {offsets = [0, 224], sizes = [8, 32], strides = [1, 1]} : vector<8x256xbf16> to vector<8x32xbf16>
    %99 = tpu.concatenate %94, %97 in 1 : vector<8x32xbf16>, vector<8x32xbf16> -> vector<8x64xbf16>
    %100 = arith.addf %95, %98 : vector<8x32xbf16>
    %101 = tpu.concatenate %100, %95 in 1 : vector<8x32xbf16>, vector<8x32xbf16> -> vector<8x64xbf16>
    %cst_35 = arith.constant dense<0.000000e+00> : vector<8x8xf32>
    %102 = tpu.matmul %99, %101, %cst_35 {dimension_numbers = #tpu.dot_dimension_numbers<[1], [1], [0], [0], [0, 0, 1, 0], [], []>} : vector<8x64xbf16>, vector<8x64xbf16>, vector<8x8xf32> -> vector<8x8xf32>
    %103 = arith.addf %102, %6 : vector<8x8xf32>
    %cst_36 = arith.constant dense<0xFF800000> : vector<8xf32>
    %104 = vector.multi_reduction <maximumf>, %103, %cst_36 [1] : vector<8x8xf32> to vector<8xf32>
    %105 = vector.shape_cast %104 : vector<8xf32> to vector<8x1xf32>
    %106 = vector.broadcast %105 : vector<8x1xf32> to vector<8x8xf32>
    %107 = arith.subf %103, %106 : vector<8x8xf32>
    %108 = math.exp %107 : vector<8x8xf32>
    %cst_37 = arith.constant dense<0.000000e+00> : vector<8xf32>
    %109 = vector.multi_reduction <add>, %108, %cst_37 [1] : vector<8x8xf32> to vector<8xf32>
    %110 = vector.shape_cast %109 : vector<8xf32> to vector<8x1xf32>
    %111 = tpu.reciprocal %110 {approx = true} : vector<8x1xf32> -> vector<8x1xf32>
    %112 = vector.broadcast %111 : vector<8x1xf32> to vector<8x8xf32>
    %113 = arith.mulf %108, %112 : vector<8x8xf32>
    %114 = arith.truncf %113 : vector<8x8xf32> to vector<8x8xbf16>
    %cst_38 = arith.constant dense<0.000000e+00> : vector<8x32xf32>
    %115 = tpu.matmul %114, %96, %cst_38 {dimension_numbers = #tpu.dot_dimension_numbers<[1], [0], [0], [1], [0, 0, 1, 1], [], []>} : vector<8x8xbf16>, vector<8x32xbf16>, vector<8x32xf32> -> vector<8x32xf32>
    %c0_39 = arith.constant 0 : index
    %c0_40 = arith.constant 0 : index
    %c96 = arith.constant 96 : index
    %116 = vector.load %arg8[%c0_39, %c0_40, %c96] : memref<1x8x128xf32, #tpu.memory_space<vmem>>, vector<1x8x32xf32>
    %117 = vector.shape_cast %116 : vector<1x8x32xf32> to vector<8x32xf32>
    %118 = vector.shape_cast %115 : vector<8x32xf32> to vector<1x8x32xf32>
    tpu.vector_store %arg8[%c0_39, %c0_40, %c96], %118 {strides = array<i32>} : memref<1x8x128xf32, #tpu.memory_space<vmem>>, vector<1x8x32xf32>,
    return
  }
  func.func @transform_0(%arg0: i32) -> (i32, i32, i32) {
    %c0_i32 = arith.constant 0 : i32
    %c0_i32_0 = arith.constant 0 : i32
    %c0_i32_1 = arith.constant 0 : i32
    return %arg0, %c0_i32, %c0_i32_0 : i32, i32, i32
  }
  func.func @transform_1(%arg0: i32) -> (i32, i32, i32) {
    %c0_i32 = arith.constant 0 : i32
    %c0_i32_0 = arith.constant 0 : i32
    %c0_i32_1 = arith.constant 0 : i32
    return %arg0, %c0_i32, %c0_i32_0 : i32, i32, i32
  }
  func.func @transform_2(%arg0: i32) -> (i32, i32) {
    %c0_i32 = arith.constant 0 : i32
    %c0_i32_0 = arith.constant 0 : i32
    %c0_i32_1 = arith.constant 0 : i32
    return %c0_i32, %c0_i32_0 : i32, i32
  }
  func.func @transform_3(%arg0: i32) -> (i32, i32) {
    %c0_i32 = arith.constant 0 : i32
    %c0_i32_0 = arith.constant 0 : i32
    %c0_i32_1 = arith.constant 0 : i32
    return %c0_i32, %c0_i32_0 : i32, i32
  }
  func.func @transform_4(%arg0: i32) -> (i32, i32) {
    %c0_i32 = arith.constant 0 : i32
    %c0_i32_0 = arith.constant 0 : i32
    %c0_i32_1 = arith.constant 0 : i32
    return %c0_i32, %c0_i32_0 : i32, i32
  }
  func.func @transform_5(%arg0: i32) -> (i32, i32) {
    %c0_i32 = arith.constant 0 : i32
    %c0_i32_0 = arith.constant 0 : i32
    %c0_i32_1 = arith.constant 0 : i32
    return %c0_i32, %c0_i32_0 : i32, i32
  }
  func.func @transform_6(%arg0: i32) -> (i32, i32) {
    %c0_i32 = arith.constant 0 : i32
    %c0_i32_0 = arith.constant 0 : i32
    %c0_i32_1 = arith.constant 0 : i32
    return %c0_i32, %c0_i32_0 : i32, i32
  }
  func.func @transform_7(%arg0: i32) -> (i32, i32, i32) {
    %c0_i32 = arith.constant 0 : i32
    %c0_i32_0 = arith.constant 0 : i32
    %c0_i32_1 = arith.constant 0 : i32
    return %arg0, %c0_i32, %c0_i32_0 : i32, i32, i32
  }
}

module attributes {stable_mosaic.version = 11 : i64} {
  func.func @_ffn_fused_kernel(%arg0: i32, %arg1: memref<8x32xf32, #tpu.memory_space<vmem>>, %arg2: memref<8x128xf32, #tpu.memory_space<vmem>>, %arg3: memref<1x32xf32, #tpu.memory_space<vmem>>, %arg4: memref<1x128xf32, #tpu.memory_space<vmem>>, %arg5: memref<1x32xf32, #tpu.memory_space<vmem>>, %arg6: memref<1x128xf32, #tpu.memory_space<vmem>>, %arg7: memref<32x64xbf16, #tpu.memory_space<vmem>>, %arg8: memref<128x64xbf16, #tpu.memory_space<vmem>>, %arg9: memref<1x64xf32, #tpu.memory_space<vmem>>, %arg10: memref<64x32xbf16, #tpu.memory_space<vmem>>, %arg11: memref<1x32xf32, #tpu.memory_space<vmem>>, %arg12: memref<1x32xf32, #tpu.memory_space<vmem>>, %arg13: memref<1x32xf32, #tpu.memory_space<vmem>>, %arg14: memref<8x32xf32, #tpu.memory_space<vmem>>) attributes {dimension_semantics = [#tpu.dimension_semantics<parallel>], iteration_bounds = array<i64: 2>, scalar_prefetch = 0 : i64, scratch_operands = 0 : i64, tpu.core_type = #tpu.core_type<tc>, window_params = [{transform_indices = @transform_0, window_bounds = array<i64: 8, 32>}, {transform_indices = @transform_1, window_bounds = array<i64: 8, 128>}, {pipeline_mode = #tpu.pipeline_mode<synchronous>, transform_indices = @transform_2, window_bounds = array<i64: 1, 32>}, {pipeline_mode = #tpu.pipeline_mode<synchronous>, transform_indices = @transform_3, window_bounds = array<i64: 1, 128>}, {pipeline_mode = #tpu.pipeline_mode<synchronous>, transform_indices = @transform_4, window_bounds = array<i64: 1, 32>}, {pipeline_mode = #tpu.pipeline_mode<synchronous>, transform_indices = @transform_5, window_bounds = array<i64: 1, 128>}, {pipeline_mode = #tpu.pipeline_mode<synchronous>, transform_indices = @transform_6, window_bounds = array<i64: 32, 64>}, {pipeline_mode = #tpu.pipeline_mode<synchronous>, transform_indices = @transform_7, window_bounds = array<i64: 128, 64>}, {pipeline_mode = #tpu.pipeline_mode<synchronous>, transform_indices = @transform_8, window_bounds = array<i64: 1, 64>}, {pipeline_mode = #tpu.pipeline_mode<synchronous>, transform_indices = @transform_9, window_bounds = array<i64: 64, 32>}, {pipeline_mode = #tpu.pipeline_mode<synchronous>, transform_indices = @transform_10, window_bounds = array<i64: 1, 32>}, {pipeline_mode = #tpu.pipeline_mode<synchronous>, transform_indices = @transform_11, window_bounds = array<i64: 1, 32>}, {pipeline_mode = #tpu.pipeline_mode<synchronous>, transform_indices = @transform_12, window_bounds = array<i64: 1, 32>}, {transform_indices = @transform_13, window_bounds = array<i64: 8, 32>}]} {
    %c0 = arith.constant 0 : index
    %c0_0 = arith.constant 0 : index
    %0 = vector.load %arg1[%c0, %c0_0] : memref<8x32xf32, #tpu.memory_space<vmem>>, vector<8x32xf32>
    %c0_1 = arith.constant 0 : index
    %c0_2 = arith.constant 0 : index
    %1 = vector.load %arg2[%c0_1, %c0_2] : memref<8x128xf32, #tpu.memory_space<vmem>>, vector<8x128xf32>
    %cst = arith.constant dense<0.000000e+00> : vector<8xf32>
    %2 = vector.multi_reduction <add>, %0, %cst [1] : vector<8x32xf32> to vector<8xf32>
    %3 = vector.shape_cast %2 : vector<8xf32> to vector<8x1xf32>
    %cst_3 = arith.constant dense<0.000000e+00> : vector<8xf32>
    %4 = vector.multi_reduction <add>, %1, %cst_3 [1] : vector<8x128xf32> to vector<8xf32>
    %5 = vector.shape_cast %4 : vector<8xf32> to vector<8x1xf32>
    %6 = arith.addf %3, %5 : vector<8x1xf32>
    %cst_4 = arith.constant 6.250000e-03 : f32
    %7 = vector.broadcast %cst_4 : f32 to vector<8x1xf32>
    %8 = arith.mulf %6, %7 : vector<8x1xf32>
    %9 = vector.broadcast %8 : vector<8x1xf32> to vector<8x32xf32>
    %10 = arith.subf %0, %9 : vector<8x32xf32>
    %11 = vector.broadcast %8 : vector<8x1xf32> to vector<8x128xf32>
    %12 = arith.subf %1, %11 : vector<8x128xf32>
    %13 = arith.mulf %10, %10 : vector<8x32xf32>
    %cst_5 = arith.constant dense<0.000000e+00> : vector<8xf32>
    %14 = vector.multi_reduction <add>, %13, %cst_5 [1] : vector<8x32xf32> to vector<8xf32>
    %15 = vector.shape_cast %14 : vector<8xf32> to vector<8x1xf32>
    %16 = arith.mulf %12, %12 : vector<8x128xf32>
    %cst_6 = arith.constant dense<0.000000e+00> : vector<8xf32>
    %17 = vector.multi_reduction <add>, %16, %cst_6 [1] : vector<8x128xf32> to vector<8xf32>
    %18 = vector.shape_cast %17 : vector<8xf32> to vector<8x1xf32>
    %19 = arith.addf %15, %18 : vector<8x1xf32>
    %cst_7 = arith.constant 6.250000e-03 : f32
    %20 = vector.broadcast %cst_7 : f32 to vector<8x1xf32>
    %21 = arith.mulf %19, %20 : vector<8x1xf32>
    %cst_8 = arith.constant 9.99999974E-6 : f32
    %22 = vector.broadcast %cst_8 : f32 to vector<8x1xf32>
    %23 = arith.addf %21, %22 : vector<8x1xf32>
    %24 = math.rsqrt %23 : vector<8x1xf32>
    %25 = vector.broadcast %24 : vector<8x1xf32> to vector<8x32xf32>
    %26 = arith.mulf %10, %25 : vector<8x32xf32>
    %c0_9 = arith.constant 0 : index
    %c0_10 = arith.constant 0 : index
    %27 = vector.load %arg3[%c0_9, %c0_10] : memref<1x32xf32, #tpu.memory_space<vmem>>, vector<1x32xf32>
    %28 = vector.broadcast %27 : vector<1x32xf32> to vector<8x32xf32>
    %29 = arith.mulf %26, %28 : vector<8x32xf32>
    %c0_11 = arith.constant 0 : index
    %c0_12 = arith.constant 0 : index
    %30 = vector.load %arg5[%c0_11, %c0_12] : memref<1x32xf32, #tpu.memory_space<vmem>>, vector<1x32xf32>
    %31 = vector.broadcast %30 : vector<1x32xf32> to vector<8x32xf32>
    %32 = arith.addf %29, %31 : vector<8x32xf32>
    %33 = arith.truncf %32 : vector<8x32xf32> to vector<8x32xbf16>
    %34 = vector.broadcast %24 : vector<8x1xf32> to vector<8x128xf32>
    %35 = arith.mulf %12, %34 : vector<8x128xf32>
    %c0_13 = arith.constant 0 : index
    %c0_14 = arith.constant 0 : index
    %36 = vector.load %arg4[%c0_13, %c0_14] : memref<1x128xf32, #tpu.memory_space<vmem>>, vector<1x128xf32>
    %37 = vector.broadcast %36 : vector<1x128xf32> to vector<8x128xf32>
    %38 = arith.mulf %35, %37 : vector<8x128xf32>
    %c0_15 = arith.constant 0 : index
    %c0_16 = arith.constant 0 : index
    %39 = vector.load %arg6[%c0_15, %c0_16] : memref<1x128xf32, #tpu.memory_space<vmem>>, vector<1x128xf32>
    %40 = vector.broadcast %39 : vector<1x128xf32> to vector<8x128xf32>
    %41 = arith.addf %38, %40 : vector<8x128xf32>
    %42 = arith.truncf %41 : vector<8x128xf32> to vector<8x128xbf16>
    %c0_17 = arith.constant 0 : index
    %c0_18 = arith.constant 0 : index
    %43 = vector.load %arg7[%c0_17, %c0_18] : memref<32x64xbf16, #tpu.memory_space<vmem>>, vector<32x64xbf16>
    %cst_19 = arith.constant dense<0.000000e+00> : vector<8x64xf32>
    %44 = tpu.matmul %33, %43, %cst_19 {dimension_numbers = #tpu.dot_dimension_numbers<[1], [0], [0], [1], [0, 0, 1, 1], [], []>} : vector<8x32xbf16>, vector<32x64xbf16>, vector<8x64xf32> -> vector<8x64xf32>
    %c0_20 = arith.constant 0 : index
    %c0_21 = arith.constant 0 : index
    %45 = vector.load %arg8[%c0_20, %c0_21] : memref<128x64xbf16, #tpu.memory_space<vmem>>, vector<128x64xbf16>
    %cst_22 = arith.constant dense<0.000000e+00> : vector<8x64xf32>
    %46 = tpu.matmul %42, %45, %cst_22 {dimension_numbers = #tpu.dot_dimension_numbers<[1], [0], [0], [1], [0, 0, 1, 1], [], []>} : vector<8x128xbf16>, vector<128x64xbf16>, vector<8x64xf32> -> vector<8x64xf32>
    %47 = arith.addf %44, %46 : vector<8x64xf32>
    %c0_23 = arith.constant 0 : index
    %c0_24 = arith.constant 0 : index
    %48 = vector.load %arg9[%c0_23, %c0_24] : memref<1x64xf32, #tpu.memory_space<vmem>>, vector<1x64xf32>
    %49 = vector.broadcast %48 : vector<1x64xf32> to vector<8x64xf32>
    %50 = arith.addf %47, %49 : vector<8x64xf32>
    %cst_25 = arith.constant 0.000000e+00 : f32
    %51 = vector.broadcast %cst_25 : f32 to vector<8x64xf32>
    %52 = arith.maximumf %50, %51 : vector<8x64xf32>
    %53 = arith.truncf %52 : vector<8x64xf32> to vector<8x64xbf16>
    %c0_26 = arith.constant 0 : index
    %c0_27 = arith.constant 0 : index
    %54 = vector.load %arg10[%c0_26, %c0_27] : memref<64x32xbf16, #tpu.memory_space<vmem>>, vector<64x32xbf16>
    %cst_28 = arith.constant dense<0.000000e+00> : vector<8x32xf32>
    %55 = tpu.matmul %53, %54, %cst_28 {dimension_numbers = #tpu.dot_dimension_numbers<[1], [0], [0], [1], [0, 0, 1, 1], [], []>} : vector<8x64xbf16>, vector<64x32xbf16>, vector<8x32xf32> -> vector<8x32xf32>
    %c0_29 = arith.constant 0 : index
    %c0_30 = arith.constant 0 : index
    %56 = vector.load %arg11[%c0_29, %c0_30] : memref<1x32xf32, #tpu.memory_space<vmem>>, vector<1x32xf32>
    %57 = vector.broadcast %56 : vector<1x32xf32> to vector<8x32xf32>
    %58 = arith.addf %55, %57 : vector<8x32xf32>
    %cst_31 = arith.constant dense<0.000000e+00> : vector<8xf32>
    %59 = vector.multi_reduction <add>, %58, %cst_31 [1] : vector<8x32xf32> to vector<8xf32>
    %60 = vector.shape_cast %59 : vector<8xf32> to vector<8x1xf32>
    %cst_32 = arith.constant 3.200000e+01 : f32
    %61 = vector.broadcast %cst_32 : f32 to vector<8x1xf32>
    %62 = arith.divf %60, %61 : vector<8x1xf32>
    %63 = vector.broadcast %62 : vector<8x1xf32> to vector<8x32xf32>
    %64 = arith.subf %58, %63 : vector<8x32xf32>
    %65 = arith.mulf %64, %64 : vector<8x32xf32>
    %cst_33 = arith.constant dense<0.000000e+00> : vector<8xf32>
    %66 = vector.multi_reduction <add>, %65, %cst_33 [1] : vector<8x32xf32> to vector<8xf32>
    %67 = vector.shape_cast %66 : vector<8xf32> to vector<8x1xf32>
    %cst_34 = arith.constant 3.200000e+01 : f32
    %68 = vector.broadcast %cst_34 : f32 to vector<8x1xf32>
    %69 = arith.divf %67, %68 : vector<8x1xf32>
    %cst_35 = arith.constant 9.99999974E-6 : f32
    %70 = vector.broadcast %cst_35 : f32 to vector<8x1xf32>
    %71 = arith.addf %69, %70 : vector<8x1xf32>
    %72 = math.rsqrt %71 : vector<8x1xf32>
    %73 = vector.broadcast %72 : vector<8x1xf32> to vector<8x32xf32>
    %74 = arith.mulf %64, %73 : vector<8x32xf32>
    %c0_36 = arith.constant 0 : index
    %c0_37 = arith.constant 0 : index
    %75 = vector.load %arg12[%c0_36, %c0_37] : memref<1x32xf32, #tpu.memory_space<vmem>>, vector<1x32xf32>
    %76 = vector.broadcast %75 : vector<1x32xf32> to vector<8x32xf32>
    %77 = arith.mulf %74, %76 : vector<8x32xf32>
    %c0_38 = arith.constant 0 : index
    %c0_39 = arith.constant 0 : index
    %78 = vector.load %arg13[%c0_38, %c0_39] : memref<1x32xf32, #tpu.memory_space<vmem>>, vector<1x32xf32>
    %79 = vector.broadcast %78 : vector<1x32xf32> to vector<8x32xf32>
    %80 = arith.addf %77, %79 : vector<8x32xf32>
    %c0_40 = arith.constant 0 : index
    %c0_41 = arith.constant 0 : index
    %81 = vector.load %arg14[%c0_40, %c0_41] : memref<8x32xf32, #tpu.memory_space<vmem>>, vector<8x32xf32>
    tpu.vector_store %arg14[%c0_40, %c0_41], %80 {strides = array<i32>} : memref<8x32xf32, #tpu.memory_space<vmem>>, vector<8x32xf32>,
    return
  }
  func.func @transform_0(%arg0: i32) -> (i32, i32) {
    %c0_i32 = arith.constant 0 : i32
    %c0_i32_0 = arith.constant 0 : i32
    return %arg0, %c0_i32 : i32, i32
  }
  func.func @transform_1(%arg0: i32) -> (i32, i32) {
    %c0_i32 = arith.constant 0 : i32
    %c0_i32_0 = arith.constant 0 : i32
    return %arg0, %c0_i32 : i32, i32
  }
  func.func @transform_2(%arg0: i32) -> (i32, i32) {
    %c0_i32 = arith.constant 0 : i32
    %c0_i32_0 = arith.constant 0 : i32
    %c0_i32_1 = arith.constant 0 : i32
    return %c0_i32, %c0_i32_0 : i32, i32
  }
  func.func @transform_3(%arg0: i32) -> (i32, i32) {
    %c0_i32 = arith.constant 0 : i32
    %c0_i32_0 = arith.constant 0 : i32
    %c0_i32_1 = arith.constant 0 : i32
    return %c0_i32, %c0_i32_0 : i32, i32
  }
  func.func @transform_4(%arg0: i32) -> (i32, i32) {
    %c0_i32 = arith.constant 0 : i32
    %c0_i32_0 = arith.constant 0 : i32
    %c0_i32_1 = arith.constant 0 : i32
    return %c0_i32, %c0_i32_0 : i32, i32
  }
  func.func @transform_5(%arg0: i32) -> (i32, i32) {
    %c0_i32 = arith.constant 0 : i32
    %c0_i32_0 = arith.constant 0 : i32
    %c0_i32_1 = arith.constant 0 : i32
    return %c0_i32, %c0_i32_0 : i32, i32
  }
  func.func @transform_6(%arg0: i32) -> (i32, i32) {
    %c0_i32 = arith.constant 0 : i32
    %c0_i32_0 = arith.constant 0 : i32
    %c0_i32_1 = arith.constant 0 : i32
    return %c0_i32, %c0_i32_0 : i32, i32
  }
  func.func @transform_7(%arg0: i32) -> (i32, i32) {
    %c0_i32 = arith.constant 0 : i32
    %c0_i32_0 = arith.constant 0 : i32
    %c0_i32_1 = arith.constant 0 : i32
    return %c0_i32, %c0_i32_0 : i32, i32
  }
  func.func @transform_8(%arg0: i32) -> (i32, i32) {
    %c0_i32 = arith.constant 0 : i32
    %c0_i32_0 = arith.constant 0 : i32
    %c0_i32_1 = arith.constant 0 : i32
    return %c0_i32, %c0_i32_0 : i32, i32
  }
  func.func @transform_9(%arg0: i32) -> (i32, i32) {
    %c0_i32 = arith.constant 0 : i32
    %c0_i32_0 = arith.constant 0 : i32
    %c0_i32_1 = arith.constant 0 : i32
    return %c0_i32, %c0_i32_0 : i32, i32
  }
  func.func @transform_10(%arg0: i32) -> (i32, i32) {
    %c0_i32 = arith.constant 0 : i32
    %c0_i32_0 = arith.constant 0 : i32
    %c0_i32_1 = arith.constant 0 : i32
    return %c0_i32, %c0_i32_0 : i32, i32
  }
  func.func @transform_11(%arg0: i32) -> (i32, i32) {
    %c0_i32 = arith.constant 0 : i32
    %c0_i32_0 = arith.constant 0 : i32
    %c0_i32_1 = arith.constant 0 : i32
    return %c0_i32, %c0_i32_0 : i32, i32
  }
  func.func @transform_12(%arg0: i32) -> (i32, i32) {
    %c0_i32 = arith.constant 0 : i32
    %c0_i32_0 = arith.constant 0 : i32
    %c0_i32_1 = arith.constant 0 : i32
    return %c0_i32, %c0_i32_0 : i32, i32
  }
  func.func @transform_13(%arg0: i32) -> (i32, i32) {
    %c0_i32 = arith.constant 0 : i32
    %c0_i32_0 = arith.constant 0 : i32
    return %arg0, %c0_i32 : i32, i32
  }
}

module attributes {stable_mosaic.version = 11 : i64} {
  func.func @_attn_kernel(%arg0: i32, %arg1: memref<1x8x32xf32, #tpu.memory_space<vmem>>, %arg2: memref<1x8x32xf32, #tpu.memory_space<vmem>>, %arg3: memref<8x8xf32, #tpu.memory_space<vmem>>, %arg4: memref<32x384xbf16, #tpu.memory_space<vmem>>, %arg5: memref<1x384xf32, #tpu.memory_space<vmem>>, %arg6: memref<32x256xbf16, #tpu.memory_space<vmem>>, %arg7: memref<1x256xf32, #tpu.memory_space<vmem>>, %arg8: memref<1x8x128xf32, #tpu.memory_space<vmem>>) attributes {dimension_semantics = [#tpu.dimension_semantics<parallel>], iteration_bounds = array<i64: 2>, scalar_prefetch = 0 : i64, scratch_operands = 0 : i64, tpu.core_type = #tpu.core_type<tc>, window_params = [{transform_indices = @transform_0, window_bounds = array<i64: 1, 8, 32>}, {transform_indices = @transform_1, window_bounds = array<i64: 1, 8, 32>}, {pipeline_mode = #tpu.pipeline_mode<synchronous>, transform_indices = @transform_2, window_bounds = array<i64: 8, 8>}, {pipeline_mode = #tpu.pipeline_mode<synchronous>, transform_indices = @transform_3, window_bounds = array<i64: 32, 384>}, {pipeline_mode = #tpu.pipeline_mode<synchronous>, transform_indices = @transform_4, window_bounds = array<i64: 1, 384>}, {pipeline_mode = #tpu.pipeline_mode<synchronous>, transform_indices = @transform_5, window_bounds = array<i64: 32, 256>}, {pipeline_mode = #tpu.pipeline_mode<synchronous>, transform_indices = @transform_6, window_bounds = array<i64: 1, 256>}, {transform_indices = @transform_7, window_bounds = array<i64: 1, 8, 128>}]} {
    %c0 = arith.constant 0 : index
    %c0_0 = arith.constant 0 : index
    %c0_1 = arith.constant 0 : index
    %0 = vector.load %arg1[%c0, %c0_0, %c0_1] : memref<1x8x32xf32, #tpu.memory_space<vmem>>, vector<1x8x32xf32>
    %1 = vector.shape_cast %0 : vector<1x8x32xf32> to vector<8x32xf32>
    %2 = arith.truncf %1 : vector<8x32xf32> to vector<8x32xbf16>
    %c0_2 = arith.constant 0 : index
    %c0_3 = arith.constant 0 : index
    %c0_4 = arith.constant 0 : index
    %3 = vector.load %arg2[%c0_2, %c0_3, %c0_4] : memref<1x8x32xf32, #tpu.memory_space<vmem>>, vector<1x8x32xf32>
    %4 = vector.shape_cast %3 : vector<1x8x32xf32> to vector<8x32xf32>
    %5 = arith.truncf %4 : vector<8x32xf32> to vector<8x32xbf16>
    %c0_5 = arith.constant 0 : index
    %c0_6 = arith.constant 0 : index
    %6 = vector.load %arg3[%c0_5, %c0_6] : memref<8x8xf32, #tpu.memory_space<vmem>>, vector<8x8xf32>
    %c0_7 = arith.constant 0 : index
    %c0_8 = arith.constant 0 : index
    %7 = vector.load %arg4[%c0_7, %c0_8] : memref<32x384xbf16, #tpu.memory_space<vmem>>, vector<32x384xbf16>
    %cst = arith.constant dense<0.000000e+00> : vector<8x384xf32>
    %8 = tpu.matmul %2, %7, %cst {dimension_numbers = #tpu.dot_dimension_numbers<[1], [0], [0], [1], [0, 0, 1, 1], [], []>} : vector<8x32xbf16>, vector<32x384xbf16>, vector<8x384xf32> -> vector<8x384xf32>
    %c0_9 = arith.constant 0 : index
    %c0_10 = arith.constant 0 : index
    %9 = vector.load %arg5[%c0_9, %c0_10] : memref<1x384xf32, #tpu.memory_space<vmem>>, vector<1x384xf32>
    %10 = vector.broadcast %9 : vector<1x384xf32> to vector<8x384xf32>
    %11 = arith.addf %8, %10 : vector<8x384xf32>
    %12 = arith.truncf %11 : vector<8x384xf32> to vector<8x384xbf16>
    %c0_11 = arith.constant 0 : index
    %c0_12 = arith.constant 0 : index
    %13 = vector.load %arg6[%c0_11, %c0_12] : memref<32x256xbf16, #tpu.memory_space<vmem>>, vector<32x256xbf16>
    %cst_13 = arith.constant dense<0.000000e+00> : vector<8x256xf32>
    %14 = tpu.matmul %5, %13, %cst_13 {dimension_numbers = #tpu.dot_dimension_numbers<[1], [0], [0], [1], [0, 0, 1, 1], [], []>} : vector<8x32xbf16>, vector<32x256xbf16>, vector<8x256xf32> -> vector<8x256xf32>
    %c0_14 = arith.constant 0 : index
    %c0_15 = arith.constant 0 : index
    %15 = vector.load %arg7[%c0_14, %c0_15] : memref<1x256xf32, #tpu.memory_space<vmem>>, vector<1x256xf32>
    %16 = vector.broadcast %15 : vector<1x256xf32> to vector<8x256xf32>
    %17 = arith.addf %14, %16 : vector<8x256xf32>
    %18 = arith.truncf %17 : vector<8x256xf32> to vector<8x256xbf16>
    %19 = vector.extract_strided_slice %12 {offsets = [0, 0], sizes = [8, 32], strides = [1, 1]} : vector<8x384xbf16> to vector<8x32xbf16>
    %20 = vector.extract_strided_slice %12 {offsets = [0, 128], sizes = [8, 32], strides = [1, 1]} : vector<8x384xbf16> to vector<8x32xbf16>
    %21 = vector.extract_strided_slice %12 {offsets = [0, 256], sizes = [8, 32], strides = [1, 1]} : vector<8x384xbf16> to vector<8x32xbf16>
    %22 = vector.extract_strided_slice %18 {offsets = [0, 0], sizes = [8, 32], strides = [1, 1]} : vector<8x256xbf16> to vector<8x32xbf16>
    %23 = vector.extract_strided_slice %18 {offsets = [0, 128], sizes = [8, 32], strides = [1, 1]} : vector<8x256xbf16> to vector<8x32xbf16>
    %24 = tpu.concatenate %19, %22 in 1 : vector<8x32xbf16>, vector<8x32xbf16> -> vector<8x64xbf16>
    %25 = arith.addf %20, %23 : vector<8x32xbf16>
    %26 = tpu.concatenate %25, %20 in 1 : vector<8x32xbf16>, vector<8x32xbf16> -> vector<8x64xbf16>
    %cst_16 = arith.constant dense<0.000000e+00> : vector<8x8xf32>
    %27 = tpu.matmul %24, %26, %cst_16 {dimension_numbers = #tpu.dot_dimension_numbers<[1], [1], [0], [0], [0, 0, 1, 0], [], []>} : vector<8x64xbf16>, vector<8x64xbf16>, vector<8x8xf32> -> vector<8x8xf32>
    %28 = arith.addf %27, %6 : vector<8x8xf32>
    %cst_17 = arith.constant dense<0xFF800000> : vector<8xf32>
    %29 = vector.multi_reduction <maximumf>, %28, %cst_17 [1] : vector<8x8xf32> to vector<8xf32>
    %30 = vector.shape_cast %29 : vector<8xf32> to vector<8x1xf32>
    %31 = vector.broadcast %30 : vector<8x1xf32> to vector<8x8xf32>
    %32 = arith.subf %28, %31 : vector<8x8xf32>
    %33 = math.exp %32 : vector<8x8xf32>
    %cst_18 = arith.constant dense<0.000000e+00> : vector<8xf32>
    %34 = vector.multi_reduction <add>, %33, %cst_18 [1] : vector<8x8xf32> to vector<8xf32>
    %35 = vector.shape_cast %34 : vector<8xf32> to vector<8x1xf32>
    %36 = tpu.reciprocal %35 {approx = true} : vector<8x1xf32> -> vector<8x1xf32>
    %37 = vector.broadcast %36 : vector<8x1xf32> to vector<8x8xf32>
    %38 = arith.mulf %33, %37 : vector<8x8xf32>
    %39 = arith.truncf %38 : vector<8x8xf32> to vector<8x8xbf16>
    %cst_19 = arith.constant dense<0.000000e+00> : vector<8x32xf32>
    %40 = tpu.matmul %39, %21, %cst_19 {dimension_numbers = #tpu.dot_dimension_numbers<[1], [0], [0], [1], [0, 0, 1, 1], [], []>} : vector<8x8xbf16>, vector<8x32xbf16>, vector<8x32xf32> -> vector<8x32xf32>
    %c0_20 = arith.constant 0 : index
    %c0_21 = arith.constant 0 : index
    %c0_22 = arith.constant 0 : index
    %41 = vector.load %arg8[%c0_20, %c0_21, %c0_22] : memref<1x8x128xf32, #tpu.memory_space<vmem>>, vector<1x8x32xf32>
    %42 = vector.shape_cast %41 : vector<1x8x32xf32> to vector<8x32xf32>
    %43 = vector.shape_cast %40 : vector<8x32xf32> to vector<1x8x32xf32>
    tpu.vector_store %arg8[%c0_20, %c0_21, %c0_22], %43 {strides = array<i32>} : memref<1x8x128xf32, #tpu.memory_space<vmem>>, vector<1x8x32xf32>,
    %44 = vector.extract_strided_slice %12 {offsets = [0, 32], sizes = [8, 32], strides = [1, 1]} : vector<8x384xbf16> to vector<8x32xbf16>
    %45 = vector.extract_strided_slice %12 {offsets = [0, 160], sizes = [8, 32], strides = [1, 1]} : vector<8x384xbf16> to vector<8x32xbf16>
    %46 = vector.extract_strided_slice %12 {offsets = [0, 288], sizes = [8, 32], strides = [1, 1]} : vector<8x384xbf16> to vector<8x32xbf16>
    %47 = vector.extract_strided_slice %18 {offsets = [0, 32], sizes = [8, 32], strides = [1, 1]} : vector<8x256xbf16> to vector<8x32xbf16>
    %48 = vector.extract_strided_slice %18 {offsets = [0, 160], sizes = [8, 32], strides = [1, 1]} : vector<8x256xbf16> to vector<8x32xbf16>
    %49 = tpu.concatenate %44, %47 in 1 : vector<8x32xbf16>, vector<8x32xbf16> -> vector<8x64xbf16>
    %50 = arith.addf %45, %48 : vector<8x32xbf16>
    %51 = tpu.concatenate %50, %45 in 1 : vector<8x32xbf16>, vector<8x32xbf16> -> vector<8x64xbf16>
    %cst_23 = arith.constant dense<0.000000e+00> : vector<8x8xf32>
    %52 = tpu.matmul %49, %51, %cst_23 {dimension_numbers = #tpu.dot_dimension_numbers<[1], [1], [0], [0], [0, 0, 1, 0], [], []>} : vector<8x64xbf16>, vector<8x64xbf16>, vector<8x8xf32> -> vector<8x8xf32>
    %53 = arith.addf %52, %6 : vector<8x8xf32>
    %cst_24 = arith.constant dense<0xFF800000> : vector<8xf32>
    %54 = vector.multi_reduction <maximumf>, %53, %cst_24 [1] : vector<8x8xf32> to vector<8xf32>
    %55 = vector.shape_cast %54 : vector<8xf32> to vector<8x1xf32>
    %56 = vector.broadcast %55 : vector<8x1xf32> to vector<8x8xf32>
    %57 = arith.subf %53, %56 : vector<8x8xf32>
    %58 = math.exp %57 : vector<8x8xf32>
    %cst_25 = arith.constant dense<0.000000e+00> : vector<8xf32>
    %59 = vector.multi_reduction <add>, %58, %cst_25 [1] : vector<8x8xf32> to vector<8xf32>
    %60 = vector.shape_cast %59 : vector<8xf32> to vector<8x1xf32>
    %61 = tpu.reciprocal %60 {approx = true} : vector<8x1xf32> -> vector<8x1xf32>
    %62 = vector.broadcast %61 : vector<8x1xf32> to vector<8x8xf32>
    %63 = arith.mulf %58, %62 : vector<8x8xf32>
    %64 = arith.truncf %63 : vector<8x8xf32> to vector<8x8xbf16>
    %cst_26 = arith.constant dense<0.000000e+00> : vector<8x32xf32>
    %65 = tpu.matmul %64, %46, %cst_26 {dimension_numbers = #tpu.dot_dimension_numbers<[1], [0], [0], [1], [0, 0, 1, 1], [], []>} : vector<8x8xbf16>, vector<8x32xbf16>, vector<8x32xf32> -> vector<8x32xf32>
    %c0_27 = arith.constant 0 : index
    %c0_28 = arith.constant 0 : index
    %c32 = arith.constant 32 : index
    %66 = vector.load %arg8[%c0_27, %c0_28, %c32] : memref<1x8x128xf32, #tpu.memory_space<vmem>>, vector<1x8x32xf32>
    %67 = vector.shape_cast %66 : vector<1x8x32xf32> to vector<8x32xf32>
    %68 = vector.shape_cast %65 : vector<8x32xf32> to vector<1x8x32xf32>
    tpu.vector_store %arg8[%c0_27, %c0_28, %c32], %68 {strides = array<i32>} : memref<1x8x128xf32, #tpu.memory_space<vmem>>, vector<1x8x32xf32>,
    %69 = vector.extract_strided_slice %12 {offsets = [0, 64], sizes = [8, 32], strides = [1, 1]} : vector<8x384xbf16> to vector<8x32xbf16>
    %70 = vector.extract_strided_slice %12 {offsets = [0, 192], sizes = [8, 32], strides = [1, 1]} : vector<8x384xbf16> to vector<8x32xbf16>
    %71 = vector.extract_strided_slice %12 {offsets = [0, 320], sizes = [8, 32], strides = [1, 1]} : vector<8x384xbf16> to vector<8x32xbf16>
    %72 = vector.extract_strided_slice %18 {offsets = [0, 64], sizes = [8, 32], strides = [1, 1]} : vector<8x256xbf16> to vector<8x32xbf16>
    %73 = vector.extract_strided_slice %18 {offsets = [0, 192], sizes = [8, 32], strides = [1, 1]} : vector<8x256xbf16> to vector<8x32xbf16>
    %74 = tpu.concatenate %69, %72 in 1 : vector<8x32xbf16>, vector<8x32xbf16> -> vector<8x64xbf16>
    %75 = arith.addf %70, %73 : vector<8x32xbf16>
    %76 = tpu.concatenate %75, %70 in 1 : vector<8x32xbf16>, vector<8x32xbf16> -> vector<8x64xbf16>
    %cst_29 = arith.constant dense<0.000000e+00> : vector<8x8xf32>
    %77 = tpu.matmul %74, %76, %cst_29 {dimension_numbers = #tpu.dot_dimension_numbers<[1], [1], [0], [0], [0, 0, 1, 0], [], []>} : vector<8x64xbf16>, vector<8x64xbf16>, vector<8x8xf32> -> vector<8x8xf32>
    %78 = arith.addf %77, %6 : vector<8x8xf32>
    %cst_30 = arith.constant dense<0xFF800000> : vector<8xf32>
    %79 = vector.multi_reduction <maximumf>, %78, %cst_30 [1] : vector<8x8xf32> to vector<8xf32>
    %80 = vector.shape_cast %79 : vector<8xf32> to vector<8x1xf32>
    %81 = vector.broadcast %80 : vector<8x1xf32> to vector<8x8xf32>
    %82 = arith.subf %78, %81 : vector<8x8xf32>
    %83 = math.exp %82 : vector<8x8xf32>
    %cst_31 = arith.constant dense<0.000000e+00> : vector<8xf32>
    %84 = vector.multi_reduction <add>, %83, %cst_31 [1] : vector<8x8xf32> to vector<8xf32>
    %85 = vector.shape_cast %84 : vector<8xf32> to vector<8x1xf32>
    %86 = tpu.reciprocal %85 {approx = true} : vector<8x1xf32> -> vector<8x1xf32>
    %87 = vector.broadcast %86 : vector<8x1xf32> to vector<8x8xf32>
    %88 = arith.mulf %83, %87 : vector<8x8xf32>
    %89 = arith.truncf %88 : vector<8x8xf32> to vector<8x8xbf16>
    %cst_32 = arith.constant dense<0.000000e+00> : vector<8x32xf32>
    %90 = tpu.matmul %89, %71, %cst_32 {dimension_numbers = #tpu.dot_dimension_numbers<[1], [0], [0], [1], [0, 0, 1, 1], [], []>} : vector<8x8xbf16>, vector<8x32xbf16>, vector<8x32xf32> -> vector<8x32xf32>
    %c0_33 = arith.constant 0 : index
    %c0_34 = arith.constant 0 : index
    %c64 = arith.constant 64 : index
    %91 = vector.load %arg8[%c0_33, %c0_34, %c64] : memref<1x8x128xf32, #tpu.memory_space<vmem>>, vector<1x8x32xf32>
    %92 = vector.shape_cast %91 : vector<1x8x32xf32> to vector<8x32xf32>
    %93 = vector.shape_cast %90 : vector<8x32xf32> to vector<1x8x32xf32>
    tpu.vector_store %arg8[%c0_33, %c0_34, %c64], %93 {strides = array<i32>} : memref<1x8x128xf32, #tpu.memory_space<vmem>>, vector<1x8x32xf32>,
    %94 = vector.extract_strided_slice %12 {offsets = [0, 96], sizes = [8, 32], strides = [1, 1]} : vector<8x384xbf16> to vector<8x32xbf16>
    %95 = vector.extract_strided_slice %12 {offsets = [0, 224], sizes = [8, 32], strides = [1, 1]} : vector<8x384xbf16> to vector<8x32xbf16>
    %96 = vector.extract_strided_slice %12 {offsets = [0, 352], sizes = [8, 32], strides = [1, 1]} : vector<8x384xbf16> to vector<8x32xbf16>
    %97 = vector.extract_strided_slice %18 {offsets = [0, 96], sizes = [8, 32], strides = [1, 1]} : vector<8x256xbf16> to vector<8x32xbf16>
    %98 = vector.extract_strided_slice %18 {offsets = [0, 224], sizes = [8, 32], strides = [1, 1]} : vector<8x256xbf16> to vector<8x32xbf16>
    %99 = tpu.concatenate %94, %97 in 1 : vector<8x32xbf16>, vector<8x32xbf16> -> vector<8x64xbf16>
    %100 = arith.addf %95, %98 : vector<8x32xbf16>
    %101 = tpu.concatenate %100, %95 in 1 : vector<8x32xbf16>, vector<8x32xbf16> -> vector<8x64xbf16>
    %cst_35 = arith.constant dense<0.000000e+00> : vector<8x8xf32>
    %102 = tpu.matmul %99, %101, %cst_35 {dimension_numbers = #tpu.dot_dimension_numbers<[1], [1], [0], [0], [0, 0, 1, 0], [], []>} : vector<8x64xbf16>, vector<8x64xbf16>, vector<8x8xf32> -> vector<8x8xf32>
    %103 = arith.addf %102, %6 : vector<8x8xf32>
    %cst_36 = arith.constant dense<0xFF800000> : vector<8xf32>
    %104 = vector.multi_reduction <maximumf>, %103, %cst_36 [1] : vector<8x8xf32> to vector<8xf32>
    %105 = vector.shape_cast %104 : vector<8xf32> to vector<8x1xf32>
    %106 = vector.broadcast %105 : vector<8x1xf32> to vector<8x8xf32>
    %107 = arith.subf %103, %106 : vector<8x8xf32>
    %108 = math.exp %107 : vector<8x8xf32>
    %cst_37 = arith.constant dense<0.000000e+00> : vector<8xf32>
    %109 = vector.multi_reduction <add>, %108, %cst_37 [1] : vector<8x8xf32> to vector<8xf32>
    %110 = vector.shape_cast %109 : vector<8xf32> to vector<8x1xf32>
    %111 = tpu.reciprocal %110 {approx = true} : vector<8x1xf32> -> vector<8x1xf32>
    %112 = vector.broadcast %111 : vector<8x1xf32> to vector<8x8xf32>
    %113 = arith.mulf %108, %112 : vector<8x8xf32>
    %114 = arith.truncf %113 : vector<8x8xf32> to vector<8x8xbf16>
    %cst_38 = arith.constant dense<0.000000e+00> : vector<8x32xf32>
    %115 = tpu.matmul %114, %96, %cst_38 {dimension_numbers = #tpu.dot_dimension_numbers<[1], [0], [0], [1], [0, 0, 1, 1], [], []>} : vector<8x8xbf16>, vector<8x32xbf16>, vector<8x32xf32> -> vector<8x32xf32>
    %c0_39 = arith.constant 0 : index
    %c0_40 = arith.constant 0 : index
    %c96 = arith.constant 96 : index
    %116 = vector.load %arg8[%c0_39, %c0_40, %c96] : memref<1x8x128xf32, #tpu.memory_space<vmem>>, vector<1x8x32xf32>
    %117 = vector.shape_cast %116 : vector<1x8x32xf32> to vector<8x32xf32>
    %118 = vector.shape_cast %115 : vector<8x32xf32> to vector<1x8x32xf32>
    tpu.vector_store %arg8[%c0_39, %c0_40, %c96], %118 {strides = array<i32>} : memref<1x8x128xf32, #tpu.memory_space<vmem>>, vector<1x8x32xf32>,
    return
  }
  func.func @transform_0(%arg0: i32) -> (i32, i32, i32) {
    %c0_i32 = arith.constant 0 : i32
    %c0_i32_0 = arith.constant 0 : i32
    %c0_i32_1 = arith.constant 0 : i32
    return %arg0, %c0_i32, %c0_i32_0 : i32, i32, i32
  }
  func.func @transform_1(%arg0: i32) -> (i32, i32, i32) {
    %c0_i32 = arith.constant 0 : i32
    %c0_i32_0 = arith.constant 0 : i32
    %c0_i32_1 = arith.constant 0 : i32
    return %arg0, %c0_i32, %c0_i32_0 : i32, i32, i32
  }
  func.func @transform_2(%arg0: i32) -> (i32, i32) {
    %c0_i32 = arith.constant 0 : i32
    %c0_i32_0 = arith.constant 0 : i32
    %c0_i32_1 = arith.constant 0 : i32
    return %c0_i32, %c0_i32_0 : i32, i32
  }
  func.func @transform_3(%arg0: i32) -> (i32, i32) {
    %c0_i32 = arith.constant 0 : i32
    %c0_i32_0 = arith.constant 0 : i32
    %c0_i32_1 = arith.constant 0 : i32
    return %c0_i32, %c0_i32_0 : i32, i32
  }
  func.func @transform_4(%arg0: i32) -> (i32, i32) {
    %c0_i32 = arith.constant 0 : i32
    %c0_i32_0 = arith.constant 0 : i32
    %c0_i32_1 = arith.constant 0 : i32
    return %c0_i32, %c0_i32_0 : i32, i32
  }
  func.func @transform_5(%arg0: i32) -> (i32, i32) {
    %c0_i32 = arith.constant 0 : i32
    %c0_i32_0 = arith.constant 0 : i32
    %c0_i32_1 = arith.constant 0 : i32
    return %c0_i32, %c0_i32_0 : i32, i32
  }
  func.func @transform_6(%arg0: i32) -> (i32, i32) {
    %c0_i32 = arith.constant 0 : i32
    %c0_i32_0 = arith.constant 0 : i32
    %c0_i32_1 = arith.constant 0 : i32
    return %c0_i32, %c0_i32_0 : i32, i32
  }
  func.func @transform_7(%arg0: i32) -> (i32, i32, i32) {
    %c0_i32 = arith.constant 0 : i32
    %c0_i32_0 = arith.constant 0 : i32
    %c0_i32_1 = arith.constant 0 : i32
    return %arg0, %c0_i32, %c0_i32_0 : i32, i32, i32
  }
}

module attributes {stable_mosaic.version = 11 : i64} {
  func.func @_ffn_fused_kernel(%arg0: i32, %arg1: memref<8x32xf32, #tpu.memory_space<vmem>>, %arg2: memref<8x128xf32, #tpu.memory_space<vmem>>, %arg3: memref<1x32xf32, #tpu.memory_space<vmem>>, %arg4: memref<1x128xf32, #tpu.memory_space<vmem>>, %arg5: memref<1x32xf32, #tpu.memory_space<vmem>>, %arg6: memref<1x128xf32, #tpu.memory_space<vmem>>, %arg7: memref<32x64xbf16, #tpu.memory_space<vmem>>, %arg8: memref<128x64xbf16, #tpu.memory_space<vmem>>, %arg9: memref<1x64xf32, #tpu.memory_space<vmem>>, %arg10: memref<64x32xbf16, #tpu.memory_space<vmem>>, %arg11: memref<1x32xf32, #tpu.memory_space<vmem>>, %arg12: memref<1x32xf32, #tpu.memory_space<vmem>>, %arg13: memref<1x32xf32, #tpu.memory_space<vmem>>, %arg14: memref<8x32xf32, #tpu.memory_space<vmem>>) attributes {dimension_semantics = [#tpu.dimension_semantics<parallel>], iteration_bounds = array<i64: 2>, scalar_prefetch = 0 : i64, scratch_operands = 0 : i64, tpu.core_type = #tpu.core_type<tc>, window_params = [{transform_indices = @transform_0, window_bounds = array<i64: 8, 32>}, {transform_indices = @transform_1, window_bounds = array<i64: 8, 128>}, {pipeline_mode = #tpu.pipeline_mode<synchronous>, transform_indices = @transform_2, window_bounds = array<i64: 1, 32>}, {pipeline_mode = #tpu.pipeline_mode<synchronous>, transform_indices = @transform_3, window_bounds = array<i64: 1, 128>}, {pipeline_mode = #tpu.pipeline_mode<synchronous>, transform_indices = @transform_4, window_bounds = array<i64: 1, 32>}, {pipeline_mode = #tpu.pipeline_mode<synchronous>, transform_indices = @transform_5, window_bounds = array<i64: 1, 128>}, {pipeline_mode = #tpu.pipeline_mode<synchronous>, transform_indices = @transform_6, window_bounds = array<i64: 32, 64>}, {pipeline_mode = #tpu.pipeline_mode<synchronous>, transform_indices = @transform_7, window_bounds = array<i64: 128, 64>}, {pipeline_mode = #tpu.pipeline_mode<synchronous>, transform_indices = @transform_8, window_bounds = array<i64: 1, 64>}, {pipeline_mode = #tpu.pipeline_mode<synchronous>, transform_indices = @transform_9, window_bounds = array<i64: 64, 32>}, {pipeline_mode = #tpu.pipeline_mode<synchronous>, transform_indices = @transform_10, window_bounds = array<i64: 1, 32>}, {pipeline_mode = #tpu.pipeline_mode<synchronous>, transform_indices = @transform_11, window_bounds = array<i64: 1, 32>}, {pipeline_mode = #tpu.pipeline_mode<synchronous>, transform_indices = @transform_12, window_bounds = array<i64: 1, 32>}, {transform_indices = @transform_13, window_bounds = array<i64: 8, 32>}]} {
    %c0 = arith.constant 0 : index
    %c0_0 = arith.constant 0 : index
    %0 = vector.load %arg1[%c0, %c0_0] : memref<8x32xf32, #tpu.memory_space<vmem>>, vector<8x32xf32>
    %c0_1 = arith.constant 0 : index
    %c0_2 = arith.constant 0 : index
    %1 = vector.load %arg2[%c0_1, %c0_2] : memref<8x128xf32, #tpu.memory_space<vmem>>, vector<8x128xf32>
    %cst = arith.constant dense<0.000000e+00> : vector<8xf32>
    %2 = vector.multi_reduction <add>, %0, %cst [1] : vector<8x32xf32> to vector<8xf32>
    %3 = vector.shape_cast %2 : vector<8xf32> to vector<8x1xf32>
    %cst_3 = arith.constant dense<0.000000e+00> : vector<8xf32>
    %4 = vector.multi_reduction <add>, %1, %cst_3 [1] : vector<8x128xf32> to vector<8xf32>
    %5 = vector.shape_cast %4 : vector<8xf32> to vector<8x1xf32>
    %6 = arith.addf %3, %5 : vector<8x1xf32>
    %cst_4 = arith.constant 6.250000e-03 : f32
    %7 = vector.broadcast %cst_4 : f32 to vector<8x1xf32>
    %8 = arith.mulf %6, %7 : vector<8x1xf32>
    %9 = vector.broadcast %8 : vector<8x1xf32> to vector<8x32xf32>
    %10 = arith.subf %0, %9 : vector<8x32xf32>
    %11 = vector.broadcast %8 : vector<8x1xf32> to vector<8x128xf32>
    %12 = arith.subf %1, %11 : vector<8x128xf32>
    %13 = arith.mulf %10, %10 : vector<8x32xf32>
    %cst_5 = arith.constant dense<0.000000e+00> : vector<8xf32>
    %14 = vector.multi_reduction <add>, %13, %cst_5 [1] : vector<8x32xf32> to vector<8xf32>
    %15 = vector.shape_cast %14 : vector<8xf32> to vector<8x1xf32>
    %16 = arith.mulf %12, %12 : vector<8x128xf32>
    %cst_6 = arith.constant dense<0.000000e+00> : vector<8xf32>
    %17 = vector.multi_reduction <add>, %16, %cst_6 [1] : vector<8x128xf32> to vector<8xf32>
    %18 = vector.shape_cast %17 : vector<8xf32> to vector<8x1xf32>
    %19 = arith.addf %15, %18 : vector<8x1xf32>
    %cst_7 = arith.constant 6.250000e-03 : f32
    %20 = vector.broadcast %cst_7 : f32 to vector<8x1xf32>
    %21 = arith.mulf %19, %20 : vector<8x1xf32>
    %cst_8 = arith.constant 9.99999974E-6 : f32
    %22 = vector.broadcast %cst_8 : f32 to vector<8x1xf32>
    %23 = arith.addf %21, %22 : vector<8x1xf32>
    %24 = math.rsqrt %23 : vector<8x1xf32>
    %25 = vector.broadcast %24 : vector<8x1xf32> to vector<8x32xf32>
    %26 = arith.mulf %10, %25 : vector<8x32xf32>
    %c0_9 = arith.constant 0 : index
    %c0_10 = arith.constant 0 : index
    %27 = vector.load %arg3[%c0_9, %c0_10] : memref<1x32xf32, #tpu.memory_space<vmem>>, vector<1x32xf32>
    %28 = vector.broadcast %27 : vector<1x32xf32> to vector<8x32xf32>
    %29 = arith.mulf %26, %28 : vector<8x32xf32>
    %c0_11 = arith.constant 0 : index
    %c0_12 = arith.constant 0 : index
    %30 = vector.load %arg5[%c0_11, %c0_12] : memref<1x32xf32, #tpu.memory_space<vmem>>, vector<1x32xf32>
    %31 = vector.broadcast %30 : vector<1x32xf32> to vector<8x32xf32>
    %32 = arith.addf %29, %31 : vector<8x32xf32>
    %33 = arith.truncf %32 : vector<8x32xf32> to vector<8x32xbf16>
    %34 = vector.broadcast %24 : vector<8x1xf32> to vector<8x128xf32>
    %35 = arith.mulf %12, %34 : vector<8x128xf32>
    %c0_13 = arith.constant 0 : index
    %c0_14 = arith.constant 0 : index
    %36 = vector.load %arg4[%c0_13, %c0_14] : memref<1x128xf32, #tpu.memory_space<vmem>>, vector<1x128xf32>
    %37 = vector.broadcast %36 : vector<1x128xf32> to vector<8x128xf32>
    %38 = arith.mulf %35, %37 : vector<8x128xf32>
    %c0_15 = arith.constant 0 : index
    %c0_16 = arith.constant 0 : index
    %39 = vector.load %arg6[%c0_15, %c0_16] : memref<1x128xf32, #tpu.memory_space<vmem>>, vector<1x128xf32>
    %40 = vector.broadcast %39 : vector<1x128xf32> to vector<8x128xf32>
    %41 = arith.addf %38, %40 : vector<8x128xf32>
    %42 = arith.truncf %41 : vector<8x128xf32> to vector<8x128xbf16>
    %c0_17 = arith.constant 0 : index
    %c0_18 = arith.constant 0 : index
    %43 = vector.load %arg7[%c0_17, %c0_18] : memref<32x64xbf16, #tpu.memory_space<vmem>>, vector<32x64xbf16>
    %cst_19 = arith.constant dense<0.000000e+00> : vector<8x64xf32>
    %44 = tpu.matmul %33, %43, %cst_19 {dimension_numbers = #tpu.dot_dimension_numbers<[1], [0], [0], [1], [0, 0, 1, 1], [], []>} : vector<8x32xbf16>, vector<32x64xbf16>, vector<8x64xf32> -> vector<8x64xf32>
    %c0_20 = arith.constant 0 : index
    %c0_21 = arith.constant 0 : index
    %45 = vector.load %arg8[%c0_20, %c0_21] : memref<128x64xbf16, #tpu.memory_space<vmem>>, vector<128x64xbf16>
    %cst_22 = arith.constant dense<0.000000e+00> : vector<8x64xf32>
    %46 = tpu.matmul %42, %45, %cst_22 {dimension_numbers = #tpu.dot_dimension_numbers<[1], [0], [0], [1], [0, 0, 1, 1], [], []>} : vector<8x128xbf16>, vector<128x64xbf16>, vector<8x64xf32> -> vector<8x64xf32>
    %47 = arith.addf %44, %46 : vector<8x64xf32>
    %c0_23 = arith.constant 0 : index
    %c0_24 = arith.constant 0 : index
    %48 = vector.load %arg9[%c0_23, %c0_24] : memref<1x64xf32, #tpu.memory_space<vmem>>, vector<1x64xf32>
    %49 = vector.broadcast %48 : vector<1x64xf32> to vector<8x64xf32>
    %50 = arith.addf %47, %49 : vector<8x64xf32>
    %cst_25 = arith.constant 0.000000e+00 : f32
    %51 = vector.broadcast %cst_25 : f32 to vector<8x64xf32>
    %52 = arith.maximumf %50, %51 : vector<8x64xf32>
    %53 = arith.truncf %52 : vector<8x64xf32> to vector<8x64xbf16>
    %c0_26 = arith.constant 0 : index
    %c0_27 = arith.constant 0 : index
    %54 = vector.load %arg10[%c0_26, %c0_27] : memref<64x32xbf16, #tpu.memory_space<vmem>>, vector<64x32xbf16>
    %cst_28 = arith.constant dense<0.000000e+00> : vector<8x32xf32>
    %55 = tpu.matmul %53, %54, %cst_28 {dimension_numbers = #tpu.dot_dimension_numbers<[1], [0], [0], [1], [0, 0, 1, 1], [], []>} : vector<8x64xbf16>, vector<64x32xbf16>, vector<8x32xf32> -> vector<8x32xf32>
    %c0_29 = arith.constant 0 : index
    %c0_30 = arith.constant 0 : index
    %56 = vector.load %arg11[%c0_29, %c0_30] : memref<1x32xf32, #tpu.memory_space<vmem>>, vector<1x32xf32>
    %57 = vector.broadcast %56 : vector<1x32xf32> to vector<8x32xf32>
    %58 = arith.addf %55, %57 : vector<8x32xf32>
    %cst_31 = arith.constant dense<0.000000e+00> : vector<8xf32>
    %59 = vector.multi_reduction <add>, %58, %cst_31 [1] : vector<8x32xf32> to vector<8xf32>
    %60 = vector.shape_cast %59 : vector<8xf32> to vector<8x1xf32>
    %cst_32 = arith.constant 3.200000e+01 : f32
    %61 = vector.broadcast %cst_32 : f32 to vector<8x1xf32>
    %62 = arith.divf %60, %61 : vector<8x1xf32>
    %63 = vector.broadcast %62 : vector<8x1xf32> to vector<8x32xf32>
    %64 = arith.subf %58, %63 : vector<8x32xf32>
    %65 = arith.mulf %64, %64 : vector<8x32xf32>
    %cst_33 = arith.constant dense<0.000000e+00> : vector<8xf32>
    %66 = vector.multi_reduction <add>, %65, %cst_33 [1] : vector<8x32xf32> to vector<8xf32>
    %67 = vector.shape_cast %66 : vector<8xf32> to vector<8x1xf32>
    %cst_34 = arith.constant 3.200000e+01 : f32
    %68 = vector.broadcast %cst_34 : f32 to vector<8x1xf32>
    %69 = arith.divf %67, %68 : vector<8x1xf32>
    %cst_35 = arith.constant 9.99999974E-6 : f32
    %70 = vector.broadcast %cst_35 : f32 to vector<8x1xf32>
    %71 = arith.addf %69, %70 : vector<8x1xf32>
    %72 = math.rsqrt %71 : vector<8x1xf32>
    %73 = vector.broadcast %72 : vector<8x1xf32> to vector<8x32xf32>
    %74 = arith.mulf %64, %73 : vector<8x32xf32>
    %c0_36 = arith.constant 0 : index
    %c0_37 = arith.constant 0 : index
    %75 = vector.load %arg12[%c0_36, %c0_37] : memref<1x32xf32, #tpu.memory_space<vmem>>, vector<1x32xf32>
    %76 = vector.broadcast %75 : vector<1x32xf32> to vector<8x32xf32>
    %77 = arith.mulf %74, %76 : vector<8x32xf32>
    %c0_38 = arith.constant 0 : index
    %c0_39 = arith.constant 0 : index
    %78 = vector.load %arg13[%c0_38, %c0_39] : memref<1x32xf32, #tpu.memory_space<vmem>>, vector<1x32xf32>
    %79 = vector.broadcast %78 : vector<1x32xf32> to vector<8x32xf32>
    %80 = arith.addf %77, %79 : vector<8x32xf32>
    %c0_40 = arith.constant 0 : index
    %c0_41 = arith.constant 0 : index
    %81 = vector.load %arg14[%c0_40, %c0_41] : memref<8x32xf32, #tpu.memory_space<vmem>>, vector<8x32xf32>
    tpu.vector_store %arg14[%c0_40, %c0_41], %80 {strides = array<i32>} : memref<8x32xf32, #tpu.memory_space<vmem>>, vector<8x32xf32>,
    return
  }
  func.func @transform_0(%arg0: i32) -> (i32, i32) {
    %c0_i32 = arith.constant 0 : i32
    %c0_i32_0 = arith.constant 0 : i32
    return %arg0, %c0_i32 : i32, i32
  }
  func.func @transform_1(%arg0: i32) -> (i32, i32) {
    %c0_i32 = arith.constant 0 : i32
    %c0_i32_0 = arith.constant 0 : i32
    return %arg0, %c0_i32 : i32, i32
  }
  func.func @transform_2(%arg0: i32) -> (i32, i32) {
    %c0_i32 = arith.constant 0 : i32
    %c0_i32_0 = arith.constant 0 : i32
    %c0_i32_1 = arith.constant 0 : i32
    return %c0_i32, %c0_i32_0 : i32, i32
  }
  func.func @transform_3(%arg0: i32) -> (i32, i32) {
    %c0_i32 = arith.constant 0 : i32
    %c0_i32_0 = arith.constant 0 : i32
    %c0_i32_1 = arith.constant 0 : i32
    return %c0_i32, %c0_i32_0 : i32, i32
  }
  func.func @transform_4(%arg0: i32) -> (i32, i32) {
    %c0_i32 = arith.constant 0 : i32
    %c0_i32_0 = arith.constant 0 : i32
    %c0_i32_1 = arith.constant 0 : i32
    return %c0_i32, %c0_i32_0 : i32, i32
  }
  func.func @transform_5(%arg0: i32) -> (i32, i32) {
    %c0_i32 = arith.constant 0 : i32
    %c0_i32_0 = arith.constant 0 : i32
    %c0_i32_1 = arith.constant 0 : i32
    return %c0_i32, %c0_i32_0 : i32, i32
  }
  func.func @transform_6(%arg0: i32) -> (i32, i32) {
    %c0_i32 = arith.constant 0 : i32
    %c0_i32_0 = arith.constant 0 : i32
    %c0_i32_1 = arith.constant 0 : i32
    return %c0_i32, %c0_i32_0 : i32, i32
  }
  func.func @transform_7(%arg0: i32) -> (i32, i32) {
    %c0_i32 = arith.constant 0 : i32
    %c0_i32_0 = arith.constant 0 : i32
    %c0_i32_1 = arith.constant 0 : i32
    return %c0_i32, %c0_i32_0 : i32, i32
  }
  func.func @transform_8(%arg0: i32) -> (i32, i32) {
    %c0_i32 = arith.constant 0 : i32
    %c0_i32_0 = arith.constant 0 : i32
    %c0_i32_1 = arith.constant 0 : i32
    return %c0_i32, %c0_i32_0 : i32, i32
  }
  func.func @transform_9(%arg0: i32) -> (i32, i32) {
    %c0_i32 = arith.constant 0 : i32
    %c0_i32_0 = arith.constant 0 : i32
    %c0_i32_1 = arith.constant 0 : i32
    return %c0_i32, %c0_i32_0 : i32, i32
  }
  func.func @transform_10(%arg0: i32) -> (i32, i32) {
    %c0_i32 = arith.constant 0 : i32
    %c0_i32_0 = arith.constant 0 : i32
    %c0_i32_1 = arith.constant 0 : i32
    return %c0_i32, %c0_i32_0 : i32, i32
  }
  func.func @transform_11(%arg0: i32) -> (i32, i32) {
    %c0_i32 = arith.constant 0 : i32
    %c0_i32_0 = arith.constant 0 : i32
    %c0_i32_1 = arith.constant 0 : i32
    return %c0_i32, %c0_i32_0 : i32, i32
  }
  func.func @transform_12(%arg0: i32) -> (i32, i32) {
    %c0_i32 = arith.constant 0 : i32
    %c0_i32_0 = arith.constant 0 : i32
    %c0_i32_1 = arith.constant 0 : i32
    return %c0_i32, %c0_i32_0 : i32, i32
  }
  func.func @transform_13(%arg0: i32) -> (i32, i32) {
    %c0_i32 = arith.constant 0 : i32
    %c0_i32_0 = arith.constant 0 : i32
    return %arg0, %c0_i32 : i32, i32
  }
}

module attributes {stable_mosaic.version = 11 : i64} {
  func.func @_layernorm_kernel(%arg0: i32, %arg1: memref<8x32xf32, #tpu.memory_space<vmem>>, %arg2: memref<1x32xf32, #tpu.memory_space<vmem>>, %arg3: memref<1x32xf32, #tpu.memory_space<vmem>>, %arg4: memref<8x32xf32, #tpu.memory_space<vmem>>) attributes {dimension_semantics = [#tpu.dimension_semantics<parallel>], iteration_bounds = array<i64: 2>, scalar_prefetch = 0 : i64, scratch_operands = 0 : i64, tpu.core_type = #tpu.core_type<tc>, window_params = [{transform_indices = @transform_0, window_bounds = array<i64: 8, 32>}, {pipeline_mode = #tpu.pipeline_mode<synchronous>, transform_indices = @transform_1, window_bounds = array<i64: 1, 32>}, {pipeline_mode = #tpu.pipeline_mode<synchronous>, transform_indices = @transform_2, window_bounds = array<i64: 1, 32>}, {transform_indices = @transform_3, window_bounds = array<i64: 8, 32>}]} {
    %c0 = arith.constant 0 : index
    %c0_0 = arith.constant 0 : index
    %0 = vector.load %arg1[%c0, %c0_0] : memref<8x32xf32, #tpu.memory_space<vmem>>, vector<8x32xf32>
    %cst = arith.constant dense<0.000000e+00> : vector<8xf32>
    %1 = vector.multi_reduction <add>, %0, %cst [1] : vector<8x32xf32> to vector<8xf32>
    %2 = vector.shape_cast %1 : vector<8xf32> to vector<8x1xf32>
    %cst_1 = arith.constant 3.200000e+01 : f32
    %3 = vector.broadcast %cst_1 : f32 to vector<8x1xf32>
    %4 = arith.divf %2, %3 : vector<8x1xf32>
    %5 = vector.broadcast %4 : vector<8x1xf32> to vector<8x32xf32>
    %6 = arith.subf %0, %5 : vector<8x32xf32>
    %7 = arith.mulf %6, %6 : vector<8x32xf32>
    %cst_2 = arith.constant dense<0.000000e+00> : vector<8xf32>
    %8 = vector.multi_reduction <add>, %7, %cst_2 [1] : vector<8x32xf32> to vector<8xf32>
    %9 = vector.shape_cast %8 : vector<8xf32> to vector<8x1xf32>
    %cst_3 = arith.constant 3.200000e+01 : f32
    %10 = vector.broadcast %cst_3 : f32 to vector<8x1xf32>
    %11 = arith.divf %9, %10 : vector<8x1xf32>
    %cst_4 = arith.constant 9.99999974E-6 : f32
    %12 = vector.broadcast %cst_4 : f32 to vector<8x1xf32>
    %13 = arith.addf %11, %12 : vector<8x1xf32>
    %14 = math.rsqrt %13 : vector<8x1xf32>
    %15 = vector.broadcast %14 : vector<8x1xf32> to vector<8x32xf32>
    %16 = arith.mulf %6, %15 : vector<8x32xf32>
    %c0_5 = arith.constant 0 : index
    %c0_6 = arith.constant 0 : index
    %17 = vector.load %arg2[%c0_5, %c0_6] : memref<1x32xf32, #tpu.memory_space<vmem>>, vector<1x32xf32>
    %18 = vector.broadcast %17 : vector<1x32xf32> to vector<8x32xf32>
    %19 = arith.mulf %16, %18 : vector<8x32xf32>
    %c0_7 = arith.constant 0 : index
    %c0_8 = arith.constant 0 : index
    %20 = vector.load %arg3[%c0_7, %c0_8] : memref<1x32xf32, #tpu.memory_space<vmem>>, vector<1x32xf32>
    %21 = vector.broadcast %20 : vector<1x32xf32> to vector<8x32xf32>
    %22 = arith.addf %19, %21 : vector<8x32xf32>
    %c0_9 = arith.constant 0 : index
    %c0_10 = arith.constant 0 : index
    %23 = vector.load %arg4[%c0_9, %c0_10] : memref<8x32xf32, #tpu.memory_space<vmem>>, vector<8x32xf32>
    tpu.vector_store %arg4[%c0_9, %c0_10], %22 {strides = array<i32>} : memref<8x32xf32, #tpu.memory_space<vmem>>, vector<8x32xf32>,
    return
  }
  func.func @transform_0(%arg0: i32) -> (i32, i32) {
    %c0_i32 = arith.constant 0 : i32
    %c0_i32_0 = arith.constant 0 : i32
    return %arg0, %c0_i32 : i32, i32
  }
  func.func @transform_1(%arg0: i32) -> (i32, i32) {
    %c0_i32 = arith.constant 0 : i32
    %c0_i32_0 = arith.constant 0 : i32
    %c0_i32_1 = arith.constant 0 : i32
    return %c0_i32, %c0_i32_0 : i32, i32
  }
  func.func @transform_2(%arg0: i32) -> (i32, i32) {
    %c0_i32 = arith.constant 0 : i32
    %c0_i32_0 = arith.constant 0 : i32
    %c0_i32_1 = arith.constant 0 : i32
    return %c0_i32, %c0_i32_0 : i32, i32
  }
  func.func @transform_3(%arg0: i32) -> (i32, i32) {
    %c0_i32 = arith.constant 0 : i32
    %c0_i32_0 = arith.constant 0 : i32
    return %arg0, %c0_i32 : i32, i32
  }
}

</mosaic_0001>

<llo_original>
// kernel: custom_transformer_forward.6
$region0: #{custom_transformer_forward.6}
  #allocation0 [shape = 'u32[]', space=smem, size = 0x4, offset = 0x4, fixed_abs, tag = 'smem constant byte address 0x4 - core index']
  #allocation1 [shape = 'u32[72,128]{1,0:T(1,128)}', space=vmem, size = 0x9000, scoped, tag = 'internal scratch']
  %s0 = inlined_call_operand.vmem [shape: f32[16,32], index: 0, kind: input, shape index: {}]
  %s1 = inlined_call_operand.vmem [shape: f32[16,128], index: 1, kind: input, shape index: {}]
  %s2 = inlined_call_operand.vmem [shape: f32[1,32], index: 2, kind: input, shape index: {}]
  %s3 = inlined_call_operand.hbm [shape: f32[1,128], index: 3, kind: input, shape index: {}]
  %s4 = inlined_call_operand.hbm [shape: f32[1,32], index: 4, kind: input, shape index: {}]
  %s5 = inlined_call_operand.hbm [shape: f32[1,128], index: 5, kind: input, shape index: {}]
  %s6 = inlined_call_operand.vmem [shape: bf16[32,64], index: 6, kind: input, shape index: {}]
  %s7 = inlined_call_operand.vmem [shape: bf16[128,64], index: 7, kind: input, shape index: {}]
  %s8 = inlined_call_operand.hbm [shape: f32[1,64], index: 8, kind: input, shape index: {}]
  %s9 = inlined_call_operand.vmem [shape: bf16[64,32], index: 9, kind: input, shape index: {}]
  %s10 = inlined_call_operand.hbm [shape: f32[1,32], index: 10, kind: input, shape index: {}]
  %s11 = inlined_call_operand.hbm [shape: f32[1,32], index: 11, kind: input, shape index: {}]
  %s12 = inlined_call_operand.hbm [shape: f32[1,32], index: 12, kind: input, shape index: {}]
  %s13 = inlined_call_operand.vmem [shape: f32[16,32], index: 13, kind: output, shape index: {}]
  %s14 = sld [smem:[#allocation0]]
  $region113: #{custom_transformer_forward.6} parent=0
    _
  %s16 = ssub.s32 1, %s14
  %s17 = scalar_select 0, %s16, %s14
  $region1: #{custom_transformer_forward.6} parent=0
    #allocation2 [shape = 'u8[512]{0}', space=vmem, size = 0x400, scoped, tag = 'input window, operand 3, single buffered']
    #allocation3 [shape = 's32[2]{0}', space=sflag, size = 0x8, scoped, tag = 'scoped memory for custom_transformer_forward.6']
    #allocation4 [shape = 'u8[512]{0}', space=vmem, size = 0x400, scoped, tag = 'input window, operand 4, single buffered']
    #allocation5 [shape = 's32[1]{0}', space=sflag, size = 0x4, scoped, tag = 'scoped memory for custom_transformer_forward.6']
    #allocation6 [shape = 'u8[512]{0}', space=vmem, size = 0x400, scoped, tag = 'input window, operand 5, single buffered']
    #allocation7 [shape = 'u8[512]{0}', space=vmem, size = 0x400, scoped, tag = 'input window, operand 8, single buffered']
    #allocation8 [shape = 's32[1]{0}', space=sflag, size = 0x4, scoped, tag = 'scoped memory for custom_transformer_forward.6']
    #allocation9 [shape = 'u8[512]{0}', space=vmem, size = 0x400, scoped, tag = 'input window, operand 10, single buffered']
    #allocation10 [shape = 'u8[512]{0}', space=vmem, size = 0x400, scoped, tag = 'input window, operand 11, single buffered']
    #allocation11 [shape = 's32[1]{0}', space=sflag, size = 0x4, scoped, tag = 'scoped memory for custom_transformer_forward.6']
    #allocation12 [shape = 'u8[512]{0}', space=vmem, size = 0x400, scoped, tag = 'input window, operand 12, single buffered']
    %18 = vsyncpa [#allocation3], 0
    %19 = vsyncpa [#allocation5], 0
    %20 = vsyncpa [#allocation8], 0
    %21 = vsyncpa [#allocation11], 0
    loop: start=0, step=1, limit=4
    $region2: #{custom_transformer_forward.6} parent=1 // loop_pre_header
      _
    $region3: #{custom_transformer_forward.6} parent=1 // loop_header
      %s23 = sphi 0, %s27
      %p24 = scmp.ge.s32.totalorder %s23, 4
      %s33 = sphi 0, %s35
      %s36 = sphi 0, %s33
      %s37 = sphi 0, %s36
      %s53 = sphi 0, %s37
      %s59 = sphi 0, %s61
      %s62 = sphi 0, %s59
      %s63 = sphi 0, %s62
      %s79 = sphi 0, %s63
      %s83 = sphi 0, %s83
      %s85 = sphi 0, %s83
      %s86 = sphi 0, %s85
      %s100 = sphi 0, %s86
      %s104 = sphi 0, %s104
      %s106 = sphi 0, %s104
      %s107 = sphi 0, %s106
      %s121 = sphi 0, %s107
      %s125 = sphi 0, %s125
      %s127 = sphi 0, %s125
      %s128 = sphi 0, %s127
      %s142 = sphi 0, %s128
      %s146 = sphi 0, %s146
      %s148 = sphi 0, %s146
      %s149 = sphi 0, %s148
      %s163 = sphi 0, %s149
      %s167 = sphi 0, %s167
      %s169 = sphi 0, %s167
      %s170 = sphi 0, %s169
      %s184 = sphi 0, %s170
      %s188 = sphi 0, %s188
      %s190 = sphi 0, %s188
      %s191 = sphi 0, %s190
      %s205 = sphi 0, %s191
      %s209 = sphi 0, %s209
      %s211 = sphi 0, %s209
      %s212 = sphi 0, %s211
      %s226 = sphi 0, %s212
      %s230 = sphi 0, %s230
      %s232 = sphi 0, %s230
      %s233 = sphi 0, %s232
      %s247 = sphi 0, %s233
      %s251 = sphi 0, %s251
      %s253 = sphi 0, %s251
      %s254 = sphi 0, %s253
      %s268 = sphi 0, %s254
      %s272 = sphi 0, %s272
      %s274 = sphi 0, %s272
      %s275 = sphi 0, %s274
      %s289 = sphi 0, %s275
      %s293 = sphi 0, %s293
      %s295 = sphi 0, %s293
      %s296 = sphi 0, %s295
      %s310 = sphi 0, %s296
      %s316 = sphi 0, %s318
      %s319 = sphi 0, %s316
      %s320 = sphi 0, %s319
      %s336 = sphi 0, %s320
    $region4: #{custom_transformer_forward.6} parent=1 // loop_header_branch
      %26 = sbr.rel (%p24) target = $region8
    $region5: #{custom_transformer_forward.6} parent=1 // loop_body
      %s28 = ssub.s32 %s23, 1
      %s29 = ssub.s32 %s23, 2
      %s30 = sadd.s32 %s23, 1
      %s31 = ssub.s32 %s23, %s30
      %p32 = scmp.eq.s32.totalorder %s31, 0
      %s34 = sadd.s32 %s33, 1
      %s35 = scalar_select %p32, %s33, %s34
      %p38 = pneg %p32
      %p39 = scmp.eq.s32.totalorder %s23, 1
      %p40 = por %p38, %p39
      %p41 = scmp.ne.s32.totalorder %s33, %s36
      %p42 = scmp.eq.s32.totalorder %s23, 0
      %p43 = por %p41, %p42
      %p44 = scmp.ne.s32.totalorder %s33, %s36
      %p45 = scmp.eq.s32.totalorder %s28, 1
      %p46 = por %p44, %p45
      %p47 = scmp.ne.s32.totalorder %s36, %s37
      %p48 = scmp.eq.s32.totalorder %s28, 0
      %p49 = por %p47, %p48
      %p50 = scmp.ne.s32.totalorder %s36, %s37
      %p51 = scmp.eq.s32.totalorder %s29, 1
      %p52 = por %p50, %p51
      %p54 = scmp.ne.s32.totalorder %s37, %s53
      %p55 = scmp.eq.s32.totalorder %s29, 0
      %p56 = por %p54, %p55
      %s57 = ssub.s32 %s23, %s30
      %p58 = scmp.eq.s32.totalorder %s57, 0
      %s60 = sadd.s32 %s59, 1
      %s61 = scalar_select %p58, %s59, %s60
      %p64 = pneg %p58
      %p65 = scmp.eq.s32.totalorder %s23, 1
      %p66 = por %p64, %p65
      %p67 = scmp.ne.s32.totalorder %s59, %s62
      %p68 = scmp.eq.s32.totalorder %s23, 0
      %p69 = por %p67, %p68
      %p70 = scmp.ne.s32.totalorder %s59, %s62
      %p71 = scmp.eq.s32.totalorder %s28, 1
      %p72 = por %p70, %p71
      %p73 = scmp.ne.s32.totalorder %s62, %s63
      %p74 = scmp.eq.s32.totalorder %s28, 0
      %p75 = por %p73, %p74
      %p76 = scmp.ne.s32.totalorder %s62, %s63
      %p77 = scmp.eq.s32.totalorder %s29, 1
      %p78 = por %p76, %p77
      %p80 = scmp.ne.s32.totalorder %s63, %s79
      %p81 = scmp.eq.s32.totalorder %s29, 0
      %p82 = por %p80, %p81
      %s84 = sadd.s32 %s83, 1
      %p87 = scmp.eq.s32.totalorder %s23, 1
      %p88 = scmp.ne.s32.totalorder %s83, %s85
      %p89 = scmp.eq.s32.totalorder %s23, 0
      %p90 = por %p88, %p89
      %p91 = scmp.ne.s32.totalorder %s83, %s85
      %p92 = scmp.eq.s32.totalorder %s28, 1
      %p93 = por %p91, %p92
      %p94 = scmp.ne.s32.totalorder %s85, %s86
      %p95 = scmp.eq.s32.totalorder %s28, 0
      %p96 = por %p94, %p95
      %p97 = scmp.ne.s32.totalorder %s85, %s86
      %p98 = scmp.eq.s32.totalorder %s29, 1
      %p99 = por %p97, %p98
      %p101 = scmp.ne.s32.totalorder %s86, %s100
      %p102 = scmp.eq.s32.totalorder %s29, 0
      %p103 = por %p101, %p102
      %s105 = sadd.s32 %s104, 1
      %p108 = scmp.eq.s32.totalorder %s23, 1
      %p109 = scmp.ne.s32.totalorder %s104, %s106
      %p110 = scmp.eq.s32.totalorder %s23, 0
      %p111 = por %p109, %p110
      %p112 = scmp.ne.s32.totalorder %s104, %s106
      %p113 = scmp.eq.s32.totalorder %s28, 1
      %p114 = por %p112, %p113
      %p115 = scmp.ne.s32.totalorder %s106, %s107
      %p116 = scmp.eq.s32.totalorder %s28, 0
      %p117 = por %p115, %p116
      %p118 = scmp.ne.s32.totalorder %s106, %s107
      %p119 = scmp.eq.s32.totalorder %s29, 1
      %p120 = por %p118, %p119
      %p122 = scmp.ne.s32.totalorder %s107, %s121
      %p123 = scmp.eq.s32.totalorder %s29, 0
      %p124 = por %p122, %p123
      %s126 = sadd.s32 %s125, 1
      %p129 = scmp.eq.s32.totalorder %s23, 1
      %p130 = scmp.ne.s32.totalorder %s125, %s127
      %p131 = scmp.eq.s32.totalorder %s23, 0
      %p132 = por %p130, %p131
      %p133 = scmp.ne.s32.totalorder %s125, %s127
      %p134 = scmp.eq.s32.totalorder %s28, 1
      %p135 = por %p133, %p134
      %p136 = scmp.ne.s32.totalorder %s127, %s128
      %p137 = scmp.eq.s32.totalorder %s28, 0
      %p138 = por %p136, %p137
      %p139 = scmp.ne.s32.totalorder %s127, %s128
      %p140 = scmp.eq.s32.totalorder %s29, 1
      %p141 = por %p139, %p140
      %p143 = scmp.ne.s32.totalorder %s128, %s142
      %p144 = scmp.eq.s32.totalorder %s29, 0
      %p145 = por %p143, %p144
      %s147 = sadd.s32 %s146, 1
      %p150 = scmp.eq.s32.totalorder %s23, 1
      %p151 = scmp.ne.s32.totalorder %s146, %s148
      %p152 = scmp.eq.s32.totalorder %s23, 0
      %p153 = por %p151, %p152
      %p154 = scmp.ne.s32.totalorder %s146, %s148
      %p155 = scmp.eq.s32.totalorder %s28, 1
      %p156 = por %p154, %p155
      %p157 = scmp.ne.s32.totalorder %s148, %s149
      %p158 = scmp.eq.s32.totalorder %s28, 0
      %p159 = por %p157, %p158
      %p160 = scmp.ne.s32.totalorder %s148, %s149
      %p161 = scmp.eq.s32.totalorder %s29, 1
      %p162 = por %p160, %p161
      %p164 = scmp.ne.s32.totalorder %s149, %s163
      %p165 = scmp.eq.s32.totalorder %s29, 0
      %p166 = por %p164, %p165
      %s168 = sadd.s32 %s167, 1
      %p171 = scmp.eq.s32.totalorder %s23, 1
      %p172 = scmp.ne.s32.totalorder %s167, %s169
      %p173 = scmp.eq.s32.totalorder %s23, 0
      %p174 = por %p172, %p173
      %p175 = scmp.ne.s32.totalorder %s167, %s169
      %p176 = scmp.eq.s32.totalorder %s28, 1
      %p177 = por %p175, %p176
      %p178 = scmp.ne.s32.totalorder %s169, %s170
      %p179 = scmp.eq.s32.totalorder %s28, 0
      %p180 = por %p178, %p179
      %p181 = scmp.ne.s32.totalorder %s169, %s170
      %p182 = scmp.eq.s32.totalorder %s29, 1
      %p183 = por %p181, %p182
      %p185 = scmp.ne.s32.totalorder %s170, %s184
      %p186 = scmp.eq.s32.totalorder %s29, 0
      %p187 = por %p185, %p186
      %s189 = sadd.s32 %s188, 1
      %p192 = scmp.eq.s32.totalorder %s23, 1
      %p193 = scmp.ne.s32.totalorder %s188, %s190
      %p194 = scmp.eq.s32.totalorder %s23, 0
      %p195 = por %p193, %p194
      %p196 = scmp.ne.s32.totalorder %s188, %s190
      %p197 = scmp.eq.s32.totalorder %s28, 1
      %p198 = por %p196, %p197
      %p199 = scmp.ne.s32.totalorder %s190, %s191
      %p200 = scmp.eq.s32.totalorder %s28, 0
      %p201 = por %p199, %p200
      %p202 = scmp.ne.s32.totalorder %s190, %s191
      %p203 = scmp.eq.s32.totalorder %s29, 1
      %p204 = por %p202, %p203
      %p206 = scmp.ne.s32.totalorder %s191, %s205
      %p207 = scmp.eq.s32.totalorder %s29, 0
      %p208 = por %p206, %p207
      %s210 = sadd.s32 %s209, 1
      %p213 = scmp.eq.s32.totalorder %s23, 1
      %p214 = scmp.ne.s32.totalorder %s209, %s211
      %p215 = scmp.eq.s32.totalorder %s23, 0
      %p216 = por %p214, %p215
      %p217 = scmp.ne.s32.totalorder %s209, %s211
      %p218 = scmp.eq.s32.totalorder %s28, 1
      %p219 = por %p217, %p218
      %p220 = scmp.ne.s32.totalorder %s211, %s212
      %p221 = scmp.eq.s32.totalorder %s28, 0
      %p222 = por %p220, %p221
      %p223 = scmp.ne.s32.totalorder %s211, %s212
      %p224 = scmp.eq.s32.totalorder %s29, 1
      %p225 = por %p223, %p224
      %p227 = scmp.ne.s32.totalorder %s212, %s226
      %p228 = scmp.eq.s32.totalorder %s29, 0
      %p229 = por %p227, %p228
      %s231 = sadd.s32 %s230, 1
      %p234 = scmp.eq.s32.totalorder %s23, 1
      %p235 = scmp.ne.s32.totalorder %s230, %s232
      %p236 = scmp.eq.s32.totalorder %s23, 0
      %p237 = por %p235, %p236
      %p238 = scmp.ne.s32.totalorder %s230, %s232
      %p239 = scmp.eq.s32.totalorder %s28, 1
      %p240 = por %p238, %p239
      %p241 = scmp.ne.s32.totalorder %s232, %s233
      %p242 = scmp.eq.s32.totalorder %s28, 0
      %p243 = por %p241, %p242
      %p244 = scmp.ne.s32.totalorder %s232, %s233
      %p245 = scmp.eq.s32.totalorder %s29, 1
      %p246 = por %p244, %p245
      %p248 = scmp.ne.s32.totalorder %s233, %s247
      %p249 = scmp.eq.s32.totalorder %s29, 0
      %p250 = por %p248, %p249
      %s252 = sadd.s32 %s251, 1
      %p255 = scmp.eq.s32.totalorder %s23, 1
      %p256 = scmp.ne.s32.totalorder %s251, %s253
      %p257 = scmp.eq.s32.totalorder %s23, 0
      %p258 = por %p256, %p257
      %p259 = scmp.ne.s32.totalorder %s251, %s253
      %p260 = scmp.eq.s32.totalorder %s28, 1
      %p261 = por %p259, %p260
      %p262 = scmp.ne.s32.totalorder %s253, %s254
      %p263 = scmp.eq.s32.totalorder %s28, 0
      %p264 = por %p262, %p263
      %p265 = scmp.ne.s32.totalorder %s253, %s254
      %p266 = scmp.eq.s32.totalorder %s29, 1
      %p267 = por %p265, %p266
      %p269 = scmp.ne.s32.totalorder %s254, %s268
      %p270 = scmp.eq.s32.totalorder %s29, 0
      %p271 = por %p269, %p270
      %s273 = sadd.s32 %s272, 1
      %p276 = scmp.eq.s32.totalorder %s23, 1
      %p277 = scmp.ne.s32.totalorder %s272, %s274
      %p278 = scmp.eq.s32.totalorder %s23, 0
      %p279 = por %p277, %p278
      %p280 = scmp.ne.s32.totalorder %s272, %s274
      %p281 = scmp.eq.s32.totalorder %s28, 1
      %p282 = por %p280, %p281
      %p283 = scmp.ne.s32.totalorder %s274, %s275
      %p284 = scmp.eq.s32.totalorder %s28, 0
      %p285 = por %p283, %p284
      %p286 = scmp.ne.s32.totalorder %s274, %s275
      %p287 = scmp.eq.s32.totalorder %s29, 1
      %p288 = por %p286, %p287
      %p290 = scmp.ne.s32.totalorder %s275, %s289
      %p291 = scmp.eq.s32.totalorder %s29, 0
      %p292 = por %p290, %p291
      %s294 = sadd.s32 %s293, 1
      %p297 = scmp.eq.s32.totalorder %s23, 1
      %p298 = scmp.ne.s32.totalorder %s293, %s295
      %p299 = scmp.eq.s32.totalorder %s23, 0
      %p300 = por %p298, %p299
      %p301 = scmp.ne.s32.totalorder %s293, %s295
      %p302 = scmp.eq.s32.totalorder %s28, 1
      %p303 = por %p301, %p302
      %p304 = scmp.ne.s32.totalorder %s295, %s296
      %p305 = scmp.eq.s32.totalorder %s28, 0
      %p306 = por %p304, %p305
      %p307 = scmp.ne.s32.totalorder %s295, %s296
      %p308 = scmp.eq.s32.totalorder %s29, 1
      %p309 = por %p307, %p308
      %p311 = scmp.ne.s32.totalorder %s296, %s310
      %p312 = scmp.eq.s32.totalorder %s29, 0
      %p313 = por %p311, %p312
      %s314 = ssub.s32 %s23, %s30
      %p315 = scmp.eq.s32.totalorder %s314, 0
      %s317 = sadd.s32 %s316, 1
      %s318 = scalar_select %p315, %s316, %s317
      %p321 = pneg %p315
      %p322 = scmp.eq.s32.totalorder %s23, 1
      %p323 = por %p321, %p322
      %p324 = scmp.ne.s32.totalorder %s316, %s319
      %p325 = scmp.eq.s32.totalorder %s23, 0
      %p326 = por %p324, %p325
      %p327 = scmp.ne.s32.totalorder %s316, %s319
      %p328 = scmp.eq.s32.totalorder %s28, 1
      %p329 = por %p327, %p328
      %p330 = scmp.ne.s32.totalorder %s319, %s320
      %p331 = scmp.eq.s32.totalorder %s28, 0
      %p332 = por %p330, %p331
      %p333 = scmp.ne.s32.totalorder %s319, %s320
      %p334 = scmp.eq.s32.totalorder %s29, 1
      %p335 = por %p333, %p334
      %p337 = scmp.ne.s32.totalorder %s320, %s336
      %p338 = scmp.eq.s32.totalorder %s29, 0
      %p339 = por %p337, %p338
      %p340 = scmp.le.s32.totalorder 1, %s23
      %p341 = scmp.lt.s32.totalorder %s23, 3
      %p342 = pnand %p340, %p341
      %p343 = pneg %p342
      // Predicated region
      $region9: #{custom_transformer_forward.6} parent=5 // pred_check
        _
      $region10: #{custom_transformer_forward.6} parent=5 // pred_check_branch
        %345 = sbr.rel (%p342) target = $region12
      $region11: #{custom_transformer_forward.6} parent=5 // pred_region
        %s346 = ssub.s32 %s23, 1
        // Predicated region
        $region13: #{custom_transformer_forward.6} parent=11 // pred_check
          %p347 = pneg %p96
        $region14: #{custom_transformer_forward.6} parent=11 // pred_check_branch
          %349 = sbr.rel (%p347) target = $region16
        $region15: #{custom_transformer_forward.6} parent=11 // pred_region
          _
        $region16: #{custom_transformer_forward.6} parent=11 // pred_fallthru
          _
        // Predicated region
        $region17: #{custom_transformer_forward.6} parent=11 // pred_check
          %p350 = pneg %p117
        $region18: #{custom_transformer_forward.6} parent=11 // pred_check_branch
          %352 = sbr.rel (%p350) target = $region20
        $region19: #{custom_transformer_forward.6} parent=11 // pred_region
          %354 = vsyncadd [#allocation3], 0
          %s356 = sshll.u32 %s3, 4
          %s357 = int_to_ptr.hbm [resolvable:$true] %s356
          %s358 = sshll.u32 [#allocation2], 4
          %s359 = int_to_ptr.vmem [resolvable:$true] %s358
          %361 = dma.hbm_to_vmem [thread:$0]  %s357, 16, %s359, [#allocation3]
        $region20: #{custom_transformer_forward.6} parent=11 // pred_fallthru
          _
        // Predicated region
        $region21: #{custom_transformer_forward.6} parent=11 // pred_check
          %p362 = pneg %p138
        $region22: #{custom_transformer_forward.6} parent=11 // pred_check_branch
          %364 = sbr.rel (%p362) target = $region24
        $region23: #{custom_transformer_forward.6} parent=11 // pred_region
          %366 = vsyncadd [#allocation5], 0
          %s368 = sshll.u32 %s4, 4
          %s369 = int_to_ptr.hbm [resolvable:$true] %s368
          %s370 = sshll.u32 [#allocation4], 4
          %s371 = int_to_ptr.vmem [resolvable:$true] %s370
          %373 = dma.hbm_to_vmem [thread:$0]  %s369, 16, %s371, [#allocation5]
        $region24: #{custom_transformer_forward.6} parent=11 // pred_fallthru
          _
        // Predicated region
        $region25: #{custom_transformer_forward.6} parent=11 // pred_check
          %p374 = pneg %p159
        $region26: #{custom_transformer_forward.6} parent=11 // pred_check_branch
          %376 = sbr.rel (%p374) target = $region28
        $region27: #{custom_transformer_forward.6} parent=11 // pred_region
          %378 = vsyncadd [#allocation5], 0
          %s380 = sshll.u32 %s5, 4
          %s381 = int_to_ptr.hbm [resolvable:$true] %s380
          %s382 = sshll.u32 [#allocation6], 4
          %s383 = int_to_ptr.vmem [resolvable:$true] %s382
          %385 = dma.hbm_to_vmem [thread:$0]  %s381, 16, %s383, [#allocation5]
        $region28: #{custom_transformer_forward.6} parent=11 // pred_fallthru
          _
        // Predicated region
        $region29: #{custom_transformer_forward.6} parent=11 // pred_check
          %p386 = pneg %p180
        $region30: #{custom_transformer_forward.6} parent=11 // pred_check_branch
          %388 = sbr.rel (%p386) target = $region32
        $region31: #{custom_transformer_forward.6} parent=11 // pred_region
          _
        $region32: #{custom_transformer_forward.6} parent=11 // pred_fallthru
          _
        // Predicated region
        $region33: #{custom_transformer_forward.6} parent=11 // pred_check
          %p389 = pneg %p201
        $region34: #{custom_transformer_forward.6} parent=11 // pred_check_branch
          %391 = sbr.rel (%p389) target = $region36
        $region35: #{custom_transformer_forward.6} parent=11 // pred_region
          _
        $region36: #{custom_transformer_forward.6} parent=11 // pred_fallthru
          _
        // Predicated region
        $region37: #{custom_transformer_forward.6} parent=11 // pred_check
          %p392 = pneg %p222
        $region38: #{custom_transformer_forward.6} parent=11 // pred_check_branch
          %394 = sbr.rel (%p392) target = $region40
        $region39: #{custom_transformer_forward.6} parent=11 // pred_region
          %396 = vsyncadd [#allocation8], 0
          %s398 = sshll.u32 %s8, 4
          %s399 = int_to_ptr.hbm [resolvable:$true] %s398
          %s400 = sshll.u32 [#allocation7], 4
          %s401 = int_to_ptr.vmem [resolvable:$true] %s400
          %403 = dma.hbm_to_vmem [thread:$0]  %s399, 16, %s401, [#allocation8]
        $region40: #{custom_transformer_forward.6} parent=11 // pred_fallthru
          _
        // Predicated region
        $region41: #{custom_transformer_forward.6} parent=11 // pred_check
          %p404 = pneg %p243
        $region42: #{custom_transformer_forward.6} parent=11 // pred_check_branch
          %406 = sbr.rel (%p404) target = $region44
        $region43: #{custom_transformer_forward.6} parent=11 // pred_region
          _
        $region44: #{custom_transformer_forward.6} parent=11 // pred_fallthru
          _
        // Predicated region
        $region45: #{custom_transformer_forward.6} parent=11 // pred_check
          %p407 = pneg %p264
        $region46: #{custom_transformer_forward.6} parent=11 // pred_check_branch
          %409 = sbr.rel (%p407) target = $region48
        $region47: #{custom_transformer_forward.6} parent=11 // pred_region
          %411 = vsyncadd [#allocation8], 0
          %s413 = sshll.u32 %s10, 4
          %s414 = int_to_ptr.hbm [resolvable:$true] %s413
          %s415 = sshll.u32 [#allocation9], 4
          %s416 = int_to_ptr.vmem [resolvable:$true] %s415
          %418 = dma.hbm_to_vmem [thread:$0]  %s414, 16, %s416, [#allocation8]
        $region48: #{custom_transformer_forward.6} parent=11 // pred_fallthru
          _
        // Predicated region
        $region49: #{custom_transformer_forward.6} parent=11 // pred_check
          %p419 = pneg %p285
        $region50: #{custom_transformer_forward.6} parent=11 // pred_check_branch
          %421 = sbr.rel (%p419) target = $region52
        $region51: #{custom_transformer_forward.6} parent=11 // pred_region
          %423 = vsyncadd [#allocation11], 0
          %s425 = sshll.u32 %s11, 4
          %s426 = int_to_ptr.hbm [resolvable:$true] %s425
          %s427 = sshll.u32 [#allocation10], 4
          %s428 = int_to_ptr.vmem [resolvable:$true] %s427
          %430 = dma.hbm_to_vmem [thread:$0]  %s426, 16, %s428, [#allocation11]
        $region52: #{custom_transformer_forward.6} parent=11 // pred_fallthru
          _
        // Predicated region
        $region53: #{custom_transformer_forward.6} parent=11 // pred_check
          %p431 = pneg %p306
        $region54: #{custom_transformer_forward.6} parent=11 // pred_check_branch
          %433 = sbr.rel (%p431) target = $region56
        $region55: #{custom_transformer_forward.6} parent=11 // pred_region
          %435 = vsyncadd [#allocation11], 0
          %s437 = sshll.u32 %s12, 4
          %s438 = int_to_ptr.hbm [resolvable:$true] %s437
          %s439 = sshll.u32 [#allocation12], 4
          %s440 = int_to_ptr.vmem [resolvable:$true] %s439
          %442 = dma.hbm_to_vmem [thread:$0]  %s438, 16, %s440, [#allocation11]
        $region56: #{custom_transformer_forward.6} parent=11 // pred_fallthru
          _
      $region12: #{custom_transformer_forward.6} parent=5 // pred_fallthru
        _
      %p443 = scmp.lt.s32.totalorder %s23, 2
      // Predicated region
      $region57: #{custom_transformer_forward.6} parent=5 // pred_check
        %p444 = pneg %p443
      $region58: #{custom_transformer_forward.6} parent=5 // pred_check_branch
        %446 = sbr.rel (%p444) target = $region60
      $region59: #{custom_transformer_forward.6} parent=5 // pred_region
        // Predicated region
        $region61: #{custom_transformer_forward.6} parent=59 // pred_check
          %p447 = pneg %p43
        $region62: #{custom_transformer_forward.6} parent=59 // pred_check_branch
          %449 = sbr.rel (%p447) target = $region64
        $region63: #{custom_transformer_forward.6} parent=59 // pred_region
          %p450 = scmp.lt.s32.totalorder %s23, 1
          %s451 = scalar_select %p450, %s23, 1
          %s452 = smul.addr %s451, 8
          %s453 = scalar_lea.vmem %s0, %s452
        $region64: #{custom_transformer_forward.6} parent=59 // pred_fallthru
          _
        // Predicated region
        $region65: #{custom_transformer_forward.6} parent=59 // pred_check
          %p454 = pneg %p69
        $region66: #{custom_transformer_forward.6} parent=59 // pred_check_branch
          %456 = sbr.rel (%p454) target = $region68
        $region67: #{custom_transformer_forward.6} parent=59 // pred_region
          %p457 = scmp.lt.s32.totalorder %s23, 1
          %s458 = scalar_select %p457, %s23, 1
          %s459 = smul.addr %s458, 8
          %s460 = scalar_lea.vmem %s1, %s459
        $region68: #{custom_transformer_forward.6} parent=59 // pred_fallthru
          _
      $region60: #{custom_transformer_forward.6} parent=5 // pred_fallthru
        _
      %p461 = scmp.le.s32.totalorder 1, %s23
      %p462 = scmp.lt.s32.totalorder %s23, 3
      %p463 = pnand %p461, %p462
      %p464 = pneg %p463
      // Predicated region
      $region69: #{custom_transformer_forward.6} parent=5 // pred_check
        _
      $region70: #{custom_transformer_forward.6} parent=5 // pred_check_branch
        %466 = sbr.rel (%p463) target = $region72
      $region71: #{custom_transformer_forward.6} parent=5 // pred_region
        %s467 = ssub.s32 %s23, 1
        // Predicated region
        $region73: #{custom_transformer_forward.6} parent=71 // pred_check
          %p468 = pneg %p117
        $region74: #{custom_transformer_forward.6} parent=71 // pred_check_branch
          %470 = sbr.rel (%p468) target = $region76
        $region75: #{custom_transformer_forward.6} parent=71 // pred_region
          %472 = dma.done [#allocation3], 16
        $region76: #{custom_transformer_forward.6} parent=71 // pred_fallthru
          _
        // Predicated region
        $region77: #{custom_transformer_forward.6} parent=71 // pred_check
          %p473 = pneg %p138
        $region78: #{custom_transformer_forward.6} parent=71 // pred_check_branch
          %475 = sbr.rel (%p473) target = $region80
        $region79: #{custom_transformer_forward.6} parent=71 // pred_region
          %477 = dma.done [#allocation5], 16
        $region80: #{custom_transformer_forward.6} parent=71 // pred_fallthru
          _
        // Predicated region
        $region81: #{custom_transformer_forward.6} parent=71 // pred_check
          %p478 = pneg %p159
        $region82: #{custom_transformer_forward.6} parent=71 // pred_check_branch
          %480 = sbr.rel (%p478) target = $region84
        $region83: #{custom_transformer_forward.6} parent=71 // pred_region
          %482 = dma.done [#allocation5], 16
        $region84: #{custom_transformer_forward.6} parent=71 // pred_fallthru
          _
        // Predicated region
        $region85: #{custom_transformer_forward.6} parent=71 // pred_check
          %p483 = pneg %p222
        $region86: #{custom_transformer_forward.6} parent=71 // pred_check_branch
          %485 = sbr.rel (%p483) target = $region88
        $region87: #{custom_transformer_forward.6} parent=71 // pred_region
          %487 = dma.done [#allocation8], 16
        $region88: #{custom_transformer_forward.6} parent=71 // pred_fallthru
          _
        // Predicated region
        $region89: #{custom_transformer_forward.6} parent=71 // pred_check
          %p488 = pneg %p264
        $region90: #{custom_transformer_forward.6} parent=71 // pred_check_branch
          %490 = sbr.rel (%p488) target = $region92
        $region91: #{custom_transformer_forward.6} parent=71 // pred_region
          %492 = dma.done [#allocation8], 16
        $region92: #{custom_transformer_forward.6} parent=71 // pred_fallthru
          _
        // Predicated region
        $region93: #{custom_transformer_forward.6} parent=71 // pred_check
          %p493 = pneg %p285
        $region94: #{custom_transformer_forward.6} parent=71 // pred_check_branch
          %495 = sbr.rel (%p493) target = $region96
        $region95: #{custom_transformer_forward.6} parent=71 // pred_region
          %497 = dma.done [#allocation11], 16
        $region96: #{custom_transformer_forward.6} parent=71 // pred_fallthru
          _
        // Predicated region
        $region97: #{custom_transformer_forward.6} parent=71 // pred_check
          %p498 = pneg %p306
        $region98: #{custom_transformer_forward.6} parent=71 // pred_check_branch
          %500 = sbr.rel (%p498) target = $region100
        $region99: #{custom_transformer_forward.6} parent=71 // pred_region
          %502 = dma.done [#allocation11], 16
        $region100: #{custom_transformer_forward.6} parent=71 // pred_fallthru
          _
        %p503 = scmp.lt.s32.totalorder %s28, 1
        %s504 = scalar_select %p503, %s28, 1
        %s505 = smul.addr %s504, 8
        %s506 = scalar_lea.vmem %s0, %s505
        %p507 = pneg %p49
        %p508 = pneg %p46
        %p509 = scmp.lt.s32.totalorder %s28, 1
        %s510 = scalar_select %p509, %s28, 1
        %s511 = smul.addr %s510, 8
        %s512 = scalar_lea.vmem %s1, %s511
        %p513 = pneg %p75
        %p514 = pneg %p72
        %p515 = pneg %p96
        %p516 = pneg %p93
        %p517 = pneg %p117
        %p518 = pneg %p114
        %p519 = pneg %p138
        %p520 = pneg %p135
        %p521 = pneg %p159
        %p522 = pneg %p156
        %p523 = pneg %p180
        %p524 = pneg %p177
        %p525 = pneg %p201
        %p526 = pneg %p198
        %p527 = pneg %p222
        %p528 = pneg %p219
        %p529 = pneg %p243
        %p530 = pneg %p240
        %p531 = pneg %p264
        %p532 = pneg %p261
        %p533 = pneg %p285
        %p534 = pneg %p282
        %p535 = pneg %p306
        %p536 = pneg %p303
        %p537 = pneg %p332
        %p538 = pneg %p329
        %p539 = scmp.lt.s32.totalorder %s28, 1
        %s540 = scalar_select %p539, %s28, 1
        %s541 = smul.addr %s540, 8
        %s542 = scalar_lea.vmem %s13, %s541
        %p543 = scmp.lt.s32.totalorder %s28, 1
        %s544 = scalar_select %p543, %s28, 1
        %s545 = smul.addr %s544, 8
        %s546 = scalar_lea.vmem %s0, %s545
        %p547 = scmp.lt.s32.totalorder %s28, 1
        %s548 = scalar_select %p547, %s28, 1
        %s549 = smul.addr %s548, 8
        %s550 = scalar_lea.vmem %s1, %s549
        %p551 = scmp.lt.s32.totalorder %s28, 1
        %s552 = scalar_select %p551, %s28, 1
        %s553 = smul.addr %s552, 8
        %s554 = scalar_lea.vmem %s13, %s553
        %v556 = vld [vmem:[%s546] sm:$0xff]
        %v557 = vld [vmem:[%s550] sm:$0xff]
        %vm558 = vcmask 261120
        %v559 = vsel %vm558, %v556, 0.0
        %560 = vadd.xlane.f32.xlu0 %v559
        %v561 = vpop.xlane.xlu0 %560
        %562 = vadd.xlane.f32.xlu0 %v557
        %v563 = vpop.xlane.xlu0 %562
        %v564 = vadd.f32 %v561, %v563
        %v565 = vmul.f32 %v564, 0.00625
        %v566 = vsub.f32 %v556, %v565
        %v567 = vsub.f32 %v557, %v565
        %v568 = vmul.f32 %v566, %v566
        %v569 = vsel %vm558, %v568, 0.0
        %570 = vadd.xlane.f32.xlu0 %v569
        %v571 = vpop.xlane.xlu0 %570
        %v572 = vmul.f32 %v567, %v567
        %573 = vadd.xlane.f32.xlu0 %v572
        %v574 = vpop.xlane.xlu0 %573
        %v575 = vadd.f32 %v571, %v574
        %v576 = vmul.f32 %v575, 0.00625
        %v577 = vadd.f32 %v576, 1e-05
        %v578 = vrsqrt.pop %v577
        %v579 = vmul.f32 %v578, %v577
        %v580 = vmul.f32 %v579, %v578
        %v581 = vmul.f32 0.5, %v580
        %v582 = vsub.f32 1.5, %v581
        %v583 = vmul.f32 %v578, %v582
        %vm584 = vweird.f32 %v577
        %vm585 = vweird.f32 %v578
        %vm586 = vmor %vm584, %vm585
        %v587 = vsel %vm586, %v578, %v583
        %v588 = vmul.f32 %v566, %v587
        %v589 = vld [vmem:[%s2] sm:$0x1]
        %v591 = vperm.slane %v589, 0
        %v593 = vmul.f32 %v588, %v591
        %v594 = vld [vmem:[#allocation4] sm:$0x1]
        %v596 = vperm.slane %v594, 0
        %v598 = vadd.f32 %v593, %v596
        %v599 = vpack.c.bf16 %v598, %v598
        %v600 = vmul.f32 %v567, %v587
        %v601 = vld [vmem:[#allocation2] sm:$0x1]
        %v603 = vperm.slane %v601, 0
        %v605 = vmul.f32 %v600, %v603
        %v606 = vld [vmem:[#allocation6] sm:$0x1]
        %v608 = vperm.slane %v606, 0
        %v610 = vadd.f32 %v605, %v608
        %v611 = vpack.c.bf16 %v610, %v610
        %v612 = vld [vmem:[%s6] sm:$0xf]
        %v613 = vld [vmem:[%s6 + $0x4] sm:$0xf]
        %v614 = vld [vmem:[%s6 + $0x8] sm:$0xf]
        %v615 = vld [vmem:[%s6 + $0xc] sm:$0xf]
        %v616 = vld [vmem:[%s7] sm:$0xf]
        %v617 = vld [vmem:[%s7 + $0x4] sm:$0xf]
        %v618 = vld [vmem:[%s7 + $0x8] sm:$0xf]
        %v619 = vld [vmem:[%s7 + $0xc] sm:$0xf]
        %v620 = vld [vmem:[%s7 + $0x10] sm:$0xf]
        %v621 = vld [vmem:[%s7 + $0x14] sm:$0xf]
        %v622 = vld [vmem:[%s7 + $0x18] sm:$0xf]
        %v623 = vld [vmem:[%s7 + $0x1c] sm:$0xf]
        %v624 = vld [vmem:[%s7 + $0x20] sm:$0xf]
        %v625 = vld [vmem:[%s7 + $0x24] sm:$0xf]
        %v626 = vld [vmem:[%s7 + $0x28] sm:$0xf]
        %v627 = vld [vmem:[%s7 + $0x2c] sm:$0xf]
        %v628 = vld [vmem:[%s7 + $0x30] sm:$0xf]
        %v629 = vld [vmem:[%s7 + $0x34] sm:$0xf]
        %v630 = vld [vmem:[%s7 + $0x38] sm:$0xf]
        %v631 = vld [vmem:[%s7 + $0x3c] sm:$0xf]
        %v648 = vunpack.c.l.b16 %v616
        %v649 = vunpack.c.l.b16 %v617
        %v650 = vunpack.c.l.b16 %v618
        %v651 = vunpack.c.l.b16 %v619
        %v652 = vunpack.c.l.b16 %v620
        %v653 = vunpack.c.l.b16 %v621
        %v654 = vunpack.c.l.b16 %v622
        %v655 = vunpack.c.l.b16 %v623
        %v656 = vunpack.c.l.b16 %v624
        %v657 = vunpack.c.l.b16 %v625
        %v658 = vunpack.c.l.b16 %v626
        %v659 = vunpack.c.l.b16 %v627
        %v660 = vunpack.c.l.b16 %v628
        %v661 = vunpack.c.l.b16 %v629
        %v662 = vunpack.c.l.b16 %v630
        %v663 = vunpack.c.l.b16 %v631
        %v664 = vpack.c.b16 %v649, %v648
        %v665 = vpack.c.b16 %v651, %v650
        %v666 = vpack.c.b16 %v653, %v652
        %v667 = vpack.c.b16 %v655, %v654
        %v668 = vpack.c.b16 %v657, %v656
        %v669 = vpack.c.b16 %v659, %v658
        %v670 = vpack.c.b16 %v661, %v660
        %v671 = vpack.c.b16 %v663, %v662
        %680 = vmatpush.bf16.msra.mxu0 %v671
        %681 = vmatpush.bf16.msra.mxu0 %v670
        %682 = vmatpush.bf16.msra.mxu0 %v669
        %683 = vmatpush.bf16.msra.mxu0 %v668
        %684 = vmatpush.bf16.msra.mxu0 %v667
        %685 = vmatpush.bf16.msra.mxu0 %v666
        %686 = vmatpush.bf16.msra.mxu0 %v665
        %687 = vmatpush.bf16.msra.mxu0 %v664
        %688 = vmatmul.bf16.gmra.mxu0 %v611
        %v689 = vpop.f32.mrf.mxu0
        %v690 = vadd.f32 0.0, %v689
        %v691 = vpop.f32.mrf.mxu0
        %692 = vdwg.mxu0
        %v697 = vunpack.c.l.b16 %v612
        %v698 = vunpack.c.l.b16 %v613
        %v699 = vunpack.c.l.b16 %v614
        %v700 = vunpack.c.l.b16 %v615
        %v701 = vpack.c.b16 %v698, %v697
        %v702 = vpack.c.b16 %v700, %v699
        %v706 = vsel %vm558, %v599, 0
        %708 = vmatpush.bf16.msra.mxu0 0
        %709 = vmatpush.bf16.msra.mxu0 0
        %710 = vmatpush.bf16.msra.mxu0 0
        %711 = vmatpush.bf16.msra.mxu0 0
        %712 = vmatpush.bf16.msra.mxu0 0
        %713 = vmatpush.bf16.msra.mxu0 0
        %714 = vmatpush.bf16.msra.mxu0 %v702
        %715 = vmatpush.bf16.msra.mxu0 %v701
        %716 = vmatmul.bf16.gmra.mxu0 %v706
        %v717 = vpop.f32.mrf.mxu0
        %v718 = vadd.f32 %v690, %v717
        %v719 = vpop.f32.mrf.mxu0
        %720 = vdwg.mxu0
        %v721 = vld [vmem:[#allocation7] sm:$0x1]
        %v723 = vperm.slane %v721, 0
        %v725 = vadd.f32 %v718, %v723
        %v726 = vmax.f32 %v725, 0.0
        %v727 = vpack.c.bf16 %v726, %v726
        %v728 = vld [vmem:[%s9] sm:$0xf]
        %v729 = vld [vmem:[%s9 + $0x4] sm:$0xf]
        %v730 = vld [vmem:[%s9 + $0x8] sm:$0xf]
        %v731 = vld [vmem:[%s9 + $0xc] sm:$0xf]
        %v732 = vld [vmem:[%s9 + $0x10] sm:$0xf]
        %v733 = vld [vmem:[%s9 + $0x14] sm:$0xf]
        %v734 = vld [vmem:[%s9 + $0x18] sm:$0xf]
        %v735 = vld [vmem:[%s9 + $0x1c] sm:$0xf]
        %v736 = vld [vmem:[#allocation9] sm:$0x1]
        %v738 = vperm.slane %v736, 0
        %v748 = vunpack.c.l.b16 %v728
        %v749 = vunpack.c.l.b16 %v729
        %v750 = vunpack.c.l.b16 %v730
        %v751 = vunpack.c.l.b16 %v731
        %v752 = vunpack.c.l.b16 %v732
        %v753 = vunpack.c.l.b16 %v733
        %v754 = vunpack.c.l.b16 %v734
        %v755 = vunpack.c.l.b16 %v735
        %v756 = vpack.c.b16 %v749, %v748
        %v757 = vpack.c.b16 %v751, %v750
        %v758 = vpack.c.b16 %v753, %v752
        %v759 = vpack.c.b16 %v755, %v754
        %vm764 = vcmask 523264
        %v766 = vsel %vm764, %v727, 0
        %768 = vmatpush.bf16.msra.mxu0 0
        %769 = vmatpush.bf16.msra.mxu0 0
        %770 = vmatpush.bf16.msra.mxu0 0
        %771 = vmatpush.bf16.msra.mxu0 0
        %772 = vmatpush.bf16.msra.mxu0 %v759
        %773 = vmatpush.bf16.msra.mxu0 %v758
        %774 = vmatpush.bf16.msra.mxu0 %v757
        %775 = vmatpush.bf16.msra.mxu0 %v756
        %776 = vmatmul.bf16.gmra.mxu0 %v766
        %v777 = vpop.f32.mrf.mxu0
        %v778 = vadd.f32 %v738, %v777
        %v779 = vpop.f32.mrf.mxu0
        %780 = vdwg.mxu0
        %v781 = vsel %vm558, %v778, 0.0
        %782 = vadd.xlane.f32.xlu0 %v781
        %v783 = vpop.xlane.xlu0 %782
        %v784 = vrcp.pop 32.0
        %v785 = vmul.f32 32.0, %v784
        %v786 = vsub.f32 1.0, %v785
        %v787 = vmul.f32 %v784, %v786
        %v788 = vadd.f32 %v784, %v787
        %vm789 = vweird.f32 %v784
        %v790 = vsel %vm789, %v784, %v788
        %v791 = vmul.f32 %v783, %v790
        %v792 = vsub.f32 %v778, %v791
        %v793 = vmul.f32 %v792, %v792
        %v794 = vsel %vm558, %v793, 0.0
        %795 = vadd.xlane.f32.xlu0 %v794
        %v796 = vpop.xlane.xlu0 %795
        %v797 = vmul.f32 %v796, %v790
        %v798 = vadd.f32 %v797, 1e-05
        %v799 = vrsqrt.pop %v798
        %v800 = vmul.f32 %v799, %v798
        %v801 = vmul.f32 %v800, %v799
        %v802 = vmul.f32 0.5, %v801
        %v803 = vsub.f32 1.5, %v802
        %v804 = vmul.f32 %v799, %v803
        %vm805 = vweird.f32 %v798
        %vm806 = vweird.f32 %v799
        %vm807 = vmor %vm805, %vm806
        %v808 = vsel %vm807, %v799, %v804
        %v809 = vmul.f32 %v792, %v808
        %v810 = vld [vmem:[#allocation10] sm:$0x1]
        %v812 = vperm.slane %v810, 0
        %v814 = vmul.f32 %v809, %v812
        %v815 = vld [vmem:[#allocation12] sm:$0x1]
        %v817 = vperm.slane %v815, 0
        %v819 = vadd.f32 %v814, %v817
        %820 = vst.msk [vmem:[%s554] sm:$0xff] %vm558, %v819
        %p821 = scmp.lt.s32.totalorder %s28, 1
        %s822 = scalar_select %p821, %s28, 1
        %s823 = smul.addr %s822, 8
        %s824 = scalar_lea.vmem %s13, %s823
        // Predicated region
        $region101: #{custom_transformer_forward.6} parent=71 // pred_check
          %p825 = pneg %p329
        $region102: #{custom_transformer_forward.6} parent=71 // pred_check_branch
          %827 = sbr.rel (%p825) target = $region104
        $region103: #{custom_transformer_forward.6} parent=71 // pred_region
          _
        $region104: #{custom_transformer_forward.6} parent=71 // pred_fallthru
          _
      $region72: #{custom_transformer_forward.6} parent=5 // pred_fallthru
        _
      %p828 = scmp.le.s32.totalorder 2, %s23
      // Predicated region
      $region105: #{custom_transformer_forward.6} parent=5 // pred_check
        %p829 = pneg %p828
      $region106: #{custom_transformer_forward.6} parent=5 // pred_check_branch
        %831 = sbr.rel (%p829) target = $region108
      $region107: #{custom_transformer_forward.6} parent=5 // pred_region
        %s832 = ssub.s32 %s23, 2
        // Predicated region
        $region109: #{custom_transformer_forward.6} parent=107 // pred_check
          %p833 = pneg %p335
        $region110: #{custom_transformer_forward.6} parent=107 // pred_check_branch
          %835 = sbr.rel (%p833) target = $region112
        $region111: #{custom_transformer_forward.6} parent=107 // pred_region
          %p836 = scmp.lt.s32.totalorder %s29, 1
          %s837 = scalar_select %p836, %s29, 1
          %s838 = smul.addr %s837, 8
          %s839 = scalar_lea.vmem %s13, %s838
        $region112: #{custom_transformer_forward.6} parent=107 // pred_fallthru
          _
      $region108: #{custom_transformer_forward.6} parent=5 // pred_fallthru
        _
    $region6: #{custom_transformer_forward.6} parent=1 // loop_footer
      %s27 = sadd.s32 1, %s23
    $region7: #{custom_transformer_forward.6} parent=1 // loop_footer_branch
      %22 = sbr.rel target = $region3
    $region8: #{custom_transformer_forward.6} parent=1 // loop_exit
      _
    %840 = vsyncpa [#allocation3], 1
    %s841 = scalar_lea.sflag [#allocation3], 1
    %842 = vsyncpa %s841, 1
    %843 = vsyncpa [#allocation5], 1
    %844 = vsyncpa [#allocation8], 1
    %845 = vsyncpa [#allocation11], 1

// kernel: custom_transformer_forward.5
$region0: #{custom_transformer_forward.5}
  #allocation0 [shape = 'u32[]', space=smem, size = 0x4, offset = 0x4, fixed_abs, tag = 'smem constant byte address 0x4 - core index']
  #allocation1 [shape = 'u32[72,128]{1,0:T(1,128)}', space=vmem, size = 0x9000, scoped, tag = 'internal scratch']
  %s0 = inlined_call_operand.vmem [shape: f32[2,8,32], index: 0, kind: input, shape index: {}]
  %s1 = inlined_call_operand.vmem [shape: f32[2,8,32], index: 1, kind: input, shape index: {}]
  %s2 = inlined_call_operand.vmem [shape: f32[8,8], index: 2, kind: input, shape index: {}]
  %s3 = inlined_call_operand.hbm [shape: bf16[32,384], index: 3, kind: input, shape index: {}]
  %s4 = inlined_call_operand.vmem [shape: f32[1,384], index: 4, kind: input, shape index: {}]
  %s5 = inlined_call_operand.vmem [shape: bf16[32,256], index: 5, kind: input, shape index: {}]
  %s6 = inlined_call_operand.vmem [shape: f32[1,256], index: 6, kind: input, shape index: {}]
  %s7 = inlined_call_operand.vmem [shape: f32[2,8,128], index: 7, kind: output, shape index: {}]
  %s8 = sld [smem:[#allocation0]]
  $region65: #{custom_transformer_forward.5} parent=0
    _
  %s10 = ssub.s32 1, %s8
  %s11 = scalar_select 0, %s10, %s8
  $region1: #{custom_transformer_forward.5} parent=0
    #allocation2 [shape = 'u8[24576]{0}', space=vmem, size = 0x6000, scoped, tag = 'input window, operand 3, single buffered']
    #allocation3 [shape = 's32[2]{0}', space=sflag, size = 0x8, scoped, tag = 'scoped memory for custom_transformer_forward.5']
    %12 = vsyncpa [#allocation3], 0
    loop: start=0, step=1, limit=4
    $region2: #{custom_transformer_forward.5} parent=1 // loop_pre_header
      _
    $region3: #{custom_transformer_forward.5} parent=1 // loop_header
      %s14 = sphi 0, %s18
      %p15 = scmp.ge.s32.totalorder %s14, 4
      %s24 = sphi 0, %s26
      %s27 = sphi 0, %s24
      %s28 = sphi 0, %s27
      %s44 = sphi 0, %s28
      %s50 = sphi 0, %s52
      %s53 = sphi 0, %s50
      %s54 = sphi 0, %s53
      %s70 = sphi 0, %s54
      %s74 = sphi 0, %s74
      %s76 = sphi 0, %s74
      %s77 = sphi 0, %s76
      %s91 = sphi 0, %s77
      %s95 = sphi 0, %s95
      %s97 = sphi 0, %s95
      %s98 = sphi 0, %s97
      %s112 = sphi 0, %s98
      %s116 = sphi 0, %s116
      %s118 = sphi 0, %s116
      %s119 = sphi 0, %s118
      %s133 = sphi 0, %s119
      %s137 = sphi 0, %s137
      %s139 = sphi 0, %s137
      %s140 = sphi 0, %s139
      %s154 = sphi 0, %s140
      %s158 = sphi 0, %s158
      %s160 = sphi 0, %s158
      %s161 = sphi 0, %s160
      %s175 = sphi 0, %s161
      %s181 = sphi 0, %s183
      %s184 = sphi 0, %s181
      %s185 = sphi 0, %s184
      %s201 = sphi 0, %s185
    $region4: #{custom_transformer_forward.5} parent=1 // loop_header_branch
      %17 = sbr.rel (%p15) target = $region8
    $region5: #{custom_transformer_forward.5} parent=1 // loop_body
      %s19 = ssub.s32 %s14, 1
      %s20 = ssub.s32 %s14, 2
      %s21 = sadd.s32 %s14, 1
      %s22 = ssub.s32 %s14, %s21
      %p23 = scmp.eq.s32.totalorder %s22, 0
      %s25 = sadd.s32 %s24, 1
      %s26 = scalar_select %p23, %s24, %s25
      %p29 = pneg %p23
      %p30 = scmp.eq.s32.totalorder %s14, 1
      %p31 = por %p29, %p30
      %p32 = scmp.ne.s32.totalorder %s24, %s27
      %p33 = scmp.eq.s32.totalorder %s14, 0
      %p34 = por %p32, %p33
      %p35 = scmp.ne.s32.totalorder %s24, %s27
      %p36 = scmp.eq.s32.totalorder %s19, 1
      %p37 = por %p35, %p36
      %p38 = scmp.ne.s32.totalorder %s27, %s28
      %p39 = scmp.eq.s32.totalorder %s19, 0
      %p40 = por %p38, %p39
      %p41 = scmp.ne.s32.totalorder %s27, %s28
      %p42 = scmp.eq.s32.totalorder %s20, 1
      %p43 = por %p41, %p42
      %p45 = scmp.ne.s32.totalorder %s28, %s44
      %p46 = scmp.eq.s32.totalorder %s20, 0
      %p47 = por %p45, %p46
      %s48 = ssub.s32 %s14, %s21
      %p49 = scmp.eq.s32.totalorder %s48, 0
      %s51 = sadd.s32 %s50, 1
      %s52 = scalar_select %p49, %s50, %s51
      %p55 = pneg %p49
      %p56 = scmp.eq.s32.totalorder %s14, 1
      %p57 = por %p55, %p56
      %p58 = scmp.ne.s32.totalorder %s50, %s53
      %p59 = scmp.eq.s32.totalorder %s14, 0
      %p60 = por %p58, %p59
      %p61 = scmp.ne.s32.totalorder %s50, %s53
      %p62 = scmp.eq.s32.totalorder %s19, 1
      %p63 = por %p61, %p62
      %p64 = scmp.ne.s32.totalorder %s53, %s54
      %p65 = scmp.eq.s32.totalorder %s19, 0
      %p66 = por %p64, %p65
      %p67 = scmp.ne.s32.totalorder %s53, %s54
      %p68 = scmp.eq.s32.totalorder %s20, 1
      %p69 = por %p67, %p68
      %p71 = scmp.ne.s32.totalorder %s54, %s70
      %p72 = scmp.eq.s32.totalorder %s20, 0
      %p73 = por %p71, %p72
      %s75 = sadd.s32 %s74, 1
      %p78 = scmp.eq.s32.totalorder %s14, 1
      %p79 = scmp.ne.s32.totalorder %s74, %s76
      %p80 = scmp.eq.s32.totalorder %s14, 0
      %p81 = por %p79, %p80
      %p82 = scmp.ne.s32.totalorder %s74, %s76
      %p83 = scmp.eq.s32.totalorder %s19, 1
      %p84 = por %p82, %p83
      %p85 = scmp.ne.s32.totalorder %s76, %s77
      %p86 = scmp.eq.s32.totalorder %s19, 0
      %p87 = por %p85, %p86
      %p88 = scmp.ne.s32.totalorder %s76, %s77
      %p89 = scmp.eq.s32.totalorder %s20, 1
      %p90 = por %p88, %p89
      %p92 = scmp.ne.s32.totalorder %s77, %s91
      %p93 = scmp.eq.s32.totalorder %s20, 0
      %p94 = por %p92, %p93
      %s96 = sadd.s32 %s95, 1
      %p99 = scmp.eq.s32.totalorder %s14, 1
      %p100 = scmp.ne.s32.totalorder %s95, %s97
      %p101 = scmp.eq.s32.totalorder %s14, 0
      %p102 = por %p100, %p101
      %p103 = scmp.ne.s32.totalorder %s95, %s97
      %p104 = scmp.eq.s32.totalorder %s19, 1
      %p105 = por %p103, %p104
      %p106 = scmp.ne.s32.totalorder %s97, %s98
      %p107 = scmp.eq.s32.totalorder %s19, 0
      %p108 = por %p106, %p107
      %p109 = scmp.ne.s32.totalorder %s97, %s98
      %p110 = scmp.eq.s32.totalorder %s20, 1
      %p111 = por %p109, %p110
      %p113 = scmp.ne.s32.totalorder %s98, %s112
      %p114 = scmp.eq.s32.totalorder %s20, 0
      %p115 = por %p113, %p114
      %s117 = sadd.s32 %s116, 1
      %p120 = scmp.eq.s32.totalorder %s14, 1
      %p121 = scmp.ne.s32.totalorder %s116, %s118
      %p122 = scmp.eq.s32.totalorder %s14, 0
      %p123 = por %p121, %p122
      %p124 = scmp.ne.s32.totalorder %s116, %s118
      %p125 = scmp.eq.s32.totalorder %s19, 1
      %p126 = por %p124, %p125
      %p127 = scmp.ne.s32.totalorder %s118, %s119
      %p128 = scmp.eq.s32.totalorder %s19, 0
      %p129 = por %p127, %p128
      %p130 = scmp.ne.s32.totalorder %s118, %s119
      %p131 = scmp.eq.s32.totalorder %s20, 1
      %p132 = por %p130, %p131
      %p134 = scmp.ne.s32.totalorder %s119, %s133
      %p135 = scmp.eq.s32.totalorder %s20, 0
      %p136 = por %p134, %p135
      %s138 = sadd.s32 %s137, 1
      %p141 = scmp.eq.s32.totalorder %s14, 1
      %p142 = scmp.ne.s32.totalorder %s137, %s139
      %p143 = scmp.eq.s32.totalorder %s14, 0
      %p144 = por %p142, %p143
      %p145 = scmp.ne.s32.totalorder %s137, %s139
      %p146 = scmp.eq.s32.totalorder %s19, 1
      %p147 = por %p145, %p146
      %p148 = scmp.ne.s32.totalorder %s139, %s140
      %p149 = scmp.eq.s32.totalorder %s19, 0
      %p150 = por %p148, %p149
      %p151 = scmp.ne.s32.totalorder %s139, %s140
      %p152 = scmp.eq.s32.totalorder %s20, 1
      %p153 = por %p151, %p152
      %p155 = scmp.ne.s32.totalorder %s140, %s154
      %p156 = scmp.eq.s32.totalorder %s20, 0
      %p157 = por %p155, %p156
      %s159 = sadd.s32 %s158, 1
      %p162 = scmp.eq.s32.totalorder %s14, 1
      %p163 = scmp.ne.s32.totalorder %s158, %s160
      %p164 = scmp.eq.s32.totalorder %s14, 0
      %p165 = por %p163, %p164
      %p166 = scmp.ne.s32.totalorder %s158, %s160
      %p167 = scmp.eq.s32.totalorder %s19, 1
      %p168 = por %p166, %p167
      %p169 = scmp.ne.s32.totalorder %s160, %s161
      %p170 = scmp.eq.s32.totalorder %s19, 0
      %p171 = por %p169, %p170
      %p172 = scmp.ne.s32.totalorder %s160, %s161
      %p173 = scmp.eq.s32.totalorder %s20, 1
      %p174 = por %p172, %p173
      %p176 = scmp.ne.s32.totalorder %s161, %s175
      %p177 = scmp.eq.s32.totalorder %s20, 0
      %p178 = por %p176, %p177
      %s179 = ssub.s32 %s14, %s21
      %p180 = scmp.eq.s32.totalorder %s179, 0
      %s182 = sadd.s32 %s181, 1
      %s183 = scalar_select %p180, %s181, %s182
      %p186 = pneg %p180
      %p187 = scmp.eq.s32.totalorder %s14, 1
      %p188 = por %p186, %p187
      %p189 = scmp.ne.s32.totalorder %s181, %s184
      %p190 = scmp.eq.s32.totalorder %s14, 0
      %p191 = por %p189, %p190
      %p192 = scmp.ne.s32.totalorder %s181, %s184
      %p193 = scmp.eq.s32.totalorder %s19, 1
      %p194 = por %p192, %p193
      %p195 = scmp.ne.s32.totalorder %s184, %s185
      %p196 = scmp.eq.s32.totalorder %s19, 0
      %p197 = por %p195, %p196
      %p198 = scmp.ne.s32.totalorder %s184, %s185
      %p199 = scmp.eq.s32.totalorder %s20, 1
      %p200 = por %p198, %p199
      %p202 = scmp.ne.s32.totalorder %s185, %s201
      %p203 = scmp.eq.s32.totalorder %s20, 0
      %p204 = por %p202, %p203
      %p205 = scmp.le.s32.totalorder 1, %s14
      %p206 = scmp.lt.s32.totalorder %s14, 3
      %p207 = pnand %p205, %p206
      %p208 = pneg %p207
      // Predicated region
      $region9: #{custom_transformer_forward.5} parent=5 // pred_check
        _
      $region10: #{custom_transformer_forward.5} parent=5 // pred_check_branch
        %210 = sbr.rel (%p207) target = $region12
      $region11: #{custom_transformer_forward.5} parent=5 // pred_region
        %s211 = ssub.s32 %s14, 1
        // Predicated region
        $region13: #{custom_transformer_forward.5} parent=11 // pred_check
          %p212 = pneg %p87
        $region14: #{custom_transformer_forward.5} parent=11 // pred_check_branch
          %214 = sbr.rel (%p212) target = $region16
        $region15: #{custom_transformer_forward.5} parent=11 // pred_region
          _
        $region16: #{custom_transformer_forward.5} parent=11 // pred_fallthru
          _
        // Predicated region
        $region17: #{custom_transformer_forward.5} parent=11 // pred_check
          %p215 = pneg %p108
        $region18: #{custom_transformer_forward.5} parent=11 // pred_check_branch
          %217 = sbr.rel (%p215) target = $region20
        $region19: #{custom_transformer_forward.5} parent=11 // pred_region
          %219 = vsyncadd [#allocation3], 0
          %s220 = sshll.u32 %s3, 4
          %s221 = int_to_ptr.hbm [resolvable:$true] %s220
          %s222 = sshll.u32 [#allocation2], 4
          %s223 = int_to_ptr.vmem [resolvable:$true] %s222
          %228 = dma.hbm_to_vmem [thread:$0]  %s221, 768, %s223, [#allocation3], 192, 192, 12
        $region20: #{custom_transformer_forward.5} parent=11 // pred_fallthru
          _
        // Predicated region
        $region21: #{custom_transformer_forward.5} parent=11 // pred_check
          %p229 = pneg %p129
        $region22: #{custom_transformer_forward.5} parent=11 // pred_check_branch
          %231 = sbr.rel (%p229) target = $region24
        $region23: #{custom_transformer_forward.5} parent=11 // pred_region
          _
        $region24: #{custom_transformer_forward.5} parent=11 // pred_fallthru
          _
        // Predicated region
        $region25: #{custom_transformer_forward.5} parent=11 // pred_check
          %p232 = pneg %p150
        $region26: #{custom_transformer_forward.5} parent=11 // pred_check_branch
          %234 = sbr.rel (%p232) target = $region28
        $region27: #{custom_transformer_forward.5} parent=11 // pred_region
          _
        $region28: #{custom_transformer_forward.5} parent=11 // pred_fallthru
          _
        // Predicated region
        $region29: #{custom_transformer_forward.5} parent=11 // pred_check
          %p235 = pneg %p171
        $region30: #{custom_transformer_forward.5} parent=11 // pred_check_branch
          %237 = sbr.rel (%p235) target = $region32
        $region31: #{custom_transformer_forward.5} parent=11 // pred_region
          _
        $region32: #{custom_transformer_forward.5} parent=11 // pred_fallthru
          _
      $region12: #{custom_transformer_forward.5} parent=5 // pred_fallthru
        _
      %p238 = scmp.lt.s32.totalorder %s14, 2
      // Predicated region
      $region33: #{custom_transformer_forward.5} parent=5 // pred_check
        %p239 = pneg %p238
      $region34: #{custom_transformer_forward.5} parent=5 // pred_check_branch
        %241 = sbr.rel (%p239) target = $region36
      $region35: #{custom_transformer_forward.5} parent=5 // pred_region
        // Predicated region
        $region37: #{custom_transformer_forward.5} parent=35 // pred_check
          %p242 = pneg %p34
        $region38: #{custom_transformer_forward.5} parent=35 // pred_check_branch
          %244 = sbr.rel (%p242) target = $region40
        $region39: #{custom_transformer_forward.5} parent=35 // pred_region
          %p245 = scmp.lt.s32.totalorder %s14, 1
          %s246 = scalar_select %p245, %s14, 1
          %s247 = smul.addr %s246, 8
          %s248 = scalar_lea.vmem %s0, %s247
        $region40: #{custom_transformer_forward.5} parent=35 // pred_fallthru
          _
        // Predicated region
        $region41: #{custom_transformer_forward.5} parent=35 // pred_check
          %p249 = pneg %p60
        $region42: #{custom_transformer_forward.5} parent=35 // pred_check_branch
          %251 = sbr.rel (%p249) target = $region44
        $region43: #{custom_transformer_forward.5} parent=35 // pred_region
          %p252 = scmp.lt.s32.totalorder %s14, 1
          %s253 = scalar_select %p252, %s14, 1
          %s254 = smul.addr %s253, 8
          %s255 = scalar_lea.vmem %s1, %s254
        $region44: #{custom_transformer_forward.5} parent=35 // pred_fallthru
          _
      $region36: #{custom_transformer_forward.5} parent=5 // pred_fallthru
        _
      %p256 = scmp.le.s32.totalorder 1, %s14
      %p257 = scmp.lt.s32.totalorder %s14, 3
      %p258 = pnand %p256, %p257
      %p259 = pneg %p258
      // Predicated region
      $region45: #{custom_transformer_forward.5} parent=5 // pred_check
        _
      $region46: #{custom_transformer_forward.5} parent=5 // pred_check_branch
        %261 = sbr.rel (%p258) target = $region48
      $region47: #{custom_transformer_forward.5} parent=5 // pred_region
        %s262 = ssub.s32 %s14, 1
        // Predicated region
        $region49: #{custom_transformer_forward.5} parent=47 // pred_check
          %p263 = pneg %p108
        $region50: #{custom_transformer_forward.5} parent=47 // pred_check_branch
          %265 = sbr.rel (%p263) target = $region52
        $region51: #{custom_transformer_forward.5} parent=47 // pred_region
          %267 = dma.done [#allocation3], 768
        $region52: #{custom_transformer_forward.5} parent=47 // pred_fallthru
          _
        %p268 = scmp.lt.s32.totalorder %s19, 1
        %s269 = scalar_select %p268, %s19, 1
        %s270 = smul.addr %s269, 8
        %s271 = scalar_lea.vmem %s0, %s270
        %p272 = pneg %p40
        %p273 = pneg %p37
        %p274 = scmp.lt.s32.totalorder %s19, 1
        %s275 = scalar_select %p274, %s19, 1
        %s276 = smul.addr %s275, 8
        %s277 = scalar_lea.vmem %s1, %s276
        %p278 = pneg %p66
        %p279 = pneg %p63
        %p280 = pneg %p87
        %p281 = pneg %p84
        %p282 = pneg %p108
        %p283 = pneg %p105
        %p284 = pneg %p129
        %p285 = pneg %p126
        %p286 = pneg %p150
        %p287 = pneg %p147
        %p288 = pneg %p171
        %p289 = pneg %p168
        %p290 = pneg %p197
        %p291 = pneg %p194
        %p292 = scmp.lt.s32.totalorder %s19, 1
        %s293 = scalar_select %p292, %s19, 1
        %s294 = smul.addr %s293, 8
        %s295 = scalar_lea.vmem %s7, %s294
        %p296 = scmp.lt.s32.totalorder %s19, 1
        %s297 = scalar_select %p296, %s19, 1
        %s298 = smul.addr %s297, 8
        %s299 = scalar_lea.vmem %s0, %s298
        %p300 = scmp.lt.s32.totalorder %s19, 1
        %s301 = scalar_select %p300, %s19, 1
        %s302 = smul.addr %s301, 8
        %s303 = scalar_lea.vmem %s1, %s302
        %p304 = scmp.lt.s32.totalorder %s19, 1
        %s305 = scalar_select %p304, %s19, 1
        %s306 = smul.addr %s305, 8
        %s307 = scalar_lea.vmem %s7, %s306
        %v309 = vld [vmem:[%s299] sm:$0xff]
        %v310 = vpack.c.bf16 %v309, %v309
        %v311 = vld [vmem:[%s303] sm:$0xff]
        %v312 = vpack.c.bf16 %v311, %v311
        %v313 = vld [vmem:[%s2] sm:$0xff]
        %v314 = vld [vmem:[#allocation2] sm:$0xff]
        %v315 = vld [vmem:[#allocation2 + $0x8] sm:$0xf]
        %v316 = vld [vmem:[#allocation2 + $0xc] sm:$0xff]
        %v317 = vld [vmem:[#allocation2 + $0x14] sm:$0xf]
        %v318 = vld [vmem:[#allocation2 + $0x18] sm:$0xff]
        %v319 = vld [vmem:[#allocation2 + $0x20] sm:$0xf]
        %v320 = vld [vmem:[#allocation2 + $0x24] sm:$0xff]
        %v321 = vld [vmem:[#allocation2 + $0x2c] sm:$0xf]
        %v322 = vld [vmem:[%s4] sm:$0x7]
        %v324 = vperm.slane %v322, 0
        %v325 = vperm.slane %v322, 1
        %v326 = vperm.slane %v322, 2
        %v338 = vunpack.c.l.b16 %v314
        %v339 = vunpack.c.h.b16 %v314
        %v340 = vunpack.c.l.b16 %v315
        %v341 = vunpack.c.l.b16 %v316
        %v342 = vunpack.c.h.b16 %v316
        %v343 = vunpack.c.l.b16 %v317
        %v344 = vunpack.c.l.b16 %v318
        %v345 = vunpack.c.h.b16 %v318
        %v346 = vunpack.c.l.b16 %v319
        %v347 = vunpack.c.l.b16 %v320
        %v348 = vunpack.c.h.b16 %v320
        %v349 = vunpack.c.l.b16 %v321
        %v350 = vpack.c.b16 %v341, %v338
        %v351 = vpack.c.b16 %v342, %v339
        %v352 = vpack.c.b16 %v343, %v340
        %v353 = vpack.c.b16 %v347, %v344
        %v354 = vpack.c.b16 %v348, %v345
        %v355 = vpack.c.b16 %v349, %v346
        %vm362 = vcmask 261120
        %v364 = vsel %vm362, %v310, 0
        %366 = vmatpush.bf16.msra.mxu0 0
        %367 = vmatpush.bf16.msra.mxu0 0
        %368 = vmatpush.bf16.msra.mxu0 0
        %369 = vmatpush.bf16.msra.mxu0 0
        %370 = vmatpush.bf16.msra.mxu0 0
        %371 = vmatpush.bf16.msra.mxu0 0
        %372 = vmatpush.bf16.msra.mxu0 %v353
        %373 = vmatpush.bf16.msra.mxu0 %v350
        %374 = vmatmul.bf16.gmra.mxu0 %v364
        %v375 = vpop.f32.mrf.mxu0
        %v376 = vadd.f32 %v324, %v375
        %v377 = vpop.f32.mrf.mxu0
        %378 = vdwg.mxu0
        %379 = vmatpush.bf16.msra.mxu0 0
        %380 = vmatpush.bf16.msra.mxu0 0
        %381 = vmatpush.bf16.msra.mxu0 0
        %382 = vmatpush.bf16.msra.mxu0 0
        %383 = vmatpush.bf16.msra.mxu0 0
        %384 = vmatpush.bf16.msra.mxu0 0
        %385 = vmatpush.bf16.msra.mxu0 %v354
        %386 = vmatpush.bf16.msra.mxu0 %v351
        %387 = vmatmul.bf16.gmra.mxu0 %v364
        %v388 = vpop.f32.mrf.mxu0
        %v389 = vadd.f32 %v325, %v388
        %v390 = vpop.f32.mrf.mxu0
        %391 = vdwg.mxu0
        %392 = vmatpush.bf16.msra.mxu0 0
        %393 = vmatpush.bf16.msra.mxu0 0
        %394 = vmatpush.bf16.msra.mxu0 0
        %395 = vmatpush.bf16.msra.mxu0 0
        %396 = vmatpush.bf16.msra.mxu0 0
        %397 = vmatpush.bf16.msra.mxu0 0
        %398 = vmatpush.bf16.msra.mxu0 %v355
        %399 = vmatpush.bf16.msra.mxu0 %v352
        %400 = vmatmul.bf16.gmra.mxu0 %v364
        %v401 = vpop.f32.mrf.mxu0
        %v402 = vadd.f32 %v326, %v401
        %v403 = vpop.f32.mrf.mxu0
        %404 = vdwg.mxu0
        %v405 = vpack.c.bf16 %v389, %v376
        %v406 = vpack.c.bf16 %v402, %v402
        %v407 = vld [vmem:[%s5] sm:$0xff]
        %v408 = vld [vmem:[%s5 + $0x8] sm:$0xff]
        %v409 = vld [vmem:[%s5 + $0x10] sm:$0xff]
        %v410 = vld [vmem:[%s5 + $0x18] sm:$0xff]
        %v411 = vld [vmem:[%s6] sm:$0x3]
        %v413 = vperm.slane %v411, 0
        %v414 = vperm.slane %v411, 1
        %v421 = vunpack.c.l.b16 %v407
        %v422 = vunpack.c.h.b16 %v407
        %v423 = vunpack.c.l.b16 %v408
        %v424 = vunpack.c.h.b16 %v408
        %v425 = vunpack.c.l.b16 %v409
        %v426 = vunpack.c.h.b16 %v409
        %v427 = vunpack.c.l.b16 %v410
        %v428 = vunpack.c.h.b16 %v410
        %v429 = vpack.c.b16 %v423, %v421
        %v430 = vpack.c.b16 %v424, %v422
        %v431 = vpack.c.b16 %v427, %v425
        %v432 = vpack.c.b16 %v428, %v426
        %v438 = vsel %vm362, %v312, 0
        %440 = vmatpush.bf16.msra.mxu0 0
        %441 = vmatpush.bf16.msra.mxu0 0
        %442 = vmatpush.bf16.msra.mxu0 0
        %443 = vmatpush.bf16.msra.mxu0 0
        %444 = vmatpush.bf16.msra.mxu0 0
        %445 = vmatpush.bf16.msra.mxu0 0
        %446 = vmatpush.bf16.msra.mxu0 %v431
        %447 = vmatpush.bf16.msra.mxu0 %v429
        %448 = vmatmul.bf16.gmra.mxu0 %v438
        %v449 = vpop.f32.mrf.mxu0
        %v450 = vadd.f32 %v413, %v449
        %v451 = vpop.f32.mrf.mxu0
        %452 = vdwg.mxu0
        %453 = vmatpush.bf16.msra.mxu0 0
        %454 = vmatpush.bf16.msra.mxu0 0
        %455 = vmatpush.bf16.msra.mxu0 0
        %456 = vmatpush.bf16.msra.mxu0 0
        %457 = vmatpush.bf16.msra.mxu0 0
        %458 = vmatpush.bf16.msra.mxu0 0
        %459 = vmatpush.bf16.msra.mxu0 %v432
        %460 = vmatpush.bf16.msra.mxu0 %v430
        %461 = vmatmul.bf16.gmra.mxu0 %v438
        %v462 = vpop.f32.mrf.mxu0
        %v463 = vadd.f32 %v414, %v462
        %v464 = vpop.f32.mrf.mxu0
        %465 = vdwg.mxu0
        %v466 = vpack.c.bf16 %v463, %v450
        %v468 = vunpack.c.l.b16 %v466
        %v469 = vpack.c.b16 %v468, %v468
        %470 = vrot.lane.b32.xlu0 %v469, 32
        %v471 = vpop.permute.xlu0 %470
        %v474 = vsel %vm362, %v405, %v471
        %v476 = vrot.slane %v405, 4
        %v478 = vunpack.c.l.bf16 %v476
        %v479 = vrot.slane %v466, 4
        %v481 = vunpack.c.l.bf16 %v479
        %v482 = vadd.f32 %v478, %v481
        %v483 = vpack.c.bf16 %v482, %v482
        %v484 = vunpack.c.h.b16 %v405
        %v485 = vpack.c.b16 %v484, %v484
        %486 = vrot.lane.b32.xlu0 %v485, 32
        %v487 = vpop.permute.xlu0 %486
        %v490 = vsel %vm362, %v483, %v487
        %vm491 = vcmask 523264
        %v492 = vsel %vm491, %v474, 0
        %v494 = vsel %vm491, %v490, 0
        %496 = vmatpush.bf16.xpose.msra.mxu0 0
        %497 = vmatpush.bf16.xpose.msra.mxu0 0
        %498 = vmatpush.bf16.xpose.msra.mxu0 0
        %499 = vmatpush.bf16.xpose.msra.mxu0 0
        %500 = vmatpush.bf16.xpose.msra.mxu0 0
        %501 = vmatpush.bf16.xpose.msra.mxu0 0
        %502 = vmatpush.bf16.xpose.msra.mxu0 0
        %503 = vmatpush.bf16.xpose.msra.mxu0 %v494
        %504 = vmatmul.bf16.gmra.mxu0 %v492
        %v505 = vpop.f32.mrf.mxu0
        %v506 = vadd.f32 %v313, %v505
        %v507 = vpop.f32.mrf.mxu0
        %508 = vdwg.mxu0
        %vm509 = vcmask 64512
        %v510 = vsel %vm509, %v506, -inf
        %511 = vmax.xlane.f32.xlu0 %v510
        %v512 = vpop.xlane.xlu0 %511
        %v513 = vsub.f32 %v506, %v512
        %v514 = vmul.f32 %v513, 1.442695
        %v515 = vpow.pop %v514
        %v516 = vsel %vm509, %v515, 0.0
        %517 = vadd.xlane.f32.xlu0 %v516
        %v518 = vpop.xlane.xlu0 %517
        %v519 = vrcp.pop %v518
        %v520 = vmul.f32 %v515, %v519
        %v521 = vpack.c.bf16 %v520, %v520
        %v523 = vsel %vm509, %v521, 0
        %vm525 = vcmask 1043456
        %v527 = vsel %vm525, %v406, 0
        %529 = vmatpush.bf16.msra.mxu0 0
        %530 = vmatpush.bf16.msra.mxu0 0
        %531 = vmatpush.bf16.msra.mxu0 0
        %532 = vmatpush.bf16.msra.mxu0 0
        %533 = vmatpush.bf16.msra.mxu0 0
        %534 = vmatpush.bf16.msra.mxu0 0
        %535 = vmatpush.bf16.msra.mxu0 0
        %536 = vmatpush.bf16.msra.mxu0 %v527
        %537 = vmatmul.bf16.gmra.mxu0 %v523
        %v538 = vpop.f32.mrf.mxu0
        %v539 = vadd.f32 0.0, %v538
        %v540 = vpop.f32.mrf.mxu0
        %541 = vdwg.mxu0
        %542 = vst.msk [vmem:[%s307] sm:$0xff] %vm362, %v539
        %v543 = vunpack.c.l.b16 %v405
        %v544 = vpack.c.b16 %v543, %v543
        %545 = vrot.lane.b32.xlu0 %v544, 96
        %v546 = vpop.permute.xlu0 %545
        %v549 = vsel %vm362, %v546, %v466
        %550 = vrot.lane.b32.xlu0 %v405, 96
        %v551 = vpop.permute.xlu0 %550
        %v552 = vrot.slane %v551, 4
        %v554 = vunpack.c.l.bf16 %v552
        %555 = vrot.lane.b32.xlu0 %v466, 96
        %v556 = vpop.permute.xlu0 %555
        %v557 = vrot.slane %v556, 4
        %v559 = vunpack.c.l.bf16 %v557
        %v560 = vadd.f32 %v554, %v559
        %v561 = vpack.c.bf16 %v560, %v560
        %v564 = vsel %vm362, %v561, %v485
        %v565 = vsel %vm491, %v549, 0
        %v567 = vsel %vm491, %v564, 0
        %569 = vmatpush.bf16.xpose.msra.mxu0 0
        %570 = vmatpush.bf16.xpose.msra.mxu0 0
        %571 = vmatpush.bf16.xpose.msra.mxu0 0
        %572 = vmatpush.bf16.xpose.msra.mxu0 0
        %573 = vmatpush.bf16.xpose.msra.mxu0 0
        %574 = vmatpush.bf16.xpose.msra.mxu0 0
        %575 = vmatpush.bf16.xpose.msra.mxu0 0
        %576 = vmatpush.bf16.xpose.msra.mxu0 %v567
        %577 = vmatmul.bf16.gmra.mxu0 %v565
        %v578 = vpop.f32.mrf.mxu0
        %v579 = vadd.f32 %v313, %v578
        %v580 = vpop.f32.mrf.mxu0
        %581 = vdwg.mxu0
        %v582 = vsel %vm509, %v579, -inf
        %583 = vmax.xlane.f32.xlu0 %v582
        %v584 = vpop.xlane.xlu0 %583
        %v585 = vsub.f32 %v579, %v584
        %v586 = vmul.f32 %v585, 1.442695
        %v587 = vpow.pop %v586
        %v588 = vsel %vm509, %v587, 0.0
        %589 = vadd.xlane.f32.xlu0 %v588
        %v590 = vpop.xlane.xlu0 %589
        %v591 = vrcp.pop %v590
        %v592 = vmul.f32 %v587, %v591
        %v593 = vpack.c.bf16 %v592, %v592
        %v595 = vunpack.c.l.b16 %v406
        %v596 = vpack.c.b16 %v595, %v595
        %597 = vrot.lane.b32.xlu0 %v596, 96
        %v598 = vpop.permute.xlu0 %597
        %v600 = vsel %vm509, %v593, 0
        %v603 = vsel %vm525, %v598, 0
        %605 = vmatpush.bf16.msra.mxu0 0
        %606 = vmatpush.bf16.msra.mxu0 0
        %607 = vmatpush.bf16.msra.mxu0 0
        %608 = vmatpush.bf16.msra.mxu0 0
        %609 = vmatpush.bf16.msra.mxu0 0
        %610 = vmatpush.bf16.msra.mxu0 0
        %611 = vmatpush.bf16.msra.mxu0 0
        %612 = vmatpush.bf16.msra.mxu0 %v603
        %613 = vmatmul.bf16.gmra.mxu0 %v600
        %v614 = vpop.f32.mrf.mxu0
        %v615 = vadd.f32 0.0, %v614
        %v616 = vpop.f32.mrf.mxu0
        %617 = vdwg.mxu0
        %619 = vrot.lane.b32.xlu0 %v615, 32
        %v620 = vpop.permute.xlu0 %619
        %vm622 = vcmask 523520
        %623 = vst.msk [vmem:[%s307] sm:$0xff] %vm622, %v620
        %624 = vrot.lane.b32.xlu0 %v544, 64
        %v625 = vpop.permute.xlu0 %624
        %626 = vrot.lane.b32.xlu0 %v469, 96
        %v627 = vpop.permute.xlu0 %626
        %v630 = vsel %vm362, %v625, %v627
        %631 = vrot.lane.b32.xlu0 %v405, 64
        %v632 = vpop.permute.xlu0 %631
        %v633 = vrot.slane %v632, 4
        %v635 = vunpack.c.l.bf16 %v633
        %636 = vrot.lane.b32.xlu0 %v466, 64
        %v637 = vpop.permute.xlu0 %636
        %v638 = vrot.slane %v637, 4
        %v640 = vunpack.c.l.bf16 %v638
        %v641 = vadd.f32 %v635, %v640
        %v642 = vpack.c.bf16 %v641, %v641
        %643 = vrot.lane.b32.xlu0 %v485, 96
        %v644 = vpop.permute.xlu0 %643
        %v647 = vsel %vm362, %v642, %v644
        %v648 = vsel %vm491, %v630, 0
        %v650 = vsel %vm491, %v647, 0
        %652 = vmatpush.bf16.xpose.msra.mxu0 0
        %653 = vmatpush.bf16.xpose.msra.mxu0 0
        %654 = vmatpush.bf16.xpose.msra.mxu0 0
        %655 = vmatpush.bf16.xpose.msra.mxu0 0
        %656 = vmatpush.bf16.xpose.msra.mxu0 0
        %657 = vmatpush.bf16.xpose.msra.mxu0 0
        %658 = vmatpush.bf16.xpose.msra.mxu0 0
        %659 = vmatpush.bf16.xpose.msra.mxu0 %v650
        %660 = vmatmul.bf16.gmra.mxu0 %v648
        %v661 = vpop.f32.mrf.mxu0
        %v662 = vadd.f32 %v313, %v661
        %v663 = vpop.f32.mrf.mxu0
        %664 = vdwg.mxu0
        %v665 = vsel %vm509, %v662, -inf
        %666 = vmax.xlane.f32.xlu0 %v665
        %v667 = vpop.xlane.xlu0 %666
        %v668 = vsub.f32 %v662, %v667
        %v669 = vmul.f32 %v668, 1.442695
        %v670 = vpow.pop %v669
        %v671 = vsel %vm509, %v670, 0.0
        %672 = vadd.xlane.f32.xlu0 %v671
        %v673 = vpop.xlane.xlu0 %672
        %v674 = vrcp.pop %v673
        %v675 = vmul.f32 %v670, %v674
        %v676 = vpack.c.bf16 %v675, %v675
        %677 = vrot.lane.b32.xlu0 %v596, 64
        %v678 = vpop.permute.xlu0 %677
        %v680 = vsel %vm509, %v676, 0
        %v683 = vsel %vm525, %v678, 0
        %685 = vmatpush.bf16.msra.mxu0 0
        %686 = vmatpush.bf16.msra.mxu0 0
        %687 = vmatpush.bf16.msra.mxu0 0
        %688 = vmatpush.bf16.msra.mxu0 0
        %689 = vmatpush.bf16.msra.mxu0 0
        %690 = vmatpush.bf16.msra.mxu0 0
        %691 = vmatpush.bf16.msra.mxu0 0
        %692 = vmatpush.bf16.msra.mxu0 %v683
        %693 = vmatmul.bf16.gmra.mxu0 %v680
        %v694 = vpop.f32.mrf.mxu0
        %v695 = vadd.f32 0.0, %v694
        %v696 = vpop.f32.mrf.mxu0
        %697 = vdwg.mxu0
        %699 = vrot.lane.b32.xlu0 %v695, 64
        %v700 = vpop.permute.xlu0 %699
        %vm702 = vcmask 785920
        %703 = vst.msk [vmem:[%s307] sm:$0xff] %vm702, %v700
        %704 = vrot.lane.b32.xlu0 %v544, 32
        %v705 = vpop.permute.xlu0 %704
        %706 = vrot.lane.b32.xlu0 %v469, 64
        %v707 = vpop.permute.xlu0 %706
        %v710 = vsel %vm362, %v705, %v707
        %711 = vrot.lane.b32.xlu0 %v405, 32
        %v712 = vpop.permute.xlu0 %711
        %v713 = vrot.slane %v712, 4
        %v715 = vunpack.c.l.bf16 %v713
        %716 = vrot.lane.b32.xlu0 %v466, 32
        %v717 = vpop.permute.xlu0 %716
        %v718 = vrot.slane %v717, 4
        %v720 = vunpack.c.l.bf16 %v718
        %v721 = vadd.f32 %v715, %v720
        %v722 = vpack.c.bf16 %v721, %v721
        %723 = vrot.lane.b32.xlu0 %v485, 64
        %v724 = vpop.permute.xlu0 %723
        %v727 = vsel %vm362, %v722, %v724
        %v728 = vsel %vm491, %v710, 0
        %v730 = vsel %vm491, %v727, 0
        %732 = vmatpush.bf16.xpose.msra.mxu0 0
        %733 = vmatpush.bf16.xpose.msra.mxu0 0
        %734 = vmatpush.bf16.xpose.msra.mxu0 0
        %735 = vmatpush.bf16.xpose.msra.mxu0 0
        %736 = vmatpush.bf16.xpose.msra.mxu0 0
        %737 = vmatpush.bf16.xpose.msra.mxu0 0
        %738 = vmatpush.bf16.xpose.msra.mxu0 0
        %739 = vmatpush.bf16.xpose.msra.mxu0 %v730
        %740 = vmatmul.bf16.gmra.mxu0 %v728
        %v741 = vpop.f32.mrf.mxu0
        %v742 = vadd.f32 %v313, %v741
        %v743 = vpop.f32.mrf.mxu0
        %744 = vdwg.mxu0
        %v745 = vsel %vm509, %v742, -inf
        %746 = vmax.xlane.f32.xlu0 %v745
        %v747 = vpop.xlane.xlu0 %746
        %v748 = vsub.f32 %v742, %v747
        %v749 = vmul.f32 %v748, 1.442695
        %v750 = vpow.pop %v749
        %v751 = vsel %vm509, %v750, 0.0
        %752 = vadd.xlane.f32.xlu0 %v751
        %v753 = vpop.xlane.xlu0 %752
        %v754 = vrcp.pop %v753
        %v755 = vmul.f32 %v750, %v754
        %v756 = vpack.c.bf16 %v755, %v755
        %757 = vrot.lane.b32.xlu0 %v596, 32
        %v758 = vpop.permute.xlu0 %757
        %v760 = vsel %vm509, %v756, 0
        %v763 = vsel %vm525, %v758, 0
        %765 = vmatpush.bf16.msra.mxu0 0
        %766 = vmatpush.bf16.msra.mxu0 0
        %767 = vmatpush.bf16.msra.mxu0 0
        %768 = vmatpush.bf16.msra.mxu0 0
        %769 = vmatpush.bf16.msra.mxu0 0
        %770 = vmatpush.bf16.msra.mxu0 0
        %771 = vmatpush.bf16.msra.mxu0 0
        %772 = vmatpush.bf16.msra.mxu0 %v763
        %773 = vmatmul.bf16.gmra.mxu0 %v760
        %v774 = vpop.f32.mrf.mxu0
        %v775 = vadd.f32 0.0, %v774
        %v776 = vpop.f32.mrf.mxu0
        %777 = vdwg.mxu0
        %779 = vrot.lane.b32.xlu0 %v775, 96
        %v780 = vpop.permute.xlu0 %779
        %vm782 = vcmask 1048320
        %783 = vst.msk [vmem:[%s307] sm:$0xff] %vm782, %v780
        %p784 = scmp.lt.s32.totalorder %s19, 1
        %s785 = scalar_select %p784, %s19, 1
        %s786 = smul.addr %s785, 8
        %s787 = scalar_lea.vmem %s7, %s786
        // Predicated region
        $region53: #{custom_transformer_forward.5} parent=47 // pred_check
          %p788 = pneg %p194
        $region54: #{custom_transformer_forward.5} parent=47 // pred_check_branch
          %790 = sbr.rel (%p788) target = $region56
        $region55: #{custom_transformer_forward.5} parent=47 // pred_region
          _
        $region56: #{custom_transformer_forward.5} parent=47 // pred_fallthru
          _
      $region48: #{custom_transformer_forward.5} parent=5 // pred_fallthru
        _
      %p791 = scmp.le.s32.totalorder 2, %s14
      // Predicated region
      $region57: #{custom_transformer_forward.5} parent=5 // pred_check
        %p792 = pneg %p791
      $region58: #{custom_transformer_forward.5} parent=5 // pred_check_branch
        %794 = sbr.rel (%p792) target = $region60
      $region59: #{custom_transformer_forward.5} parent=5 // pred_region
        %s795 = ssub.s32 %s14, 2
        // Predicated region
        $region61: #{custom_transformer_forward.5} parent=59 // pred_check
          %p796 = pneg %p200
        $region62: #{custom_transformer_forward.5} parent=59 // pred_check_branch
          %798 = sbr.rel (%p796) target = $region64
        $region63: #{custom_transformer_forward.5} parent=59 // pred_region
          %p799 = scmp.lt.s32.totalorder %s20, 1
          %s800 = scalar_select %p799, %s20, 1
          %s801 = smul.addr %s800, 8
          %s802 = scalar_lea.vmem %s7, %s801
        $region64: #{custom_transformer_forward.5} parent=59 // pred_fallthru
          _
      $region60: #{custom_transformer_forward.5} parent=5 // pred_fallthru
        _
    $region6: #{custom_transformer_forward.5} parent=1 // loop_footer
      %s18 = sadd.s32 1, %s14
    $region7: #{custom_transformer_forward.5} parent=1 // loop_footer_branch
      %13 = sbr.rel target = $region3
    $region8: #{custom_transformer_forward.5} parent=1 // loop_exit
      _
    %803 = vsyncpa [#allocation3], 1
    %s804 = scalar_lea.sflag [#allocation3], 1
    %805 = vsyncpa %s804, 1

// kernel: custom_transformer_forward.8
$region0: #{custom_transformer_forward.8}
  #allocation0 [shape = 'u32[]', space=smem, size = 0x4, offset = 0x4, fixed_abs, tag = 'smem constant byte address 0x4 - core index']
  #allocation1 [shape = 'u32[72,128]{1,0:T(1,128)}', space=vmem, size = 0x9000, scoped, tag = 'internal scratch']
  %s0 = inlined_call_operand.vmem [shape: f32[16,32], index: 0, kind: input, shape index: {}]
  %s1 = inlined_call_operand.vmem [shape: f32[16,128], index: 1, kind: input, shape index: {}]
  %s2 = inlined_call_operand.vmem [shape: f32[1,32], index: 2, kind: input, shape index: {}]
  %s3 = inlined_call_operand.vmem [shape: f32[1,128], index: 3, kind: input, shape index: {}]
  %s4 = inlined_call_operand.vmem [shape: f32[1,32], index: 4, kind: input, shape index: {}]
  %s5 = inlined_call_operand.vmem [shape: f32[1,128], index: 5, kind: input, shape index: {}]
  %s6 = inlined_call_operand.vmem [shape: bf16[32,64], index: 6, kind: input, shape index: {}]
  %s7 = inlined_call_operand.vmem [shape: bf16[128,64], index: 7, kind: input, shape index: {}]
  %s8 = inlined_call_operand.vmem [shape: f32[1,64], index: 8, kind: input, shape index: {}]
  %s9 = inlined_call_operand.vmem [shape: bf16[64,32], index: 9, kind: input, shape index: {}]
  %s10 = inlined_call_operand.vmem [shape: f32[1,32], index: 10, kind: input, shape index: {}]
  %s11 = inlined_call_operand.vmem [shape: f32[1,32], index: 11, kind: input, shape index: {}]
  %s12 = inlined_call_operand.vmem [shape: f32[1,32], index: 12, kind: input, shape index: {}]
  %s13 = inlined_call_operand.vmem [shape: f32[16,32], index: 13, kind: output, shape index: {}]
  %s14 = sld [smem:[#allocation0]]
  $region85: #{custom_transformer_forward.8} parent=0
    _
  %s16 = ssub.s32 1, %s14
  %s17 = scalar_select 0, %s16, %s14
  loop: start=0, step=1, limit=4
  $region2: #{custom_transformer_forward.8} parent=0 // loop_pre_header
    _
  $region3: #{custom_transformer_forward.8} parent=0 // loop_header
    %s19 = sphi 0, %s23
    %p20 = scmp.ge.s32.totalorder %s19, 4
    %s29 = sphi 0, %s31
    %s32 = sphi 0, %s29
    %s33 = sphi 0, %s32
    %s49 = sphi 0, %s33
    %s55 = sphi 0, %s57
    %s58 = sphi 0, %s55
    %s59 = sphi 0, %s58
    %s75 = sphi 0, %s59
    %s79 = sphi 0, %s79
    %s81 = sphi 0, %s79
    %s82 = sphi 0, %s81
    %s96 = sphi 0, %s82
    %s100 = sphi 0, %s100
    %s102 = sphi 0, %s100
    %s103 = sphi 0, %s102
    %s117 = sphi 0, %s103
    %s121 = sphi 0, %s121
    %s123 = sphi 0, %s121
    %s124 = sphi 0, %s123
    %s138 = sphi 0, %s124
    %s142 = sphi 0, %s142
    %s144 = sphi 0, %s142
    %s145 = sphi 0, %s144
    %s159 = sphi 0, %s145
    %s163 = sphi 0, %s163
    %s165 = sphi 0, %s163
    %s166 = sphi 0, %s165
    %s180 = sphi 0, %s166
    %s184 = sphi 0, %s184
    %s186 = sphi 0, %s184
    %s187 = sphi 0, %s186
    %s201 = sphi 0, %s187
    %s205 = sphi 0, %s205
    %s207 = sphi 0, %s205
    %s208 = sphi 0, %s207
    %s222 = sphi 0, %s208
    %s226 = sphi 0, %s226
    %s228 = sphi 0, %s226
    %s229 = sphi 0, %s228
    %s243 = sphi 0, %s229
    %s247 = sphi 0, %s247
    %s249 = sphi 0, %s247
    %s250 = sphi 0, %s249
    %s264 = sphi 0, %s250
    %s268 = sphi 0, %s268
    %s270 = sphi 0, %s268
    %s271 = sphi 0, %s270
    %s285 = sphi 0, %s271
    %s289 = sphi 0, %s289
    %s291 = sphi 0, %s289
    %s292 = sphi 0, %s291
    %s306 = sphi 0, %s292
    %s312 = sphi 0, %s314
    %s315 = sphi 0, %s312
    %s316 = sphi 0, %s315
    %s332 = sphi 0, %s316
  $region4: #{custom_transformer_forward.8} parent=0 // loop_header_branch
    %22 = sbr.rel (%p20) target = $region8
  $region5: #{custom_transformer_forward.8} parent=0 // loop_body
    %s24 = ssub.s32 %s19, 1
    %s25 = ssub.s32 %s19, 2
    %s26 = sadd.s32 %s19, 1
    %s27 = ssub.s32 %s19, %s26
    %p28 = scmp.eq.s32.totalorder %s27, 0
    %s30 = sadd.s32 %s29, 1
    %s31 = scalar_select %p28, %s29, %s30
    %p34 = pneg %p28
    %p35 = scmp.eq.s32.totalorder %s19, 1
    %p36 = por %p34, %p35
    %p37 = scmp.ne.s32.totalorder %s29, %s32
    %p38 = scmp.eq.s32.totalorder %s19, 0
    %p39 = por %p37, %p38
    %p40 = scmp.ne.s32.totalorder %s29, %s32
    %p41 = scmp.eq.s32.totalorder %s24, 1
    %p42 = por %p40, %p41
    %p43 = scmp.ne.s32.totalorder %s32, %s33
    %p44 = scmp.eq.s32.totalorder %s24, 0
    %p45 = por %p43, %p44
    %p46 = scmp.ne.s32.totalorder %s32, %s33
    %p47 = scmp.eq.s32.totalorder %s25, 1
    %p48 = por %p46, %p47
    %p50 = scmp.ne.s32.totalorder %s33, %s49
    %p51 = scmp.eq.s32.totalorder %s25, 0
    %p52 = por %p50, %p51
    %s53 = ssub.s32 %s19, %s26
    %p54 = scmp.eq.s32.totalorder %s53, 0
    %s56 = sadd.s32 %s55, 1
    %s57 = scalar_select %p54, %s55, %s56
    %p60 = pneg %p54
    %p61 = scmp.eq.s32.totalorder %s19, 1
    %p62 = por %p60, %p61
    %p63 = scmp.ne.s32.totalorder %s55, %s58
    %p64 = scmp.eq.s32.totalorder %s19, 0
    %p65 = por %p63, %p64
    %p66 = scmp.ne.s32.totalorder %s55, %s58
    %p67 = scmp.eq.s32.totalorder %s24, 1
    %p68 = por %p66, %p67
    %p69 = scmp.ne.s32.totalorder %s58, %s59
    %p70 = scmp.eq.s32.totalorder %s24, 0
    %p71 = por %p69, %p70
    %p72 = scmp.ne.s32.totalorder %s58, %s59
    %p73 = scmp.eq.s32.totalorder %s25, 1
    %p74 = por %p72, %p73
    %p76 = scmp.ne.s32.totalorder %s59, %s75
    %p77 = scmp.eq.s32.totalorder %s25, 0
    %p78 = por %p76, %p77
    %s80 = sadd.s32 %s79, 1
    %p83 = scmp.eq.s32.totalorder %s19, 1
    %p84 = scmp.ne.s32.totalorder %s79, %s81
    %p85 = scmp.eq.s32.totalorder %s19, 0
    %p86 = por %p84, %p85
    %p87 = scmp.ne.s32.totalorder %s79, %s81
    %p88 = scmp.eq.s32.totalorder %s24, 1
    %p89 = por %p87, %p88
    %p90 = scmp.ne.s32.totalorder %s81, %s82
    %p91 = scmp.eq.s32.totalorder %s24, 0
    %p92 = por %p90, %p91
    %p93 = scmp.ne.s32.totalorder %s81, %s82
    %p94 = scmp.eq.s32.totalorder %s25, 1
    %p95 = por %p93, %p94
    %p97 = scmp.ne.s32.totalorder %s82, %s96
    %p98 = scmp.eq.s32.totalorder %s25, 0
    %p99 = por %p97, %p98
    %s101 = sadd.s32 %s100, 1
    %p104 = scmp.eq.s32.totalorder %s19, 1
    %p105 = scmp.ne.s32.totalorder %s100, %s102
    %p106 = scmp.eq.s32.totalorder %s19, 0
    %p107 = por %p105, %p106
    %p108 = scmp.ne.s32.totalorder %s100, %s102
    %p109 = scmp.eq.s32.totalorder %s24, 1
    %p110 = por %p108, %p109
    %p111 = scmp.ne.s32.totalorder %s102, %s103
    %p112 = scmp.eq.s32.totalorder %s24, 0
    %p113 = por %p111, %p112
    %p114 = scmp.ne.s32.totalorder %s102, %s103
    %p115 = scmp.eq.s32.totalorder %s25, 1
    %p116 = por %p114, %p115
    %p118 = scmp.ne.s32.totalorder %s103, %s117
    %p119 = scmp.eq.s32.totalorder %s25, 0
    %p120 = por %p118, %p119
    %s122 = sadd.s32 %s121, 1
    %p125 = scmp.eq.s32.totalorder %s19, 1
    %p126 = scmp.ne.s32.totalorder %s121, %s123
    %p127 = scmp.eq.s32.totalorder %s19, 0
    %p128 = por %p126, %p127
    %p129 = scmp.ne.s32.totalorder %s121, %s123
    %p130 = scmp.eq.s32.totalorder %s24, 1
    %p131 = por %p129, %p130
    %p132 = scmp.ne.s32.totalorder %s123, %s124
    %p133 = scmp.eq.s32.totalorder %s24, 0
    %p134 = por %p132, %p133
    %p135 = scmp.ne.s32.totalorder %s123, %s124
    %p136 = scmp.eq.s32.totalorder %s25, 1
    %p137 = por %p135, %p136
    %p139 = scmp.ne.s32.totalorder %s124, %s138
    %p140 = scmp.eq.s32.totalorder %s25, 0
    %p141 = por %p139, %p140
    %s143 = sadd.s32 %s142, 1
    %p146 = scmp.eq.s32.totalorder %s19, 1
    %p147 = scmp.ne.s32.totalorder %s142, %s144
    %p148 = scmp.eq.s32.totalorder %s19, 0
    %p149 = por %p147, %p148
    %p150 = scmp.ne.s32.totalorder %s142, %s144
    %p151 = scmp.eq.s32.totalorder %s24, 1
    %p152 = por %p150, %p151
    %p153 = scmp.ne.s32.totalorder %s144, %s145
    %p154 = scmp.eq.s32.totalorder %s24, 0
    %p155 = por %p153, %p154
    %p156 = scmp.ne.s32.totalorder %s144, %s145
    %p157 = scmp.eq.s32.totalorder %s25, 1
    %p158 = por %p156, %p157
    %p160 = scmp.ne.s32.totalorder %s145, %s159
    %p161 = scmp.eq.s32.totalorder %s25, 0
    %p162 = por %p160, %p161
    %s164 = sadd.s32 %s163, 1
    %p167 = scmp.eq.s32.totalorder %s19, 1
    %p168 = scmp.ne.s32.totalorder %s163, %s165
    %p169 = scmp.eq.s32.totalorder %s19, 0
    %p170 = por %p168, %p169
    %p171 = scmp.ne.s32.totalorder %s163, %s165
    %p172 = scmp.eq.s32.totalorder %s24, 1
    %p173 = por %p171, %p172
    %p174 = scmp.ne.s32.totalorder %s165, %s166
    %p175 = scmp.eq.s32.totalorder %s24, 0
    %p176 = por %p174, %p175
    %p177 = scmp.ne.s32.totalorder %s165, %s166
    %p178 = scmp.eq.s32.totalorder %s25, 1
    %p179 = por %p177, %p178
    %p181 = scmp.ne.s32.totalorder %s166, %s180
    %p182 = scmp.eq.s32.totalorder %s25, 0
    %p183 = por %p181, %p182
    %s185 = sadd.s32 %s184, 1
    %p188 = scmp.eq.s32.totalorder %s19, 1
    %p189 = scmp.ne.s32.totalorder %s184, %s186
    %p190 = scmp.eq.s32.totalorder %s19, 0
    %p191 = por %p189, %p190
    %p192 = scmp.ne.s32.totalorder %s184, %s186
    %p193 = scmp.eq.s32.totalorder %s24, 1
    %p194 = por %p192, %p193
    %p195 = scmp.ne.s32.totalorder %s186, %s187
    %p196 = scmp.eq.s32.totalorder %s24, 0
    %p197 = por %p195, %p196
    %p198 = scmp.ne.s32.totalorder %s186, %s187
    %p199 = scmp.eq.s32.totalorder %s25, 1
    %p200 = por %p198, %p199
    %p202 = scmp.ne.s32.totalorder %s187, %s201
    %p203 = scmp.eq.s32.totalorder %s25, 0
    %p204 = por %p202, %p203
    %s206 = sadd.s32 %s205, 1
    %p209 = scmp.eq.s32.totalorder %s19, 1
    %p210 = scmp.ne.s32.totalorder %s205, %s207
    %p211 = scmp.eq.s32.totalorder %s19, 0
    %p212 = por %p210, %p211
    %p213 = scmp.ne.s32.totalorder %s205, %s207
    %p214 = scmp.eq.s32.totalorder %s24, 1
    %p215 = por %p213, %p214
    %p216 = scmp.ne.s32.totalorder %s207, %s208
    %p217 = scmp.eq.s32.totalorder %s24, 0
    %p218 = por %p216, %p217
    %p219 = scmp.ne.s32.totalorder %s207, %s208
    %p220 = scmp.eq.s32.totalorder %s25, 1
    %p221 = por %p219, %p220
    %p223 = scmp.ne.s32.totalorder %s208, %s222
    %p224 = scmp.eq.s32.totalorder %s25, 0
    %p225 = por %p223, %p224
    %s227 = sadd.s32 %s226, 1
    %p230 = scmp.eq.s32.totalorder %s19, 1
    %p231 = scmp.ne.s32.totalorder %s226, %s228
    %p232 = scmp.eq.s32.totalorder %s19, 0
    %p233 = por %p231, %p232
    %p234 = scmp.ne.s32.totalorder %s226, %s228
    %p235 = scmp.eq.s32.totalorder %s24, 1
    %p236 = por %p234, %p235
    %p237 = scmp.ne.s32.totalorder %s228, %s229
    %p238 = scmp.eq.s32.totalorder %s24, 0
    %p239 = por %p237, %p238
    %p240 = scmp.ne.s32.totalorder %s228, %s229
    %p241 = scmp.eq.s32.totalorder %s25, 1
    %p242 = por %p240, %p241
    %p244 = scmp.ne.s32.totalorder %s229, %s243
    %p245 = scmp.eq.s32.totalorder %s25, 0
    %p246 = por %p244, %p245
    %s248 = sadd.s32 %s247, 1
    %p251 = scmp.eq.s32.totalorder %s19, 1
    %p252 = scmp.ne.s32.totalorder %s247, %s249
    %p253 = scmp.eq.s32.totalorder %s19, 0
    %p254 = por %p252, %p253
    %p255 = scmp.ne.s32.totalorder %s247, %s249
    %p256 = scmp.eq.s32.totalorder %s24, 1
    %p257 = por %p255, %p256
    %p258 = scmp.ne.s32.totalorder %s249, %s250
    %p259 = scmp.eq.s32.totalorder %s24, 0
    %p260 = por %p258, %p259
    %p261 = scmp.ne.s32.totalorder %s249, %s250
    %p262 = scmp.eq.s32.totalorder %s25, 1
    %p263 = por %p261, %p262
    %p265 = scmp.ne.s32.totalorder %s250, %s264
    %p266 = scmp.eq.s32.totalorder %s25, 0
    %p267 = por %p265, %p266
    %s269 = sadd.s32 %s268, 1
    %p272 = scmp.eq.s32.totalorder %s19, 1
    %p273 = scmp.ne.s32.totalorder %s268, %s270
    %p274 = scmp.eq.s32.totalorder %s19, 0
    %p275 = por %p273, %p274
    %p276 = scmp.ne.s32.totalorder %s268, %s270
    %p277 = scmp.eq.s32.totalorder %s24, 1
    %p278 = por %p276, %p277
    %p279 = scmp.ne.s32.totalorder %s270, %s271
    %p280 = scmp.eq.s32.totalorder %s24, 0
    %p281 = por %p279, %p280
    %p282 = scmp.ne.s32.totalorder %s270, %s271
    %p283 = scmp.eq.s32.totalorder %s25, 1
    %p284 = por %p282, %p283
    %p286 = scmp.ne.s32.totalorder %s271, %s285
    %p287 = scmp.eq.s32.totalorder %s25, 0
    %p288 = por %p286, %p287
    %s290 = sadd.s32 %s289, 1
    %p293 = scmp.eq.s32.totalorder %s19, 1
    %p294 = scmp.ne.s32.totalorder %s289, %s291
    %p295 = scmp.eq.s32.totalorder %s19, 0
    %p296 = por %p294, %p295
    %p297 = scmp.ne.s32.totalorder %s289, %s291
    %p298 = scmp.eq.s32.totalorder %s24, 1
    %p299 = por %p297, %p298
    %p300 = scmp.ne.s32.totalorder %s291, %s292
    %p301 = scmp.eq.s32.totalorder %s24, 0
    %p302 = por %p300, %p301
    %p303 = scmp.ne.s32.totalorder %s291, %s292
    %p304 = scmp.eq.s32.totalorder %s25, 1
    %p305 = por %p303, %p304
    %p307 = scmp.ne.s32.totalorder %s292, %s306
    %p308 = scmp.eq.s32.totalorder %s25, 0
    %p309 = por %p307, %p308
    %s310 = ssub.s32 %s19, %s26
    %p311 = scmp.eq.s32.totalorder %s310, 0
    %s313 = sadd.s32 %s312, 1
    %s314 = scalar_select %p311, %s312, %s313
    %p317 = pneg %p311
    %p318 = scmp.eq.s32.totalorder %s19, 1
    %p319 = por %p317, %p318
    %p320 = scmp.ne.s32.totalorder %s312, %s315
    %p321 = scmp.eq.s32.totalorder %s19, 0
    %p322 = por %p320, %p321
    %p323 = scmp.ne.s32.totalorder %s312, %s315
    %p324 = scmp.eq.s32.totalorder %s24, 1
    %p325 = por %p323, %p324
    %p326 = scmp.ne.s32.totalorder %s315, %s316
    %p327 = scmp.eq.s32.totalorder %s24, 0
    %p328 = por %p326, %p327
    %p329 = scmp.ne.s32.totalorder %s315, %s316
    %p330 = scmp.eq.s32.totalorder %s25, 1
    %p331 = por %p329, %p330
    %p333 = scmp.ne.s32.totalorder %s316, %s332
    %p334 = scmp.eq.s32.totalorder %s25, 0
    %p335 = por %p333, %p334
    %p336 = scmp.le.s32.totalorder 1, %s19
    %p337 = scmp.lt.s32.totalorder %s19, 3
    %p338 = pnand %p336, %p337
    %p339 = pneg %p338
    // Predicated region
    $region9: #{custom_transformer_forward.8} parent=5 // pred_check
      _
    $region10: #{custom_transformer_forward.8} parent=5 // pred_check_branch
      %341 = sbr.rel (%p338) target = $region12
    $region11: #{custom_transformer_forward.8} parent=5 // pred_region
      %s342 = ssub.s32 %s19, 1
      // Predicated region
      $region13: #{custom_transformer_forward.8} parent=11 // pred_check
        %p343 = pneg %p92
      $region14: #{custom_transformer_forward.8} parent=11 // pred_check_branch
        %345 = sbr.rel (%p343) target = $region16
      $region15: #{custom_transformer_forward.8} parent=11 // pred_region
        _
      $region16: #{custom_transformer_forward.8} parent=11 // pred_fallthru
        _
      // Predicated region
      $region17: #{custom_transformer_forward.8} parent=11 // pred_check
        %p346 = pneg %p113
      $region18: #{custom_transformer_forward.8} parent=11 // pred_check_branch
        %348 = sbr.rel (%p346) target = $region20
      $region19: #{custom_transformer_forward.8} parent=11 // pred_region
        _
      $region20: #{custom_transformer_forward.8} parent=11 // pred_fallthru
        _
      // Predicated region
      $region21: #{custom_transformer_forward.8} parent=11 // pred_check
        %p349 = pneg %p134
      $region22: #{custom_transformer_forward.8} parent=11 // pred_check_branch
        %351 = sbr.rel (%p349) target = $region24
      $region23: #{custom_transformer_forward.8} parent=11 // pred_region
        _
      $region24: #{custom_transformer_forward.8} parent=11 // pred_fallthru
        _
      // Predicated region
      $region25: #{custom_transformer_forward.8} parent=11 // pred_check
        %p352 = pneg %p155
      $region26: #{custom_transformer_forward.8} parent=11 // pred_check_branch
        %354 = sbr.rel (%p352) target = $region28
      $region27: #{custom_transformer_forward.8} parent=11 // pred_region
        _
      $region28: #{custom_transformer_forward.8} parent=11 // pred_fallthru
        _
      // Predicated region
      $region29: #{custom_transformer_forward.8} parent=11 // pred_check
        %p355 = pneg %p176
      $region30: #{custom_transformer_forward.8} parent=11 // pred_check_branch
        %357 = sbr.rel (%p355) target = $region32
      $region31: #{custom_transformer_forward.8} parent=11 // pred_region
        _
      $region32: #{custom_transformer_forward.8} parent=11 // pred_fallthru
        _
      // Predicated region
      $region33: #{custom_transformer_forward.8} parent=11 // pred_check
        %p358 = pneg %p197
      $region34: #{custom_transformer_forward.8} parent=11 // pred_check_branch
        %360 = sbr.rel (%p358) target = $region36
      $region35: #{custom_transformer_forward.8} parent=11 // pred_region
        _
      $region36: #{custom_transformer_forward.8} parent=11 // pred_fallthru
        _
      // Predicated region
      $region37: #{custom_transformer_forward.8} parent=11 // pred_check
        %p361 = pneg %p218
      $region38: #{custom_transformer_forward.8} parent=11 // pred_check_branch
        %363 = sbr.rel (%p361) target = $region40
      $region39: #{custom_transformer_forward.8} parent=11 // pred_region
        _
      $region40: #{custom_transformer_forward.8} parent=11 // pred_fallthru
        _
      // Predicated region
      $region41: #{custom_transformer_forward.8} parent=11 // pred_check
        %p364 = pneg %p239
      $region42: #{custom_transformer_forward.8} parent=11 // pred_check_branch
        %366 = sbr.rel (%p364) target = $region44
      $region43: #{custom_transformer_forward.8} parent=11 // pred_region
        _
      $region44: #{custom_transformer_forward.8} parent=11 // pred_fallthru
        _
      // Predicated region
      $region45: #{custom_transformer_forward.8} parent=11 // pred_check
        %p367 = pneg %p260
      $region46: #{custom_transformer_forward.8} parent=11 // pred_check_branch
        %369 = sbr.rel (%p367) target = $region48
      $region47: #{custom_transformer_forward.8} parent=11 // pred_region
        _
      $region48: #{custom_transformer_forward.8} parent=11 // pred_fallthru
        _
      // Predicated region
      $region49: #{custom_transformer_forward.8} parent=11 // pred_check
        %p370 = pneg %p281
      $region50: #{custom_transformer_forward.8} parent=11 // pred_check_branch
        %372 = sbr.rel (%p370) target = $region52
      $region51: #{custom_transformer_forward.8} parent=11 // pred_region
        _
      $region52: #{custom_transformer_forward.8} parent=11 // pred_fallthru
        _
      // Predicated region
      $region53: #{custom_transformer_forward.8} parent=11 // pred_check
        %p373 = pneg %p302
      $region54: #{custom_transformer_forward.8} parent=11 // pred_check_branch
        %375 = sbr.rel (%p373) target = $region56
      $region55: #{custom_transformer_forward.8} parent=11 // pred_region
        _
      $region56: #{custom_transformer_forward.8} parent=11 // pred_fallthru
        _
    $region12: #{custom_transformer_forward.8} parent=5 // pred_fallthru
      _
    %p376 = scmp.lt.s32.totalorder %s19, 2
    // Predicated region
    $region57: #{custom_transformer_forward.8} parent=5 // pred_check
      %p377 = pneg %p376
    $region58: #{custom_transformer_forward.8} parent=5 // pred_check_branch
      %379 = sbr.rel (%p377) target = $region60
    $region59: #{custom_transformer_forward.8} parent=5 // pred_region
      // Predicated region
      $region61: #{custom_transformer_forward.8} parent=59 // pred_check
        %p380 = pneg %p39
      $region62: #{custom_transformer_forward.8} parent=59 // pred_check_branch
        %382 = sbr.rel (%p380) target = $region64
      $region63: #{custom_transformer_forward.8} parent=59 // pred_region
        %p383 = scmp.lt.s32.totalorder %s19, 1
        %s384 = scalar_select %p383, %s19, 1
        %s385 = smul.addr %s384, 8
        %s386 = scalar_lea.vmem %s0, %s385
      $region64: #{custom_transformer_forward.8} parent=59 // pred_fallthru
        _
      // Predicated region
      $region65: #{custom_transformer_forward.8} parent=59 // pred_check
        %p387 = pneg %p65
      $region66: #{custom_transformer_forward.8} parent=59 // pred_check_branch
        %389 = sbr.rel (%p387) target = $region68
      $region67: #{custom_transformer_forward.8} parent=59 // pred_region
        %p390 = scmp.lt.s32.totalorder %s19, 1
        %s391 = scalar_select %p390, %s19, 1
        %s392 = smul.addr %s391, 8
        %s393 = scalar_lea.vmem %s1, %s392
      $region68: #{custom_transformer_forward.8} parent=59 // pred_fallthru
        _
    $region60: #{custom_transformer_forward.8} parent=5 // pred_fallthru
      _
    %p394 = scmp.le.s32.totalorder 1, %s19
    %p395 = scmp.lt.s32.totalorder %s19, 3
    %p396 = pnand %p394, %p395
    %p397 = pneg %p396
    // Predicated region
    $region69: #{custom_transformer_forward.8} parent=5 // pred_check
      _
    $region70: #{custom_transformer_forward.8} parent=5 // pred_check_branch
      %399 = sbr.rel (%p396) target = $region72
    $region71: #{custom_transformer_forward.8} parent=5 // pred_region
      %s400 = ssub.s32 %s19, 1
      %p401 = scmp.lt.s32.totalorder %s24, 1
      %s402 = scalar_select %p401, %s24, 1
      %s403 = smul.addr %s402, 8
      %s404 = scalar_lea.vmem %s0, %s403
      %p405 = pneg %p45
      %p406 = pneg %p42
      %p407 = scmp.lt.s32.totalorder %s24, 1
      %s408 = scalar_select %p407, %s24, 1
      %s409 = smul.addr %s408, 8
      %s410 = scalar_lea.vmem %s1, %s409
      %p411 = pneg %p71
      %p412 = pneg %p68
      %p413 = pneg %p92
      %p414 = pneg %p89
      %p415 = pneg %p113
      %p416 = pneg %p110
      %p417 = pneg %p134
      %p418 = pneg %p131
      %p419 = pneg %p155
      %p420 = pneg %p152
      %p421 = pneg %p176
      %p422 = pneg %p173
      %p423 = pneg %p197
      %p424 = pneg %p194
      %p425 = pneg %p218
      %p426 = pneg %p215
      %p427 = pneg %p239
      %p428 = pneg %p236
      %p429 = pneg %p260
      %p430 = pneg %p257
      %p431 = pneg %p281
      %p432 = pneg %p278
      %p433 = pneg %p302
      %p434 = pneg %p299
      %p435 = pneg %p328
      %p436 = pneg %p325
      %p437 = scmp.lt.s32.totalorder %s24, 1
      %s438 = scalar_select %p437, %s24, 1
      %s439 = smul.addr %s438, 8
      %s440 = scalar_lea.vmem %s13, %s439
      %p441 = scmp.lt.s32.totalorder %s24, 1
      %s442 = scalar_select %p441, %s24, 1
      %s443 = smul.addr %s442, 8
      %s444 = scalar_lea.vmem %s0, %s443
      %p445 = scmp.lt.s32.totalorder %s24, 1
      %s446 = scalar_select %p445, %s24, 1
      %s447 = smul.addr %s446, 8
      %s448 = scalar_lea.vmem %s1, %s447
      %p449 = scmp.lt.s32.totalorder %s24, 1
      %s450 = scalar_select %p449, %s24, 1
      %s451 = smul.addr %s450, 8
      %s452 = scalar_lea.vmem %s13, %s451
      %v454 = vld [vmem:[%s444] sm:$0xff]
      %v455 = vld [vmem:[%s448] sm:$0xff]
      %vm456 = vcmask 261120
      %v457 = vsel %vm456, %v454, 0.0
      %458 = vadd.xlane.f32.xlu0 %v457
      %v459 = vpop.xlane.xlu0 %458
      %460 = vadd.xlane.f32.xlu0 %v455
      %v461 = vpop.xlane.xlu0 %460
      %v462 = vadd.f32 %v459, %v461
      %v463 = vmul.f32 %v462, 0.00625
      %v464 = vsub.f32 %v454, %v463
      %v465 = vsub.f32 %v455, %v463
      %v466 = vmul.f32 %v464, %v464
      %v467 = vsel %vm456, %v466, 0.0
      %468 = vadd.xlane.f32.xlu0 %v467
      %v469 = vpop.xlane.xlu0 %468
      %v470 = vmul.f32 %v465, %v465
      %471 = vadd.xlane.f32.xlu0 %v470
      %v472 = vpop.xlane.xlu0 %471
      %v473 = vadd.f32 %v469, %v472
      %v474 = vmul.f32 %v473, 0.00625
      %v475 = vadd.f32 %v474, 1e-05
      %v476 = vrsqrt.pop %v475
      %v477 = vmul.f32 %v476, %v475
      %v478 = vmul.f32 %v477, %v476
      %v479 = vmul.f32 0.5, %v478
      %v480 = vsub.f32 1.5, %v479
      %v481 = vmul.f32 %v476, %v480
      %vm482 = vweird.f32 %v475
      %vm483 = vweird.f32 %v476
      %vm484 = vmor %vm482, %vm483
      %v485 = vsel %vm484, %v476, %v481
      %v486 = vmul.f32 %v464, %v485
      %v487 = vld [vmem:[%s2] sm:$0x1]
      %v489 = vperm.slane %v487, 0
      %v491 = vmul.f32 %v486, %v489
      %v492 = vld [vmem:[%s4] sm:$0x1]
      %v494 = vperm.slane %v492, 0
      %v496 = vadd.f32 %v491, %v494
      %v497 = vpack.c.bf16 %v496, %v496
      %v498 = vmul.f32 %v465, %v485
      %v499 = vld [vmem:[%s3] sm:$0x1]
      %v501 = vperm.slane %v499, 0
      %v503 = vmul.f32 %v498, %v501
      %v504 = vld [vmem:[%s5] sm:$0x1]
      %v506 = vperm.slane %v504, 0
      %v508 = vadd.f32 %v503, %v506
      %v509 = vpack.c.bf16 %v508, %v508
      %v510 = vld [vmem:[%s6] sm:$0xf]
      %v511 = vld [vmem:[%s6 + $0x4] sm:$0xf]
      %v512 = vld [vmem:[%s6 + $0x8] sm:$0xf]
      %v513 = vld [vmem:[%s6 + $0xc] sm:$0xf]
      %v514 = vld [vmem:[%s7] sm:$0xf]
      %v515 = vld [vmem:[%s7 + $0x4] sm:$0xf]
      %v516 = vld [vmem:[%s7 + $0x8] sm:$0xf]
      %v517 = vld [vmem:[%s7 + $0xc] sm:$0xf]
      %v518 = vld [vmem:[%s7 + $0x10] sm:$0xf]
      %v519 = vld [vmem:[%s7 + $0x14] sm:$0xf]
      %v520 = vld [vmem:[%s7 + $0x18] sm:$0xf]
      %v521 = vld [vmem:[%s7 + $0x1c] sm:$0xf]
      %v522 = vld [vmem:[%s7 + $0x20] sm:$0xf]
      %v523 = vld [vmem:[%s7 + $0x24] sm:$0xf]
      %v524 = vld [vmem:[%s7 + $0x28] sm:$0xf]
      %v525 = vld [vmem:[%s7 + $0x2c] sm:$0xf]
      %v526 = vld [vmem:[%s7 + $0x30] sm:$0xf]
      %v527 = vld [vmem:[%s7 + $0x34] sm:$0xf]
      %v528 = vld [vmem:[%s7 + $0x38] sm:$0xf]
      %v529 = vld [vmem:[%s7 + $0x3c] sm:$0xf]
      %v546 = vunpack.c.l.b16 %v514
      %v547 = vunpack.c.l.b16 %v515
      %v548 = vunpack.c.l.b16 %v516
      %v549 = vunpack.c.l.b16 %v517
      %v550 = vunpack.c.l.b16 %v518
      %v551 = vunpack.c.l.b16 %v519
      %v552 = vunpack.c.l.b16 %v520
      %v553 = vunpack.c.l.b16 %v521
      %v554 = vunpack.c.l.b16 %v522
      %v555 = vunpack.c.l.b16 %v523
      %v556 = vunpack.c.l.b16 %v524
      %v557 = vunpack.c.l.b16 %v525
      %v558 = vunpack.c.l.b16 %v526
      %v559 = vunpack.c.l.b16 %v527
      %v560 = vunpack.c.l.b16 %v528
      %v561 = vunpack.c.l.b16 %v529
      %v562 = vpack.c.b16 %v547, %v546
      %v563 = vpack.c.b16 %v549, %v548
      %v564 = vpack.c.b16 %v551, %v550
      %v565 = vpack.c.b16 %v553, %v552
      %v566 = vpack.c.b16 %v555, %v554
      %v567 = vpack.c.b16 %v557, %v556
      %v568 = vpack.c.b16 %v559, %v558
      %v569 = vpack.c.b16 %v561, %v560
      %578 = vmatpush.bf16.msra.mxu0 %v569
      %579 = vmatpush.bf16.msra.mxu0 %v568
      %580 = vmatpush.bf16.msra.mxu0 %v567
      %581 = vmatpush.bf16.msra.mxu0 %v566
      %582 = vmatpush.bf16.msra.mxu0 %v565
      %583 = vmatpush.bf16.msra.mxu0 %v564
      %584 = vmatpush.bf16.msra.mxu0 %v563
      %585 = vmatpush.bf16.msra.mxu0 %v562
      %586 = vmatmul.bf16.gmra.mxu0 %v509
      %v587 = vpop.f32.mrf.mxu0
      %v588 = vadd.f32 0.0, %v587
      %v589 = vpop.f32.mrf.mxu0
      %590 = vdwg.mxu0
      %v595 = vunpack.c.l.b16 %v510
      %v596 = vunpack.c.l.b16 %v511
      %v597 = vunpack.c.l.b16 %v512
      %v598 = vunpack.c.l.b16 %v513
      %v599 = vpack.c.b16 %v596, %v595
      %v600 = vpack.c.b16 %v598, %v597
      %v604 = vsel %vm456, %v497, 0
      %606 = vmatpush.bf16.msra.mxu0 0
      %607 = vmatpush.bf16.msra.mxu0 0
      %608 = vmatpush.bf16.msra.mxu0 0
      %609 = vmatpush.bf16.msra.mxu0 0
      %610 = vmatpush.bf16.msra.mxu0 0
      %611 = vmatpush.bf16.msra.mxu0 0
      %612 = vmatpush.bf16.msra.mxu0 %v600
      %613 = vmatpush.bf16.msra.mxu0 %v599
      %614 = vmatmul.bf16.gmra.mxu0 %v604
      %v615 = vpop.f32.mrf.mxu0
      %v616 = vadd.f32 %v588, %v615
      %v617 = vpop.f32.mrf.mxu0
      %618 = vdwg.mxu0
      %v619 = vld [vmem:[%s8] sm:$0x1]
      %v621 = vperm.slane %v619, 0
      %v623 = vadd.f32 %v616, %v621
      %v624 = vmax.f32 %v623, 0.0
      %v625 = vpack.c.bf16 %v624, %v624
      %v626 = vld [vmem:[%s9] sm:$0xf]
      %v627 = vld [vmem:[%s9 + $0x4] sm:$0xf]
      %v628 = vld [vmem:[%s9 + $0x8] sm:$0xf]
      %v629 = vld [vmem:[%s9 + $0xc] sm:$0xf]
      %v630 = vld [vmem:[%s9 + $0x10] sm:$0xf]
      %v631 = vld [vmem:[%s9 + $0x14] sm:$0xf]
      %v632 = vld [vmem:[%s9 + $0x18] sm:$0xf]
      %v633 = vld [vmem:[%s9 + $0x1c] sm:$0xf]
      %v634 = vld [vmem:[%s10] sm:$0x1]
      %v636 = vperm.slane %v634, 0
      %v646 = vunpack.c.l.b16 %v626
      %v647 = vunpack.c.l.b16 %v627
      %v648 = vunpack.c.l.b16 %v628
      %v649 = vunpack.c.l.b16 %v629
      %v650 = vunpack.c.l.b16 %v630
      %v651 = vunpack.c.l.b16 %v631
      %v652 = vunpack.c.l.b16 %v632
      %v653 = vunpack.c.l.b16 %v633
      %v654 = vpack.c.b16 %v647, %v646
      %v655 = vpack.c.b16 %v649, %v648
      %v656 = vpack.c.b16 %v651, %v650
      %v657 = vpack.c.b16 %v653, %v652
      %vm662 = vcmask 523264
      %v664 = vsel %vm662, %v625, 0
      %666 = vmatpush.bf16.msra.mxu0 0
      %667 = vmatpush.bf16.msra.mxu0 0
      %668 = vmatpush.bf16.msra.mxu0 0
      %669 = vmatpush.bf16.msra.mxu0 0
      %670 = vmatpush.bf16.msra.mxu0 %v657
      %671 = vmatpush.bf16.msra.mxu0 %v656
      %672 = vmatpush.bf16.msra.mxu0 %v655
      %673 = vmatpush.bf16.msra.mxu0 %v654
      %674 = vmatmul.bf16.gmra.mxu0 %v664
      %v675 = vpop.f32.mrf.mxu0
      %v676 = vadd.f32 %v636, %v675
      %v677 = vpop.f32.mrf.mxu0
      %678 = vdwg.mxu0
      %v679 = vsel %vm456, %v676, 0.0
      %680 = vadd.xlane.f32.xlu0 %v679
      %v681 = vpop.xlane.xlu0 %680
      %v682 = vrcp.pop 32.0
      %v683 = vmul.f32 32.0, %v682
      %v684 = vsub.f32 1.0, %v683
      %v685 = vmul.f32 %v682, %v684
      %v686 = vadd.f32 %v682, %v685
      %vm687 = vweird.f32 %v682
      %v688 = vsel %vm687, %v682, %v686
      %v689 = vmul.f32 %v681, %v688
      %v690 = vsub.f32 %v676, %v689
      %v691 = vmul.f32 %v690, %v690
      %v692 = vsel %vm456, %v691, 0.0
      %693 = vadd.xlane.f32.xlu0 %v692
      %v694 = vpop.xlane.xlu0 %693
      %v695 = vmul.f32 %v694, %v688
      %v696 = vadd.f32 %v695, 1e-05
      %v697 = vrsqrt.pop %v696
      %v698 = vmul.f32 %v697, %v696
      %v699 = vmul.f32 %v698, %v697
      %v700 = vmul.f32 0.5, %v699
      %v701 = vsub.f32 1.5, %v700
      %v702 = vmul.f32 %v697, %v701
      %vm703 = vweird.f32 %v696
      %vm704 = vweird.f32 %v697
      %vm705 = vmor %vm703, %vm704
      %v706 = vsel %vm705, %v697, %v702
      %v707 = vmul.f32 %v690, %v706
      %v708 = vld [vmem:[%s11] sm:$0x1]
      %v710 = vperm.slane %v708, 0
      %v712 = vmul.f32 %v707, %v710
      %v713 = vld [vmem:[%s12] sm:$0x1]
      %v715 = vperm.slane %v713, 0
      %v717 = vadd.f32 %v712, %v715
      %718 = vst.msk [vmem:[%s452] sm:$0xff] %vm456, %v717
      %p719 = scmp.lt.s32.totalorder %s24, 1
      %s720 = scalar_select %p719, %s24, 1
      %s721 = smul.addr %s720, 8
      %s722 = scalar_lea.vmem %s13, %s721
      // Predicated region
      $region73: #{custom_transformer_forward.8} parent=71 // pred_check
        %p723 = pneg %p325
      $region74: #{custom_transformer_forward.8} parent=71 // pred_check_branch
        %725 = sbr.rel (%p723) target = $region76
      $region75: #{custom_transformer_forward.8} parent=71 // pred_region
        _
      $region76: #{custom_transformer_forward.8} parent=71 // pred_fallthru
        _
    $region72: #{custom_transformer_forward.8} parent=5 // pred_fallthru
      _
    %p726 = scmp.le.s32.totalorder 2, %s19
    // Predicated region
    $region77: #{custom_transformer_forward.8} parent=5 // pred_check
      %p727 = pneg %p726
    $region78: #{custom_transformer_forward.8} parent=5 // pred_check_branch
      %729 = sbr.rel (%p727) target = $region80
    $region79: #{custom_transformer_forward.8} parent=5 // pred_region
      %s730 = ssub.s32 %s19, 2
      // Predicated region
      $region81: #{custom_transformer_forward.8} parent=79 // pred_check
        %p731 = pneg %p331
      $region82: #{custom_transformer_forward.8} parent=79 // pred_check_branch
        %733 = sbr.rel (%p731) target = $region84
      $region83: #{custom_transformer_forward.8} parent=79 // pred_region
        %p734 = scmp.lt.s32.totalorder %s25, 1
        %s735 = scalar_select %p734, %s25, 1
        %s736 = smul.addr %s735, 8
        %s737 = scalar_lea.vmem %s13, %s736
      $region84: #{custom_transformer_forward.8} parent=79 // pred_fallthru
        _
    $region80: #{custom_transformer_forward.8} parent=5 // pred_fallthru
      _
  $region6: #{custom_transformer_forward.8} parent=0 // loop_footer
    %s23 = sadd.s32 1, %s19
  $region7: #{custom_transformer_forward.8} parent=0 // loop_footer_branch
    %18 = sbr.rel target = $region3
  $region8: #{custom_transformer_forward.8} parent=0 // loop_exit
    _

// kernel: custom_transformer_forward.7
$region0: #{custom_transformer_forward.7}
  #allocation0 [shape = 'u32[]', space=smem, size = 0x4, offset = 0x4, fixed_abs, tag = 'smem constant byte address 0x4 - core index']
  #allocation1 [shape = 'u32[72,128]{1,0:T(1,128)}', space=vmem, size = 0x9000, scoped, tag = 'internal scratch']
  %s0 = inlined_call_operand.vmem [shape: f32[2,8,32], index: 0, kind: input, shape index: {}]
  %s1 = inlined_call_operand.vmem [shape: f32[2,8,32], index: 1, kind: input, shape index: {}]
  %s2 = inlined_call_operand.vmem [shape: f32[8,8], index: 2, kind: input, shape index: {}]
  %s3 = inlined_call_operand.vmem [shape: bf16[32,384], index: 3, kind: input, shape index: {}]
  %s4 = inlined_call_operand.vmem [shape: f32[1,384], index: 4, kind: input, shape index: {}]
  %s5 = inlined_call_operand.vmem [shape: bf16[32,256], index: 5, kind: input, shape index: {}]
  %s6 = inlined_call_operand.vmem [shape: f32[1,256], index: 6, kind: input, shape index: {}]
  %s7 = inlined_call_operand.vmem [shape: f32[2,8,128], index: 7, kind: output, shape index: {}]
  %s8 = sld [smem:[#allocation0]]
  $region61: #{custom_transformer_forward.7} parent=0
    _
  %s10 = ssub.s32 1, %s8
  %s11 = scalar_select 0, %s10, %s8
  loop: start=0, step=1, limit=4
  $region2: #{custom_transformer_forward.7} parent=0 // loop_pre_header
    _
  $region3: #{custom_transformer_forward.7} parent=0 // loop_header
    %s13 = sphi 0, %s17
    %p14 = scmp.ge.s32.totalorder %s13, 4
    %s23 = sphi 0, %s25
    %s26 = sphi 0, %s23
    %s27 = sphi 0, %s26
    %s43 = sphi 0, %s27
    %s49 = sphi 0, %s51
    %s52 = sphi 0, %s49
    %s53 = sphi 0, %s52
    %s69 = sphi 0, %s53
    %s73 = sphi 0, %s73
    %s75 = sphi 0, %s73
    %s76 = sphi 0, %s75
    %s90 = sphi 0, %s76
    %s94 = sphi 0, %s94
    %s96 = sphi 0, %s94
    %s97 = sphi 0, %s96
    %s111 = sphi 0, %s97
    %s115 = sphi 0, %s115
    %s117 = sphi 0, %s115
    %s118 = sphi 0, %s117
    %s132 = sphi 0, %s118
    %s136 = sphi 0, %s136
    %s138 = sphi 0, %s136
    %s139 = sphi 0, %s138
    %s153 = sphi 0, %s139
    %s157 = sphi 0, %s157
    %s159 = sphi 0, %s157
    %s160 = sphi 0, %s159
    %s174 = sphi 0, %s160
    %s180 = sphi 0, %s182
    %s183 = sphi 0, %s180
    %s184 = sphi 0, %s183
    %s200 = sphi 0, %s184
  $region4: #{custom_transformer_forward.7} parent=0 // loop_header_branch
    %16 = sbr.rel (%p14) target = $region8
  $region5: #{custom_transformer_forward.7} parent=0 // loop_body
    %s18 = ssub.s32 %s13, 1
    %s19 = ssub.s32 %s13, 2
    %s20 = sadd.s32 %s13, 1
    %s21 = ssub.s32 %s13, %s20
    %p22 = scmp.eq.s32.totalorder %s21, 0
    %s24 = sadd.s32 %s23, 1
    %s25 = scalar_select %p22, %s23, %s24
    %p28 = pneg %p22
    %p29 = scmp.eq.s32.totalorder %s13, 1
    %p30 = por %p28, %p29
    %p31 = scmp.ne.s32.totalorder %s23, %s26
    %p32 = scmp.eq.s32.totalorder %s13, 0
    %p33 = por %p31, %p32
    %p34 = scmp.ne.s32.totalorder %s23, %s26
    %p35 = scmp.eq.s32.totalorder %s18, 1
    %p36 = por %p34, %p35
    %p37 = scmp.ne.s32.totalorder %s26, %s27
    %p38 = scmp.eq.s32.totalorder %s18, 0
    %p39 = por %p37, %p38
    %p40 = scmp.ne.s32.totalorder %s26, %s27
    %p41 = scmp.eq.s32.totalorder %s19, 1
    %p42 = por %p40, %p41
    %p44 = scmp.ne.s32.totalorder %s27, %s43
    %p45 = scmp.eq.s32.totalorder %s19, 0
    %p46 = por %p44, %p45
    %s47 = ssub.s32 %s13, %s20
    %p48 = scmp.eq.s32.totalorder %s47, 0
    %s50 = sadd.s32 %s49, 1
    %s51 = scalar_select %p48, %s49, %s50
    %p54 = pneg %p48
    %p55 = scmp.eq.s32.totalorder %s13, 1
    %p56 = por %p54, %p55
    %p57 = scmp.ne.s32.totalorder %s49, %s52
    %p58 = scmp.eq.s32.totalorder %s13, 0
    %p59 = por %p57, %p58
    %p60 = scmp.ne.s32.totalorder %s49, %s52
    %p61 = scmp.eq.s32.totalorder %s18, 1
    %p62 = por %p60, %p61
    %p63 = scmp.ne.s32.totalorder %s52, %s53
    %p64 = scmp.eq.s32.totalorder %s18, 0
    %p65 = por %p63, %p64
    %p66 = scmp.ne.s32.totalorder %s52, %s53
    %p67 = scmp.eq.s32.totalorder %s19, 1
    %p68 = por %p66, %p67
    %p70 = scmp.ne.s32.totalorder %s53, %s69
    %p71 = scmp.eq.s32.totalorder %s19, 0
    %p72 = por %p70, %p71
    %s74 = sadd.s32 %s73, 1
    %p77 = scmp.eq.s32.totalorder %s13, 1
    %p78 = scmp.ne.s32.totalorder %s73, %s75
    %p79 = scmp.eq.s32.totalorder %s13, 0
    %p80 = por %p78, %p79
    %p81 = scmp.ne.s32.totalorder %s73, %s75
    %p82 = scmp.eq.s32.totalorder %s18, 1
    %p83 = por %p81, %p82
    %p84 = scmp.ne.s32.totalorder %s75, %s76
    %p85 = scmp.eq.s32.totalorder %s18, 0
    %p86 = por %p84, %p85
    %p87 = scmp.ne.s32.totalorder %s75, %s76
    %p88 = scmp.eq.s32.totalorder %s19, 1
    %p89 = por %p87, %p88
    %p91 = scmp.ne.s32.totalorder %s76, %s90
    %p92 = scmp.eq.s32.totalorder %s19, 0
    %p93 = por %p91, %p92
    %s95 = sadd.s32 %s94, 1
    %p98 = scmp.eq.s32.totalorder %s13, 1
    %p99 = scmp.ne.s32.totalorder %s94, %s96
    %p100 = scmp.eq.s32.totalorder %s13, 0
    %p101 = por %p99, %p100
    %p102 = scmp.ne.s32.totalorder %s94, %s96
    %p103 = scmp.eq.s32.totalorder %s18, 1
    %p104 = por %p102, %p103
    %p105 = scmp.ne.s32.totalorder %s96, %s97
    %p106 = scmp.eq.s32.totalorder %s18, 0
    %p107 = por %p105, %p106
    %p108 = scmp.ne.s32.totalorder %s96, %s97
    %p109 = scmp.eq.s32.totalorder %s19, 1
    %p110 = por %p108, %p109
    %p112 = scmp.ne.s32.totalorder %s97, %s111
    %p113 = scmp.eq.s32.totalorder %s19, 0
    %p114 = por %p112, %p113
    %s116 = sadd.s32 %s115, 1
    %p119 = scmp.eq.s32.totalorder %s13, 1
    %p120 = scmp.ne.s32.totalorder %s115, %s117
    %p121 = scmp.eq.s32.totalorder %s13, 0
    %p122 = por %p120, %p121
    %p123 = scmp.ne.s32.totalorder %s115, %s117
    %p124 = scmp.eq.s32.totalorder %s18, 1
    %p125 = por %p123, %p124
    %p126 = scmp.ne.s32.totalorder %s117, %s118
    %p127 = scmp.eq.s32.totalorder %s18, 0
    %p128 = por %p126, %p127
    %p129 = scmp.ne.s32.totalorder %s117, %s118
    %p130 = scmp.eq.s32.totalorder %s19, 1
    %p131 = por %p129, %p130
    %p133 = scmp.ne.s32.totalorder %s118, %s132
    %p134 = scmp.eq.s32.totalorder %s19, 0
    %p135 = por %p133, %p134
    %s137 = sadd.s32 %s136, 1
    %p140 = scmp.eq.s32.totalorder %s13, 1
    %p141 = scmp.ne.s32.totalorder %s136, %s138
    %p142 = scmp.eq.s32.totalorder %s13, 0
    %p143 = por %p141, %p142
    %p144 = scmp.ne.s32.totalorder %s136, %s138
    %p145 = scmp.eq.s32.totalorder %s18, 1
    %p146 = por %p144, %p145
    %p147 = scmp.ne.s32.totalorder %s138, %s139
    %p148 = scmp.eq.s32.totalorder %s18, 0
    %p149 = por %p147, %p148
    %p150 = scmp.ne.s32.totalorder %s138, %s139
    %p151 = scmp.eq.s32.totalorder %s19, 1
    %p152 = por %p150, %p151
    %p154 = scmp.ne.s32.totalorder %s139, %s153
    %p155 = scmp.eq.s32.totalorder %s19, 0
    %p156 = por %p154, %p155
    %s158 = sadd.s32 %s157, 1
    %p161 = scmp.eq.s32.totalorder %s13, 1
    %p162 = scmp.ne.s32.totalorder %s157, %s159
    %p163 = scmp.eq.s32.totalorder %s13, 0
    %p164 = por %p162, %p163
    %p165 = scmp.ne.s32.totalorder %s157, %s159
    %p166 = scmp.eq.s32.totalorder %s18, 1
    %p167 = por %p165, %p166
    %p168 = scmp.ne.s32.totalorder %s159, %s160
    %p169 = scmp.eq.s32.totalorder %s18, 0
    %p170 = por %p168, %p169
    %p171 = scmp.ne.s32.totalorder %s159, %s160
    %p172 = scmp.eq.s32.totalorder %s19, 1
    %p173 = por %p171, %p172
    %p175 = scmp.ne.s32.totalorder %s160, %s174
    %p176 = scmp.eq.s32.totalorder %s19, 0
    %p177 = por %p175, %p176
    %s178 = ssub.s32 %s13, %s20
    %p179 = scmp.eq.s32.totalorder %s178, 0
    %s181 = sadd.s32 %s180, 1
    %s182 = scalar_select %p179, %s180, %s181
    %p185 = pneg %p179
    %p186 = scmp.eq.s32.totalorder %s13, 1
    %p187 = por %p185, %p186
    %p188 = scmp.ne.s32.totalorder %s180, %s183
    %p189 = scmp.eq.s32.totalorder %s13, 0
    %p190 = por %p188, %p189
    %p191 = scmp.ne.s32.totalorder %s180, %s183
    %p192 = scmp.eq.s32.totalorder %s18, 1
    %p193 = por %p191, %p192
    %p194 = scmp.ne.s32.totalorder %s183, %s184
    %p195 = scmp.eq.s32.totalorder %s18, 0
    %p196 = por %p194, %p195
    %p197 = scmp.ne.s32.totalorder %s183, %s184
    %p198 = scmp.eq.s32.totalorder %s19, 1
    %p199 = por %p197, %p198
    %p201 = scmp.ne.s32.totalorder %s184, %s200
    %p202 = scmp.eq.s32.totalorder %s19, 0
    %p203 = por %p201, %p202
    %p204 = scmp.le.s32.totalorder 1, %s13
    %p205 = scmp.lt.s32.totalorder %s13, 3
    %p206 = pnand %p204, %p205
    %p207 = pneg %p206
    // Predicated region
    $region9: #{custom_transformer_forward.7} parent=5 // pred_check
      _
    $region10: #{custom_transformer_forward.7} parent=5 // pred_check_branch
      %209 = sbr.rel (%p206) target = $region12
    $region11: #{custom_transformer_forward.7} parent=5 // pred_region
      %s210 = ssub.s32 %s13, 1
      // Predicated region
      $region13: #{custom_transformer_forward.7} parent=11 // pred_check
        %p211 = pneg %p86
      $region14: #{custom_transformer_forward.7} parent=11 // pred_check_branch
        %213 = sbr.rel (%p211) target = $region16
      $region15: #{custom_transformer_forward.7} parent=11 // pred_region
        _
      $region16: #{custom_transformer_forward.7} parent=11 // pred_fallthru
        _
      // Predicated region
      $region17: #{custom_transformer_forward.7} parent=11 // pred_check
        %p214 = pneg %p107
      $region18: #{custom_transformer_forward.7} parent=11 // pred_check_branch
        %216 = sbr.rel (%p214) target = $region20
      $region19: #{custom_transformer_forward.7} parent=11 // pred_region
        _
      $region20: #{custom_transformer_forward.7} parent=11 // pred_fallthru
        _
      // Predicated region
      $region21: #{custom_transformer_forward.7} parent=11 // pred_check
        %p217 = pneg %p128
      $region22: #{custom_transformer_forward.7} parent=11 // pred_check_branch
        %219 = sbr.rel (%p217) target = $region24
      $region23: #{custom_transformer_forward.7} parent=11 // pred_region
        _
      $region24: #{custom_transformer_forward.7} parent=11 // pred_fallthru
        _
      // Predicated region
      $region25: #{custom_transformer_forward.7} parent=11 // pred_check
        %p220 = pneg %p149
      $region26: #{custom_transformer_forward.7} parent=11 // pred_check_branch
        %222 = sbr.rel (%p220) target = $region28
      $region27: #{custom_transformer_forward.7} parent=11 // pred_region
        _
      $region28: #{custom_transformer_forward.7} parent=11 // pred_fallthru
        _
      // Predicated region
      $region29: #{custom_transformer_forward.7} parent=11 // pred_check
        %p223 = pneg %p170
      $region30: #{custom_transformer_forward.7} parent=11 // pred_check_branch
        %225 = sbr.rel (%p223) target = $region32
      $region31: #{custom_transformer_forward.7} parent=11 // pred_region
        _
      $region32: #{custom_transformer_forward.7} parent=11 // pred_fallthru
        _
    $region12: #{custom_transformer_forward.7} parent=5 // pred_fallthru
      _
    %p226 = scmp.lt.s32.totalorder %s13, 2
    // Predicated region
    $region33: #{custom_transformer_forward.7} parent=5 // pred_check
      %p227 = pneg %p226
    $region34: #{custom_transformer_forward.7} parent=5 // pred_check_branch
      %229 = sbr.rel (%p227) target = $region36
    $region35: #{custom_transformer_forward.7} parent=5 // pred_region
      // Predicated region
      $region37: #{custom_transformer_forward.7} parent=35 // pred_check
        %p230 = pneg %p33
      $region38: #{custom_transformer_forward.7} parent=35 // pred_check_branch
        %232 = sbr.rel (%p230) target = $region40
      $region39: #{custom_transformer_forward.7} parent=35 // pred_region
        %p233 = scmp.lt.s32.totalorder %s13, 1
        %s234 = scalar_select %p233, %s13, 1
        %s235 = smul.addr %s234, 8
        %s236 = scalar_lea.vmem %s0, %s235
      $region40: #{custom_transformer_forward.7} parent=35 // pred_fallthru
        _
      // Predicated region
      $region41: #{custom_transformer_forward.7} parent=35 // pred_check
        %p237 = pneg %p59
      $region42: #{custom_transformer_forward.7} parent=35 // pred_check_branch
        %239 = sbr.rel (%p237) target = $region44
      $region43: #{custom_transformer_forward.7} parent=35 // pred_region
        %p240 = scmp.lt.s32.totalorder %s13, 1
        %s241 = scalar_select %p240, %s13, 1
        %s242 = smul.addr %s241, 8
        %s243 = scalar_lea.vmem %s1, %s242
      $region44: #{custom_transformer_forward.7} parent=35 // pred_fallthru
        _
    $region36: #{custom_transformer_forward.7} parent=5 // pred_fallthru
      _
    %p244 = scmp.le.s32.totalorder 1, %s13
    %p245 = scmp.lt.s32.totalorder %s13, 3
    %p246 = pnand %p244, %p245
    %p247 = pneg %p246
    // Predicated region
    $region45: #{custom_transformer_forward.7} parent=5 // pred_check
      _
    $region46: #{custom_transformer_forward.7} parent=5 // pred_check_branch
      %249 = sbr.rel (%p246) target = $region48
    $region47: #{custom_transformer_forward.7} parent=5 // pred_region
      %s250 = ssub.s32 %s13, 1
      %p251 = scmp.lt.s32.totalorder %s18, 1
      %s252 = scalar_select %p251, %s18, 1
      %s253 = smul.addr %s252, 8
      %s254 = scalar_lea.vmem %s0, %s253
      %p255 = pneg %p39
      %p256 = pneg %p36
      %p257 = scmp.lt.s32.totalorder %s18, 1
      %s258 = scalar_select %p257, %s18, 1
      %s259 = smul.addr %s258, 8
      %s260 = scalar_lea.vmem %s1, %s259
      %p261 = pneg %p65
      %p262 = pneg %p62
      %p263 = pneg %p86
      %p264 = pneg %p83
      %p265 = pneg %p107
      %p266 = pneg %p104
      %p267 = pneg %p128
      %p268 = pneg %p125
      %p269 = pneg %p149
      %p270 = pneg %p146
      %p271 = pneg %p170
      %p272 = pneg %p167
      %p273 = pneg %p196
      %p274 = pneg %p193
      %p275 = scmp.lt.s32.totalorder %s18, 1
      %s276 = scalar_select %p275, %s18, 1
      %s277 = smul.addr %s276, 8
      %s278 = scalar_lea.vmem %s7, %s277
      %p279 = scmp.lt.s32.totalorder %s18, 1
      %s280 = scalar_select %p279, %s18, 1
      %s281 = smul.addr %s280, 8
      %s282 = scalar_lea.vmem %s0, %s281
      %p283 = scmp.lt.s32.totalorder %s18, 1
      %s284 = scalar_select %p283, %s18, 1
      %s285 = smul.addr %s284, 8
      %s286 = scalar_lea.vmem %s1, %s285
      %p287 = scmp.lt.s32.totalorder %s18, 1
      %s288 = scalar_select %p287, %s18, 1
      %s289 = smul.addr %s288, 8
      %s290 = scalar_lea.vmem %s7, %s289
      %v292 = vld [vmem:[%s282] sm:$0xff]
      %v293 = vpack.c.bf16 %v292, %v292
      %v294 = vld [vmem:[%s286] sm:$0xff]
      %v295 = vpack.c.bf16 %v294, %v294
      %v296 = vld [vmem:[%s2] sm:$0xff]
      %v297 = vld [vmem:[%s3] sm:$0xff]
      %v298 = vld [vmem:[%s3 + $0x8] sm:$0xf]
      %v299 = vld [vmem:[%s3 + $0xc] sm:$0xff]
      %v300 = vld [vmem:[%s3 + $0x14] sm:$0xf]
      %v301 = vld [vmem:[%s3 + $0x18] sm:$0xff]
      %v302 = vld [vmem:[%s3 + $0x20] sm:$0xf]
      %v303 = vld [vmem:[%s3 + $0x24] sm:$0xff]
      %v304 = vld [vmem:[%s3 + $0x2c] sm:$0xf]
      %v305 = vld [vmem:[%s4] sm:$0x7]
      %v307 = vperm.slane %v305, 0
      %v308 = vperm.slane %v305, 1
      %v309 = vperm.slane %v305, 2
      %v321 = vunpack.c.l.b16 %v297
      %v322 = vunpack.c.h.b16 %v297
      %v323 = vunpack.c.l.b16 %v298
      %v324 = vunpack.c.l.b16 %v299
      %v325 = vunpack.c.h.b16 %v299
      %v326 = vunpack.c.l.b16 %v300
      %v327 = vunpack.c.l.b16 %v301
      %v328 = vunpack.c.h.b16 %v301
      %v329 = vunpack.c.l.b16 %v302
      %v330 = vunpack.c.l.b16 %v303
      %v331 = vunpack.c.h.b16 %v303
      %v332 = vunpack.c.l.b16 %v304
      %v333 = vpack.c.b16 %v324, %v321
      %v334 = vpack.c.b16 %v325, %v322
      %v335 = vpack.c.b16 %v326, %v323
      %v336 = vpack.c.b16 %v330, %v327
      %v337 = vpack.c.b16 %v331, %v328
      %v338 = vpack.c.b16 %v332, %v329
      %vm345 = vcmask 261120
      %v347 = vsel %vm345, %v293, 0
      %349 = vmatpush.bf16.msra.mxu0 0
      %350 = vmatpush.bf16.msra.mxu0 0
      %351 = vmatpush.bf16.msra.mxu0 0
      %352 = vmatpush.bf16.msra.mxu0 0
      %353 = vmatpush.bf16.msra.mxu0 0
      %354 = vmatpush.bf16.msra.mxu0 0
      %355 = vmatpush.bf16.msra.mxu0 %v336
      %356 = vmatpush.bf16.msra.mxu0 %v333
      %357 = vmatmul.bf16.gmra.mxu0 %v347
      %v358 = vpop.f32.mrf.mxu0
      %v359 = vadd.f32 %v307, %v358
      %v360 = vpop.f32.mrf.mxu0
      %361 = vdwg.mxu0
      %362 = vmatpush.bf16.msra.mxu0 0
      %363 = vmatpush.bf16.msra.mxu0 0
      %364 = vmatpush.bf16.msra.mxu0 0
      %365 = vmatpush.bf16.msra.mxu0 0
      %366 = vmatpush.bf16.msra.mxu0 0
      %367 = vmatpush.bf16.msra.mxu0 0
      %368 = vmatpush.bf16.msra.mxu0 %v337
      %369 = vmatpush.bf16.msra.mxu0 %v334
      %370 = vmatmul.bf16.gmra.mxu0 %v347
      %v371 = vpop.f32.mrf.mxu0
      %v372 = vadd.f32 %v308, %v371
      %v373 = vpop.f32.mrf.mxu0
      %374 = vdwg.mxu0
      %375 = vmatpush.bf16.msra.mxu0 0
      %376 = vmatpush.bf16.msra.mxu0 0
      %377 = vmatpush.bf16.msra.mxu0 0
      %378 = vmatpush.bf16.msra.mxu0 0
      %379 = vmatpush.bf16.msra.mxu0 0
      %380 = vmatpush.bf16.msra.mxu0 0
      %381 = vmatpush.bf16.msra.mxu0 %v338
      %382 = vmatpush.bf16.msra.mxu0 %v335
      %383 = vmatmul.bf16.gmra.mxu0 %v347
      %v384 = vpop.f32.mrf.mxu0
      %v385 = vadd.f32 %v309, %v384
      %v386 = vpop.f32.mrf.mxu0
      %387 = vdwg.mxu0
      %v388 = vpack.c.bf16 %v372, %v359
      %v389 = vpack.c.bf16 %v385, %v385
      %v390 = vld [vmem:[%s5] sm:$0xff]
      %v391 = vld [vmem:[%s5 + $0x8] sm:$0xff]
      %v392 = vld [vmem:[%s5 + $0x10] sm:$0xff]
      %v393 = vld [vmem:[%s5 + $0x18] sm:$0xff]
      %v394 = vld [vmem:[%s6] sm:$0x3]
      %v396 = vperm.slane %v394, 0
      %v397 = vperm.slane %v394, 1
      %v404 = vunpack.c.l.b16 %v390
      %v405 = vunpack.c.h.b16 %v390
      %v406 = vunpack.c.l.b16 %v391
      %v407 = vunpack.c.h.b16 %v391
      %v408 = vunpack.c.l.b16 %v392
      %v409 = vunpack.c.h.b16 %v392
      %v410 = vunpack.c.l.b16 %v393
      %v411 = vunpack.c.h.b16 %v393
      %v412 = vpack.c.b16 %v406, %v404
      %v413 = vpack.c.b16 %v407, %v405
      %v414 = vpack.c.b16 %v410, %v408
      %v415 = vpack.c.b16 %v411, %v409
      %v421 = vsel %vm345, %v295, 0
      %423 = vmatpush.bf16.msra.mxu0 0
      %424 = vmatpush.bf16.msra.mxu0 0
      %425 = vmatpush.bf16.msra.mxu0 0
      %426 = vmatpush.bf16.msra.mxu0 0
      %427 = vmatpush.bf16.msra.mxu0 0
      %428 = vmatpush.bf16.msra.mxu0 0
      %429 = vmatpush.bf16.msra.mxu0 %v414
      %430 = vmatpush.bf16.msra.mxu0 %v412
      %431 = vmatmul.bf16.gmra.mxu0 %v421
      %v432 = vpop.f32.mrf.mxu0
      %v433 = vadd.f32 %v396, %v432
      %v434 = vpop.f32.mrf.mxu0
      %435 = vdwg.mxu0
      %436 = vmatpush.bf16.msra.mxu0 0
      %437 = vmatpush.bf16.msra.mxu0 0
      %438 = vmatpush.bf16.msra.mxu0 0
      %439 = vmatpush.bf16.msra.mxu0 0
      %440 = vmatpush.bf16.msra.mxu0 0
      %441 = vmatpush.bf16.msra.mxu0 0
      %442 = vmatpush.bf16.msra.mxu0 %v415
      %443 = vmatpush.bf16.msra.mxu0 %v413
      %444 = vmatmul.bf16.gmra.mxu0 %v421
      %v445 = vpop.f32.mrf.mxu0
      %v446 = vadd.f32 %v397, %v445
      %v447 = vpop.f32.mrf.mxu0
      %448 = vdwg.mxu0
      %v449 = vpack.c.bf16 %v446, %v433
      %v451 = vunpack.c.l.b16 %v449
      %v452 = vpack.c.b16 %v451, %v451
      %453 = vrot.lane.b32.xlu0 %v452, 32
      %v454 = vpop.permute.xlu0 %453
      %v457 = vsel %vm345, %v388, %v454
      %v459 = vrot.slane %v388, 4
      %v461 = vunpack.c.l.bf16 %v459
      %v462 = vrot.slane %v449, 4
      %v464 = vunpack.c.l.bf16 %v462
      %v465 = vadd.f32 %v461, %v464
      %v466 = vpack.c.bf16 %v465, %v465
      %v467 = vunpack.c.h.b16 %v388
      %v468 = vpack.c.b16 %v467, %v467
      %469 = vrot.lane.b32.xlu0 %v468, 32
      %v470 = vpop.permute.xlu0 %469
      %v473 = vsel %vm345, %v466, %v470
      %vm474 = vcmask 523264
      %v475 = vsel %vm474, %v457, 0
      %v477 = vsel %vm474, %v473, 0
      %479 = vmatpush.bf16.xpose.msra.mxu0 0
      %480 = vmatpush.bf16.xpose.msra.mxu0 0
      %481 = vmatpush.bf16.xpose.msra.mxu0 0
      %482 = vmatpush.bf16.xpose.msra.mxu0 0
      %483 = vmatpush.bf16.xpose.msra.mxu0 0
      %484 = vmatpush.bf16.xpose.msra.mxu0 0
      %485 = vmatpush.bf16.xpose.msra.mxu0 0
      %486 = vmatpush.bf16.xpose.msra.mxu0 %v477
      %487 = vmatmul.bf16.gmra.mxu0 %v475
      %v488 = vpop.f32.mrf.mxu0
      %v489 = vadd.f32 %v296, %v488
      %v490 = vpop.f32.mrf.mxu0
      %491 = vdwg.mxu0
      %vm492 = vcmask 64512
      %v493 = vsel %vm492, %v489, -inf
      %494 = vmax.xlane.f32.xlu0 %v493
      %v495 = vpop.xlane.xlu0 %494
      %v496 = vsub.f32 %v489, %v495
      %v497 = vmul.f32 %v496, 1.442695
      %v498 = vpow.pop %v497
      %v499 = vsel %vm492, %v498, 0.0
      %500 = vadd.xlane.f32.xlu0 %v499
      %v501 = vpop.xlane.xlu0 %500
      %v502 = vrcp.pop %v501
      %v503 = vmul.f32 %v498, %v502
      %v504 = vpack.c.bf16 %v503, %v503
      %v506 = vsel %vm492, %v504, 0
      %vm508 = vcmask 1043456
      %v510 = vsel %vm508, %v389, 0
      %512 = vmatpush.bf16.msra.mxu0 0
      %513 = vmatpush.bf16.msra.mxu0 0
      %514 = vmatpush.bf16.msra.mxu0 0
      %515 = vmatpush.bf16.msra.mxu0 0
      %516 = vmatpush.bf16.msra.mxu0 0
      %517 = vmatpush.bf16.msra.mxu0 0
      %518 = vmatpush.bf16.msra.mxu0 0
      %519 = vmatpush.bf16.msra.mxu0 %v510
      %520 = vmatmul.bf16.gmra.mxu0 %v506
      %v521 = vpop.f32.mrf.mxu0
      %v522 = vadd.f32 0.0, %v521
      %v523 = vpop.f32.mrf.mxu0
      %524 = vdwg.mxu0
      %525 = vst.msk [vmem:[%s290] sm:$0xff] %vm345, %v522
      %v526 = vunpack.c.l.b16 %v388
      %v527 = vpack.c.b16 %v526, %v526
      %528 = vrot.lane.b32.xlu0 %v527, 96
      %v529 = vpop.permute.xlu0 %528
      %v532 = vsel %vm345, %v529, %v449
      %533 = vrot.lane.b32.xlu0 %v388, 96
      %v534 = vpop.permute.xlu0 %533
      %v535 = vrot.slane %v534, 4
      %v537 = vunpack.c.l.bf16 %v535
      %538 = vrot.lane.b32.xlu0 %v449, 96
      %v539 = vpop.permute.xlu0 %538
      %v540 = vrot.slane %v539, 4
      %v542 = vunpack.c.l.bf16 %v540
      %v543 = vadd.f32 %v537, %v542
      %v544 = vpack.c.bf16 %v543, %v543
      %v547 = vsel %vm345, %v544, %v468
      %v548 = vsel %vm474, %v532, 0
      %v550 = vsel %vm474, %v547, 0
      %552 = vmatpush.bf16.xpose.msra.mxu0 0
      %553 = vmatpush.bf16.xpose.msra.mxu0 0
      %554 = vmatpush.bf16.xpose.msra.mxu0 0
      %555 = vmatpush.bf16.xpose.msra.mxu0 0
      %556 = vmatpush.bf16.xpose.msra.mxu0 0
      %557 = vmatpush.bf16.xpose.msra.mxu0 0
      %558 = vmatpush.bf16.xpose.msra.mxu0 0
      %559 = vmatpush.bf16.xpose.msra.mxu0 %v550
      %560 = vmatmul.bf16.gmra.mxu0 %v548
      %v561 = vpop.f32.mrf.mxu0
      %v562 = vadd.f32 %v296, %v561
      %v563 = vpop.f32.mrf.mxu0
      %564 = vdwg.mxu0
      %v565 = vsel %vm492, %v562, -inf
      %566 = vmax.xlane.f32.xlu0 %v565
      %v567 = vpop.xlane.xlu0 %566
      %v568 = vsub.f32 %v562, %v567
      %v569 = vmul.f32 %v568, 1.442695
      %v570 = vpow.pop %v569
      %v571 = vsel %vm492, %v570, 0.0
      %572 = vadd.xlane.f32.xlu0 %v571
      %v573 = vpop.xlane.xlu0 %572
      %v574 = vrcp.pop %v573
      %v575 = vmul.f32 %v570, %v574
      %v576 = vpack.c.bf16 %v575, %v575
      %v578 = vunpack.c.l.b16 %v389
      %v579 = vpack.c.b16 %v578, %v578
      %580 = vrot.lane.b32.xlu0 %v579, 96
      %v581 = vpop.permute.xlu0 %580
      %v583 = vsel %vm492, %v576, 0
      %v586 = vsel %vm508, %v581, 0
      %588 = vmatpush.bf16.msra.mxu0 0
      %589 = vmatpush.bf16.msra.mxu0 0
      %590 = vmatpush.bf16.msra.mxu0 0
      %591 = vmatpush.bf16.msra.mxu0 0
      %592 = vmatpush.bf16.msra.mxu0 0
      %593 = vmatpush.bf16.msra.mxu0 0
      %594 = vmatpush.bf16.msra.mxu0 0
      %595 = vmatpush.bf16.msra.mxu0 %v586
      %596 = vmatmul.bf16.gmra.mxu0 %v583
      %v597 = vpop.f32.mrf.mxu0
      %v598 = vadd.f32 0.0, %v597
      %v599 = vpop.f32.mrf.mxu0
      %600 = vdwg.mxu0
      %602 = vrot.lane.b32.xlu0 %v598, 32
      %v603 = vpop.permute.xlu0 %602
      %vm605 = vcmask 523520
      %606 = vst.msk [vmem:[%s290] sm:$0xff] %vm605, %v603
      %607 = vrot.lane.b32.xlu0 %v527, 64
      %v608 = vpop.permute.xlu0 %607
      %609 = vrot.lane.b32.xlu0 %v452, 96
      %v610 = vpop.permute.xlu0 %609
      %v613 = vsel %vm345, %v608, %v610
      %614 = vrot.lane.b32.xlu0 %v388, 64
      %v615 = vpop.permute.xlu0 %614
      %v616 = vrot.slane %v615, 4
      %v618 = vunpack.c.l.bf16 %v616
      %619 = vrot.lane.b32.xlu0 %v449, 64
      %v620 = vpop.permute.xlu0 %619
      %v621 = vrot.slane %v620, 4
      %v623 = vunpack.c.l.bf16 %v621
      %v624 = vadd.f32 %v618, %v623
      %v625 = vpack.c.bf16 %v624, %v624
      %626 = vrot.lane.b32.xlu0 %v468, 96
      %v627 = vpop.permute.xlu0 %626
      %v630 = vsel %vm345, %v625, %v627
      %v631 = vsel %vm474, %v613, 0
      %v633 = vsel %vm474, %v630, 0
      %635 = vmatpush.bf16.xpose.msra.mxu0 0
      %636 = vmatpush.bf16.xpose.msra.mxu0 0
      %637 = vmatpush.bf16.xpose.msra.mxu0 0
      %638 = vmatpush.bf16.xpose.msra.mxu0 0
      %639 = vmatpush.bf16.xpose.msra.mxu0 0
      %640 = vmatpush.bf16.xpose.msra.mxu0 0
      %641 = vmatpush.bf16.xpose.msra.mxu0 0
      %642 = vmatpush.bf16.xpose.msra.mxu0 %v633
      %643 = vmatmul.bf16.gmra.mxu0 %v631
      %v644 = vpop.f32.mrf.mxu0
      %v645 = vadd.f32 %v296, %v644
      %v646 = vpop.f32.mrf.mxu0
      %647 = vdwg.mxu0
      %v648 = vsel %vm492, %v645, -inf
      %649 = vmax.xlane.f32.xlu0 %v648
      %v650 = vpop.xlane.xlu0 %649
      %v651 = vsub.f32 %v645, %v650
      %v652 = vmul.f32 %v651, 1.442695
      %v653 = vpow.pop %v652
      %v654 = vsel %vm492, %v653, 0.0
      %655 = vadd.xlane.f32.xlu0 %v654
      %v656 = vpop.xlane.xlu0 %655
      %v657 = vrcp.pop %v656
      %v658 = vmul.f32 %v653, %v657
      %v659 = vpack.c.bf16 %v658, %v658
      %660 = vrot.lane.b32.xlu0 %v579, 64
      %v661 = vpop.permute.xlu0 %660
      %v663 = vsel %vm492, %v659, 0
      %v666 = vsel %vm508, %v661, 0
      %668 = vmatpush.bf16.msra.mxu0 0
      %669 = vmatpush.bf16.msra.mxu0 0
      %670 = vmatpush.bf16.msra.mxu0 0
      %671 = vmatpush.bf16.msra.mxu0 0
      %672 = vmatpush.bf16.msra.mxu0 0
      %673 = vmatpush.bf16.msra.mxu0 0
      %674 = vmatpush.bf16.msra.mxu0 0
      %675 = vmatpush.bf16.msra.mxu0 %v666
      %676 = vmatmul.bf16.gmra.mxu0 %v663
      %v677 = vpop.f32.mrf.mxu0
      %v678 = vadd.f32 0.0, %v677
      %v679 = vpop.f32.mrf.mxu0
      %680 = vdwg.mxu0
      %682 = vrot.lane.b32.xlu0 %v678, 64
      %v683 = vpop.permute.xlu0 %682
      %vm685 = vcmask 785920
      %686 = vst.msk [vmem:[%s290] sm:$0xff] %vm685, %v683
      %687 = vrot.lane.b32.xlu0 %v527, 32
      %v688 = vpop.permute.xlu0 %687
      %689 = vrot.lane.b32.xlu0 %v452, 64
      %v690 = vpop.permute.xlu0 %689
      %v693 = vsel %vm345, %v688, %v690
      %694 = vrot.lane.b32.xlu0 %v388, 32
      %v695 = vpop.permute.xlu0 %694
      %v696 = vrot.slane %v695, 4
      %v698 = vunpack.c.l.bf16 %v696
      %699 = vrot.lane.b32.xlu0 %v449, 32
      %v700 = vpop.permute.xlu0 %699
      %v701 = vrot.slane %v700, 4
      %v703 = vunpack.c.l.bf16 %v701
      %v704 = vadd.f32 %v698, %v703
      %v705 = vpack.c.bf16 %v704, %v704
      %706 = vrot.lane.b32.xlu0 %v468, 64
      %v707 = vpop.permute.xlu0 %706
      %v710 = vsel %vm345, %v705, %v707
      %v711 = vsel %vm474, %v693, 0
      %v713 = vsel %vm474, %v710, 0
      %715 = vmatpush.bf16.xpose.msra.mxu0 0
      %716 = vmatpush.bf16.xpose.msra.mxu0 0
      %717 = vmatpush.bf16.xpose.msra.mxu0 0
      %718 = vmatpush.bf16.xpose.msra.mxu0 0
      %719 = vmatpush.bf16.xpose.msra.mxu0 0
      %720 = vmatpush.bf16.xpose.msra.mxu0 0
      %721 = vmatpush.bf16.xpose.msra.mxu0 0
      %722 = vmatpush.bf16.xpose.msra.mxu0 %v713
      %723 = vmatmul.bf16.gmra.mxu0 %v711
      %v724 = vpop.f32.mrf.mxu0
      %v725 = vadd.f32 %v296, %v724
      %v726 = vpop.f32.mrf.mxu0
      %727 = vdwg.mxu0
      %v728 = vsel %vm492, %v725, -inf
      %729 = vmax.xlane.f32.xlu0 %v728
      %v730 = vpop.xlane.xlu0 %729
      %v731 = vsub.f32 %v725, %v730
      %v732 = vmul.f32 %v731, 1.442695
      %v733 = vpow.pop %v732
      %v734 = vsel %vm492, %v733, 0.0
      %735 = vadd.xlane.f32.xlu0 %v734
      %v736 = vpop.xlane.xlu0 %735
      %v737 = vrcp.pop %v736
      %v738 = vmul.f32 %v733, %v737
      %v739 = vpack.c.bf16 %v738, %v738
      %740 = vrot.lane.b32.xlu0 %v579, 32
      %v741 = vpop.permute.xlu0 %740
      %v743 = vsel %vm492, %v739, 0
      %v746 = vsel %vm508, %v741, 0
      %748 = vmatpush.bf16.msra.mxu0 0
      %749 = vmatpush.bf16.msra.mxu0 0
      %750 = vmatpush.bf16.msra.mxu0 0
      %751 = vmatpush.bf16.msra.mxu0 0
      %752 = vmatpush.bf16.msra.mxu0 0
      %753 = vmatpush.bf16.msra.mxu0 0
      %754 = vmatpush.bf16.msra.mxu0 0
      %755 = vmatpush.bf16.msra.mxu0 %v746
      %756 = vmatmul.bf16.gmra.mxu0 %v743
      %v757 = vpop.f32.mrf.mxu0
      %v758 = vadd.f32 0.0, %v757
      %v759 = vpop.f32.mrf.mxu0
      %760 = vdwg.mxu0
      %762 = vrot.lane.b32.xlu0 %v758, 96
      %v763 = vpop.permute.xlu0 %762
      %vm765 = vcmask 1048320
      %766 = vst.msk [vmem:[%s290] sm:$0xff] %vm765, %v763
      %p767 = scmp.lt.s32.totalorder %s18, 1
      %s768 = scalar_select %p767, %s18, 1
      %s769 = smul.addr %s768, 8
      %s770 = scalar_lea.vmem %s7, %s769
      // Predicated region
      $region49: #{custom_transformer_forward.7} parent=47 // pred_check
        %p771 = pneg %p193
      $region50: #{custom_transformer_forward.7} parent=47 // pred_check_branch
        %773 = sbr.rel (%p771) target = $region52
      $region51: #{custom_transformer_forward.7} parent=47 // pred_region
        _
      $region52: #{custom_transformer_forward.7} parent=47 // pred_fallthru
        _
    $region48: #{custom_transformer_forward.7} parent=5 // pred_fallthru
      _
    %p774 = scmp.le.s32.totalorder 2, %s13
    // Predicated region
    $region53: #{custom_transformer_forward.7} parent=5 // pred_check
      %p775 = pneg %p774
    $region54: #{custom_transformer_forward.7} parent=5 // pred_check_branch
      %777 = sbr.rel (%p775) target = $region56
    $region55: #{custom_transformer_forward.7} parent=5 // pred_region
      %s778 = ssub.s32 %s13, 2
      // Predicated region
      $region57: #{custom_transformer_forward.7} parent=55 // pred_check
        %p779 = pneg %p199
      $region58: #{custom_transformer_forward.7} parent=55 // pred_check_branch
        %781 = sbr.rel (%p779) target = $region60
      $region59: #{custom_transformer_forward.7} parent=55 // pred_region
        %p782 = scmp.lt.s32.totalorder %s19, 1
        %s783 = scalar_select %p782, %s19, 1
        %s784 = smul.addr %s783, 8
        %s785 = scalar_lea.vmem %s7, %s784
      $region60: #{custom_transformer_forward.7} parent=55 // pred_fallthru
        _
    $region56: #{custom_transformer_forward.7} parent=5 // pred_fallthru
      _
  $region6: #{custom_transformer_forward.7} parent=0 // loop_footer
    %s17 = sadd.s32 1, %s13
  $region7: #{custom_transformer_forward.7} parent=0 // loop_footer_branch
    %12 = sbr.rel target = $region3
  $region8: #{custom_transformer_forward.7} parent=0 // loop_exit
    _

// kernel: custom_transformer_forward.9
$region0: #{custom_transformer_forward.9}
  #allocation0 [shape = 'u32[]', space=smem, size = 0x4, offset = 0x4, fixed_abs, tag = 'smem constant byte address 0x4 - core index']
  #allocation1 [shape = 'u32[72,128]{1,0:T(1,128)}', space=vmem, size = 0x9000, scoped, tag = 'internal scratch']
  %s0 = inlined_call_operand.vmem [shape: f32[16,32], index: 0, kind: input, shape index: {}]
  %s1 = inlined_call_operand.vmem [shape: f32[1,32], index: 1, kind: input, shape index: {}]
  %s2 = inlined_call_operand.vmem [shape: f32[1,32], index: 2, kind: input, shape index: {}]
  %s3 = inlined_call_operand.vmem [shape: f32[16,32], index: 3, kind: output, shape index: {}]
  %s4 = sld [smem:[#allocation0]]
  $region45: #{custom_transformer_forward.9} parent=0
    _
  %s6 = ssub.s32 1, %s4
  %s7 = scalar_select 0, %s6, %s4
  loop: start=0, step=1, limit=4
  $region2: #{custom_transformer_forward.9} parent=0 // loop_pre_header
    _
  $region3: #{custom_transformer_forward.9} parent=0 // loop_header
    %s9 = sphi 0, %s13
    %p10 = scmp.ge.s32.totalorder %s9, 4
    %s19 = sphi 0, %s21
    %s22 = sphi 0, %s19
    %s23 = sphi 0, %s22
    %s39 = sphi 0, %s23
    %s43 = sphi 0, %s43
    %s45 = sphi 0, %s43
    %s46 = sphi 0, %s45
    %s60 = sphi 0, %s46
    %s64 = sphi 0, %s64
    %s66 = sphi 0, %s64
    %s67 = sphi 0, %s66
    %s81 = sphi 0, %s67
    %s87 = sphi 0, %s89
    %s90 = sphi 0, %s87
    %s91 = sphi 0, %s90
    %s107 = sphi 0, %s91
  $region4: #{custom_transformer_forward.9} parent=0 // loop_header_branch
    %12 = sbr.rel (%p10) target = $region8
  $region5: #{custom_transformer_forward.9} parent=0 // loop_body
    %s14 = ssub.s32 %s9, 1
    %s15 = ssub.s32 %s9, 2
    %s16 = sadd.s32 %s9, 1
    %s17 = ssub.s32 %s9, %s16
    %p18 = scmp.eq.s32.totalorder %s17, 0
    %s20 = sadd.s32 %s19, 1
    %s21 = scalar_select %p18, %s19, %s20
    %p24 = pneg %p18
    %p25 = scmp.eq.s32.totalorder %s9, 1
    %p26 = por %p24, %p25
    %p27 = scmp.ne.s32.totalorder %s19, %s22
    %p28 = scmp.eq.s32.totalorder %s9, 0
    %p29 = por %p27, %p28
    %p30 = scmp.ne.s32.totalorder %s19, %s22
    %p31 = scmp.eq.s32.totalorder %s14, 1
    %p32 = por %p30, %p31
    %p33 = scmp.ne.s32.totalorder %s22, %s23
    %p34 = scmp.eq.s32.totalorder %s14, 0
    %p35 = por %p33, %p34
    %p36 = scmp.ne.s32.totalorder %s22, %s23
    %p37 = scmp.eq.s32.totalorder %s15, 1
    %p38 = por %p36, %p37
    %p40 = scmp.ne.s32.totalorder %s23, %s39
    %p41 = scmp.eq.s32.totalorder %s15, 0
    %p42 = por %p40, %p41
    %s44 = sadd.s32 %s43, 1
    %p47 = scmp.eq.s32.totalorder %s9, 1
    %p48 = scmp.ne.s32.totalorder %s43, %s45
    %p49 = scmp.eq.s32.totalorder %s9, 0
    %p50 = por %p48, %p49
    %p51 = scmp.ne.s32.totalorder %s43, %s45
    %p52 = scmp.eq.s32.totalorder %s14, 1
    %p53 = por %p51, %p52
    %p54 = scmp.ne.s32.totalorder %s45, %s46
    %p55 = scmp.eq.s32.totalorder %s14, 0
    %p56 = por %p54, %p55
    %p57 = scmp.ne.s32.totalorder %s45, %s46
    %p58 = scmp.eq.s32.totalorder %s15, 1
    %p59 = por %p57, %p58
    %p61 = scmp.ne.s32.totalorder %s46, %s60
    %p62 = scmp.eq.s32.totalorder %s15, 0
    %p63 = por %p61, %p62
    %s65 = sadd.s32 %s64, 1
    %p68 = scmp.eq.s32.totalorder %s9, 1
    %p69 = scmp.ne.s32.totalorder %s64, %s66
    %p70 = scmp.eq.s32.totalorder %s9, 0
    %p71 = por %p69, %p70
    %p72 = scmp.ne.s32.totalorder %s64, %s66
    %p73 = scmp.eq.s32.totalorder %s14, 1
    %p74 = por %p72, %p73
    %p75 = scmp.ne.s32.totalorder %s66, %s67
    %p76 = scmp.eq.s32.totalorder %s14, 0
    %p77 = por %p75, %p76
    %p78 = scmp.ne.s32.totalorder %s66, %s67
    %p79 = scmp.eq.s32.totalorder %s15, 1
    %p80 = por %p78, %p79
    %p82 = scmp.ne.s32.totalorder %s67, %s81
    %p83 = scmp.eq.s32.totalorder %s15, 0
    %p84 = por %p82, %p83
    %s85 = ssub.s32 %s9, %s16
    %p86 = scmp.eq.s32.totalorder %s85, 0
    %s88 = sadd.s32 %s87, 1
    %s89 = scalar_select %p86, %s87, %s88
    %p92 = pneg %p86
    %p93 = scmp.eq.s32.totalorder %s9, 1
    %p94 = por %p92, %p93
    %p95 = scmp.ne.s32.totalorder %s87, %s90
    %p96 = scmp.eq.s32.totalorder %s9, 0
    %p97 = por %p95, %p96
    %p98 = scmp.ne.s32.totalorder %s87, %s90
    %p99 = scmp.eq.s32.totalorder %s14, 1
    %p100 = por %p98, %p99
    %p101 = scmp.ne.s32.totalorder %s90, %s91
    %p102 = scmp.eq.s32.totalorder %s14, 0
    %p103 = por %p101, %p102
    %p104 = scmp.ne.s32.totalorder %s90, %s91
    %p105 = scmp.eq.s32.totalorder %s15, 1
    %p106 = por %p104, %p105
    %p108 = scmp.ne.s32.totalorder %s91, %s107
    %p109 = scmp.eq.s32.totalorder %s15, 0
    %p110 = por %p108, %p109
    %p111 = scmp.le.s32.totalorder 1, %s9
    %p112 = scmp.lt.s32.totalorder %s9, 3
    %p113 = pnand %p111, %p112
    %p114 = pneg %p113
    // Predicated region
    $region9: #{custom_transformer_forward.9} parent=5 // pred_check
      _
    $region10: #{custom_transformer_forward.9} parent=5 // pred_check_branch
      %116 = sbr.rel (%p113) target = $region12
    $region11: #{custom_transformer_forward.9} parent=5 // pred_region
      %s117 = ssub.s32 %s9, 1
      // Predicated region
      $region13: #{custom_transformer_forward.9} parent=11 // pred_check
        %p118 = pneg %p56
      $region14: #{custom_transformer_forward.9} parent=11 // pred_check_branch
        %120 = sbr.rel (%p118) target = $region16
      $region15: #{custom_transformer_forward.9} parent=11 // pred_region
        _
      $region16: #{custom_transformer_forward.9} parent=11 // pred_fallthru
        _
      // Predicated region
      $region17: #{custom_transformer_forward.9} parent=11 // pred_check
        %p121 = pneg %p77
      $region18: #{custom_transformer_forward.9} parent=11 // pred_check_branch
        %123 = sbr.rel (%p121) target = $region20
      $region19: #{custom_transformer_forward.9} parent=11 // pred_region
        _
      $region20: #{custom_transformer_forward.9} parent=11 // pred_fallthru
        _
    $region12: #{custom_transformer_forward.9} parent=5 // pred_fallthru
      _
    %p124 = scmp.lt.s32.totalorder %s9, 2
    // Predicated region
    $region21: #{custom_transformer_forward.9} parent=5 // pred_check
      %p125 = pneg %p124
    $region22: #{custom_transformer_forward.9} parent=5 // pred_check_branch
      %127 = sbr.rel (%p125) target = $region24
    $region23: #{custom_transformer_forward.9} parent=5 // pred_region
      // Predicated region
      $region25: #{custom_transformer_forward.9} parent=23 // pred_check
        %p128 = pneg %p29
      $region26: #{custom_transformer_forward.9} parent=23 // pred_check_branch
        %130 = sbr.rel (%p128) target = $region28
      $region27: #{custom_transformer_forward.9} parent=23 // pred_region
        %p131 = scmp.lt.s32.totalorder %s9, 1
        %s132 = scalar_select %p131, %s9, 1
        %s133 = smul.addr %s132, 8
        %s134 = scalar_lea.vmem %s0, %s133
      $region28: #{custom_transformer_forward.9} parent=23 // pred_fallthru
        _
    $region24: #{custom_transformer_forward.9} parent=5 // pred_fallthru
      _
    %p135 = scmp.le.s32.totalorder 1, %s9
    %p136 = scmp.lt.s32.totalorder %s9, 3
    %p137 = pnand %p135, %p136
    %p138 = pneg %p137
    // Predicated region
    $region29: #{custom_transformer_forward.9} parent=5 // pred_check
      _
    $region30: #{custom_transformer_forward.9} parent=5 // pred_check_branch
      %140 = sbr.rel (%p137) target = $region32
    $region31: #{custom_transformer_forward.9} parent=5 // pred_region
      %s141 = ssub.s32 %s9, 1
      %p142 = scmp.lt.s32.totalorder %s14, 1
      %s143 = scalar_select %p142, %s14, 1
      %s144 = smul.addr %s143, 8
      %s145 = scalar_lea.vmem %s0, %s144
      %p146 = pneg %p35
      %p147 = pneg %p32
      %p148 = pneg %p56
      %p149 = pneg %p53
      %p150 = pneg %p77
      %p151 = pneg %p74
      %p152 = pneg %p103
      %p153 = pneg %p100
      %p154 = scmp.lt.s32.totalorder %s14, 1
      %s155 = scalar_select %p154, %s14, 1
      %s156 = smul.addr %s155, 8
      %s157 = scalar_lea.vmem %s3, %s156
      %p158 = scmp.lt.s32.totalorder %s14, 1
      %s159 = scalar_select %p158, %s14, 1
      %s160 = smul.addr %s159, 8
      %s161 = scalar_lea.vmem %s0, %s160
      %p162 = scmp.lt.s32.totalorder %s14, 1
      %s163 = scalar_select %p162, %s14, 1
      %s164 = smul.addr %s163, 8
      %s165 = scalar_lea.vmem %s3, %s164
      %v166 = vld [vmem:[%s161] sm:$0xff]
      %vm167 = vcmask 261120
      %v168 = vsel %vm167, %v166, 0.0
      %169 = vadd.xlane.f32.xlu0 %v168
      %v170 = vpop.xlane.xlu0 %169
      %v171 = vrcp.pop 32.0
      %v172 = vmul.f32 32.0, %v171
      %v173 = vsub.f32 1.0, %v172
      %v174 = vmul.f32 %v171, %v173
      %v175 = vadd.f32 %v171, %v174
      %vm176 = vweird.f32 %v171
      %v177 = vsel %vm176, %v171, %v175
      %v178 = vmul.f32 %v170, %v177
      %v179 = vsub.f32 %v166, %v178
      %v180 = vmul.f32 %v179, %v179
      %v181 = vsel %vm167, %v180, 0.0
      %182 = vadd.xlane.f32.xlu0 %v181
      %v183 = vpop.xlane.xlu0 %182
      %v184 = vmul.f32 %v183, %v177
      %v185 = vadd.f32 %v184, 1e-05
      %v186 = vrsqrt.pop %v185
      %v187 = vmul.f32 %v186, %v185
      %v188 = vmul.f32 %v187, %v186
      %v189 = vmul.f32 0.5, %v188
      %v190 = vsub.f32 1.5, %v189
      %v191 = vmul.f32 %v186, %v190
      %vm192 = vweird.f32 %v185
      %vm193 = vweird.f32 %v186
      %vm194 = vmor %vm192, %vm193
      %v195 = vsel %vm194, %v186, %v191
      %v196 = vmul.f32 %v179, %v195
      %v197 = vld [vmem:[%s1] sm:$0x1]
      %v199 = vperm.slane %v197, 0
      %v201 = vmul.f32 %v196, %v199
      %v202 = vld [vmem:[%s2] sm:$0x1]
      %v204 = vperm.slane %v202, 0
      %v206 = vadd.f32 %v201, %v204
      %207 = vst.msk [vmem:[%s165] sm:$0xff] %vm167, %v206
      %p208 = scmp.lt.s32.totalorder %s14, 1
      %s209 = scalar_select %p208, %s14, 1
      %s210 = smul.addr %s209, 8
      %s211 = scalar_lea.vmem %s3, %s210
      // Predicated region
      $region33: #{custom_transformer_forward.9} parent=31 // pred_check
        %p212 = pneg %p100
      $region34: #{custom_transformer_forward.9} parent=31 // pred_check_branch
        %214 = sbr.rel (%p212) target = $region36
      $region35: #{custom_transformer_forward.9} parent=31 // pred_region
        _
      $region36: #{custom_transformer_forward.9} parent=31 // pred_fallthru
        _
    $region32: #{custom_transformer_forward.9} parent=5 // pred_fallthru
      _
    %p215 = scmp.le.s32.totalorder 2, %s9
    // Predicated region
    $region37: #{custom_transformer_forward.9} parent=5 // pred_check
      %p216 = pneg %p215
    $region38: #{custom_transformer_forward.9} parent=5 // pred_check_branch
      %218 = sbr.rel (%p216) target = $region40
    $region39: #{custom_transformer_forward.9} parent=5 // pred_region
      %s219 = ssub.s32 %s9, 2
      // Predicated region
      $region41: #{custom_transformer_forward.9} parent=39 // pred_check
        %p220 = pneg %p106
      $region42: #{custom_transformer_forward.9} parent=39 // pred_check_branch
        %222 = sbr.rel (%p220) target = $region44
      $region43: #{custom_transformer_forward.9} parent=39 // pred_region
        %p223 = scmp.lt.s32.totalorder %s15, 1
        %s224 = scalar_select %p223, %s15, 1
        %s225 = smul.addr %s224, 8
        %s226 = scalar_lea.vmem %s3, %s225
      $region44: #{custom_transformer_forward.9} parent=39 // pred_fallthru
        _
    $region40: #{custom_transformer_forward.9} parent=5 // pred_fallthru
      _
  $region6: #{custom_transformer_forward.9} parent=0 // loop_footer
    %s13 = sadd.s32 1, %s9
  $region7: #{custom_transformer_forward.9} parent=0 // loop_footer_branch
    %8 = sbr.rel target = $region3
  $region8: #{custom_transformer_forward.9} parent=0 // loop_exit
    _

</llo_original>
